<compile_context>
chip_gen: v7x
topology: tpu7x:2x2x1
jax: 0.10.0
libtpu: 0.0.40
codegen_flags: <defaults>
</compile_context>

<pallas_src>
import jax
import jax.numpy as jnp
from jax import lax
from jax.experimental import pallas as pl
from jax.experimental.pallas import tpu as pltpu

NEG_SLOPE = 0.01
BN_EPS = 1e-5
MXU_DTYPE = jnp.bfloat16     # matmul operand / scratch dtype (accumulation stays f32)


def _lrelu(a):
    return jnp.where(a >= 0, a, NEG_SLOPE * a)


def _pick_block_n(n, max_nb=8):
    """Largest divisor of n that is <= max_nb (images per grid step)."""
    nb = 1
    for cand in range(1, min(n, max_nb) + 1):
        if n % cand == 0:
            nb = cand
    return nb


# ---------------------------------------------------------------------------
# Fused kernel: BN1+LReLU -> Conv3x3(s1,p1) -> BN2+LReLU -> Conv4x4(s2,p1)
#
# Layout: everything is channel-major.  Each 2x2 parity plane (a,b) of an image
# is flattened row-major WITH a 1-pixel zero border: lane index of plane cell
# (i, j) is  nb*Fp + (i+1)*Wp + (j+1),  Wp = Wo+2, Fp = (Ho+2)*Wp.  A conv tap
# shift (dr, dc) is then just a constant lane offset dr*Wp + dc, so every tap is
# a static, contiguous slice; border / out-of-image cells are zero (mask), and
# the few "padding" columns of the results are discarded by the wrapper.
# ---------------------------------------------------------------------------
def _make_kernel(NB, Ho, Wo, Cin, G, Cout):
    Hp, Wp = Ho + 2, Wo + 2
    Fp = Hp * Wp
    NBFp = NB * Fp
    M1 = Wp + 1                      # slack for conv1 tap slices (input/act1 layout)
    LW1 = M1 + NBFp + M1
    M2 = 128                         # vreg-aligned interior start for act2 stores
    LW2 = M2 + NBFp + (Wp + 1)
    RZ = (M2 + NBFp) // 128 * 128    # aligned start of right-slack zero fill

    def kernel(xq_ref, mask_ref, scale1_ref, shift1_ref, w1t_ref, b1_ref,
               scale2_ref, shift2_ref, w2t_ref, b2_ref,
               dense_ref, down_ref, act1_scr, act2_scr):
        mask_full = mask_ref[...]                       # (1, LW1)
        mask_int = mask_full[:, M1:M1 + NBFp]           # (1, NBFp)

        # ---- BN1 (affine/inference form) + LeakyReLU over the whole block.
        #      The mask re-zeroes the conv padding cells and the end slack
        #      (BN+LReLU of the zero-filled padding is not zero). ----
        x = xq_ref[...]                                 # (4, Cin, LW1) f32
        a1 = x * scale1_ref[...][None] + shift1_ref[...][None]
        act1_scr[...] = (_lrelu(a1) * mask_full[None]).astype(MXU_DTYPE)

        # act2 slack regions are only read by discarded padding columns; zero them
        # (aligned stores) so the kernel output stays deterministic / finite.
        act2_scr[:, :, 0:M2] = jnp.zeros((4, G, M2), MXU_DTYPE)
        act2_scr[:, :, RZ:LW2] = jnp.zeros((4, G, LW2 - RZ), MXU_DTYPE)

        w1_all = w1t_ref[...]                           # (9, G, Cin)   bf16
        w2_all = w2t_ref[...]                           # (16, Cout, G) bf16
        b1 = b1_ref[...]                                # (G, 1) f32
        s2 = scale2_ref[...]                            # (G, 1)
        t2 = shift2_ref[...]                            # (G, 1)

        # ---- conv1: 3x3 / stride 1 / pad 1.  Per output parity (p,q): 9
        #      accumulating (G, Cin) @ (Cin, NBFp) MXU dots (K=Cin is tiny but the
        #      MXU has slack; this removes every im2col relayout). ----
        for p in range(2):
            for q in range(2):
                pq = 2 * p + q
                acc = None
                for kh in range(3):
                    a, dr = (p + kh - 1) % 2, (p + kh - 1) // 2
                    for kw in range(3):
                        b, dc = (q + kw - 1) % 2, (q + kw - 1) // 2
                        src = 2 * a + b
                        off = M1 + dr * Wp + dc
                        slab = act1_scr[src, :, off:off + NBFp]       # (Cin, NBFp)
                        contrib = jnp.dot(w1_all[3 * kh + kw], slab,
                                          preferred_element_type=jnp.float32)
                        acc = contrib if acc is None else acc + contrib
                dense_pq = acc + b1                                    # (G, NBFp) f32
                dense_ref[pq] = dense_pq.astype(dense_ref.dtype)       # lane-dense store

                # BN2 + LeakyReLU stays in VMEM (no HBM round trip); the mask
                # re-zeroes conv2's padding cells.
                a2 = dense_pq * s2 + t2
                act2_scr[pq, :, M2:M2 + NBFp] = (
                    _lrelu(a2) * mask_int).astype(MXU_DTYPE)

        # ---- conv2: 4x4 / stride 2 / pad 1 -> 16 accumulating
        #      (Cout, G) @ (G, NBFp) dots over the dense parity planes. ----
        acc2 = None
        for kh in range(4):
            p, dr = (kh - 1) % 2, (kh - 1) // 2
            for kw in range(4):
                q, dc = (kw - 1) % 2, (kw - 1) // 2
                src = 2 * p + q
                off = M2 + dr * Wp + dc
                slab = act2_scr[src, :, off:off + NBFp]                # (G, NBFp)
                contrib = jnp.dot(w2_all[4 * kh + kw], slab,
                                  preferred_element_type=jnp.float32)
                acc2 = contrib if acc2 is None else acc2 + contrib
        down_ref[...] = (acc2 + b2_ref[...]).astype(down_ref.dtype)    # lane-dense store

    dims = dict(Hp=Hp, Wp=Wp, Fp=Fp, NBFp=NBFp, M1=M1, LW1=LW1, M2=M2, LW2=LW2)
    return kernel, dims


# ---------------------------------------------------------------------------
# Wrapper: layout glue only (parity split, padded flattening, BN folding,
# transposed per-tap weight layouts, parity decode back to NCHW).
# ---------------------------------------------------------------------------
def dense_down_forward(x_nchw, params, block_n=None):
    x = x_nchw.astype(jnp.float32)                      # NCHW like PyTorch
    N, Cin, H, W = x.shape
    assert H % 2 == 0 and W % 2 == 0, "DenseDown stride-2 path assumes even H, W"
    G = params["conv1_w"].shape[-1]
    Cout = params["conv2_w"].shape[-1]
    Ho, Wo = H // 2, W // 2

    NB = _pick_block_n(N) if block_n is None else block_n
    assert N % NB == 0
    NG = N // NB

    kernel, d = _make_kernel(NB, Ho, Wo, Cin, G, Cout)
    Hp, Wp, Fp, NBFp = d["Hp"], d["Wp"], d["Fp"], d["NBFp"]
    M1, LW1, LW2 = d["M1"], d["LW1"], d["LW2"]

    # Channel-major parity planes, spatial flattened with the 1-pixel conv padding
    # built in, NB images concatenated along the flat (lane) axis, +/-M1 slack.
    xr = x.reshape(NG, NB, Cin, Ho, 2, Wo, 2)
    xr = xr.transpose(0, 4, 6, 2, 1, 3, 5)                    # (NG, p, q, Cin, NB, Ho, Wo)
    xr = jnp.pad(xr, ((0, 0),) * 5 + ((1, 1), (1, 1)))        # plane -> (Hp, Wp)
    xq = xr.reshape(NG, 4, Cin, NBFp)
    xq = jnp.pad(xq, ((0, 0), (0, 0), (0, 0), (M1, M1)))      # (NG, 4, Cin, LW1)

    # 1.0 at interior (valid) positions of the flattened padded planes, 0 elsewhere.
    plane_mask = jnp.pad(jnp.ones((Ho, Wo), jnp.float32), ((1, 1), (1, 1)))
    mask = jnp.pad(jnp.tile(plane_mask.reshape(-1), NB), (M1, M1)).reshape(1, LW1)

    # Fold BN (inference form) into per-channel scale/shift column vectors.
    s1 = params["bn1_gamma"] / jnp.sqrt(params["bn1_var"] + BN_EPS)
    scale1 = s1.reshape(Cin, 1).astype(jnp.float32)
    shift1 = (params["bn1_beta"] - params["bn1_mean"] * s1).reshape(Cin, 1).astype(jnp.float32)
    s2 = params["bn2_gamma"] / jnp.sqrt(params["bn2_var"] + BN_EPS)
    scale2 = s2.reshape(G, 1).astype(jnp.float32)
    shift2 = (params["bn2_beta"] - params["bn2_mean"] * s2).reshape(G, 1).astype(jnp.float32)

    # Transposed (channel-major) per-tap weights for the accumulating MXU dots.
    w1t = jnp.transpose(params["conv1_w"], (0, 1, 3, 2)).reshape(9, G, Cin).astype(MXU_DTYPE)
    b1 = params["conv1_b"].reshape(G, 1).astype(jnp.float32)
    w2t = jnp.transpose(params["conv2_w"], (0, 1, 3, 2)).reshape(16, Cout, G).astype(MXU_DTYPE)
    b2 = params["conv2_b"].reshape(Cout, 1).astype(jnp.float32)

    dense_pl, down_pl = pl.pallas_call(
        kernel,
        out_shape=(
            jax.ShapeDtypeStruct((NG, 4, G, NBFp), jnp.float32),   # dense (parity planes)
            jax.ShapeDtypeStruct((NG, Cout, NBFp), jnp.float32),   # down
        ),
        grid=(NG,),
        in_specs=[
            pl.BlockSpec((None, 4, Cin, LW1), lambda n: (n, 0, 0, 0)),   # input parity planes
            pl.BlockSpec((1, LW1), lambda n: (0, 0)),                    # interior mask
            pl.BlockSpec((Cin, 1), lambda n: (0, 0)),                    # BN1 scale
            pl.BlockSpec((Cin, 1), lambda n: (0, 0)),                    # BN1 shift
            pl.BlockSpec((9, G, Cin), lambda n: (0, 0, 0)),              # conv1 weights^T
            pl.BlockSpec((G, 1), lambda n: (0, 0)),                      # conv1 bias
            pl.BlockSpec((G, 1), lambda n: (0, 0)),                      # BN2 scale
            pl.BlockSpec((G, 1), lambda n: (0, 0)),                      # BN2 shift
            pl.BlockSpec((16, Cout, G), lambda n: (0, 0, 0)),            # conv2 weights^T
            pl.BlockSpec((Cout, 1), lambda n: (0, 0)),                   # conv2 bias
        ],
        out_specs=(
            pl.BlockSpec((None, 4, G, NBFp), lambda n: (n, 0, 0, 0)),
            pl.BlockSpec((None, Cout, NBFp), lambda n: (n, 0, 0)),
        ),
        scratch_shapes=[
            pltpu.VMEM((4, Cin, LW1), MXU_DTYPE),    # act1 parity planes (bf16)
            pltpu.VMEM((4, G, LW2), MXU_DTYPE),      # act2 parity planes (bf16)
        ],
        compiler_params=pltpu.CompilerParams(dimension_semantics=("parallel",)),
    )(xq, mask, scale1, shift1, w1t, b1, scale2, shift2, w2t, b2)

    # Decode the parity-plane, padded-flattened outputs straight to NCHW (XLA glue).
    dsl = dense_pl.reshape(NG, 2, 2, G, NB, Hp, Wp)[..., 1:1 + Ho, 1:1 + Wo]
    dense = dsl.transpose(0, 4, 3, 5, 1, 6, 2).reshape(N, G, H, W)
    dnl = down_pl.reshape(NG, Cout, NB, Hp, Wp)[..., 1:1 + Ho, 1:1 + Wo]
    down = dnl.transpose(0, 2, 1, 3, 4).reshape(N, Cout, Ho, Wo)
    return dense, down


# ---------------------------------------------------------------------------
# Pure-JAX reference (validation only)
# ---------------------------------------------------------------------------
def reference_forward(x_nchw, params):
    x = jnp.transpose(x_nchw, (0, 2, 3, 1)).astype(jnp.float32)

    s1 = params["bn1_gamma"] / jnp.sqrt(params["bn1_var"] + BN_EPS)
    a = x * s1 + (params["bn1_beta"] - params["bn1_mean"] * s1)
    act = jnp.where(a >= 0, a, NEG_SLOPE * a)
    dense = lax.conv_general_dilated(
        act, params["conv1_w"], (1, 1), [(1, 1), (1, 1)],
        dimension_numbers=("NHWC", "HWIO", "NHWC"),
        precision=lax.Precision.HIGHEST) + params["conv1_b"]

    s2 = params["bn2_gamma"] / jnp.sqrt(params["bn2_var"] + BN_EPS)
    a2 = dense * s2 + (params["bn2_beta"] - params["bn2_mean"] * s2)
    act2 = jnp.where(a2 >= 0, a2, NEG_SLOPE * a2)
    down = lax.conv_general_dilated(
        act2, params["conv2_w"], (2, 2), [(1, 1), (1, 1)],
        dimension_numbers=("NHWC", "HWIO", "NHWC"),
        precision=lax.Precision.HIGHEST) + params["conv2_b"]

    return jnp.transpose(dense, (0, 3, 1, 2)), jnp.transpose(down, (0, 3, 1, 2))


if __name__ == "__main__":
    N, Cin, H, W = 2, 4, 16, 16
    G, Cout = 32, 8          # growth_rate=32 (default), out_channels=8

    key = jax.random.PRNGKey(0)
    ks = jax.random.split(key, 13)
    params = {
        "bn1_gamma": 1.0 + 0.1 * jax.random.normal(ks[0], (Cin,), jnp.float32),
        "bn1_beta": 0.1 * jax.random.normal(ks[1], (Cin,), jnp.float32),
        "bn1_mean": 0.1 * jax.random.normal(ks[2], (Cin,), jnp.float32),
        "bn1_var": 1.0 + 0.1 * jnp.abs(jax.random.normal(ks[3], (Cin,), jnp.float32)),
        "conv1_w": 0.1 * jax.random.normal(ks[4], (3, 3, Cin, G), jnp.float32),
        "conv1_b": 0.05 * jax.random.normal(ks[5], (G,), jnp.float32),
        "bn2_gamma": 1.0 + 0.1 * jax.random.normal(ks[6], (G,), jnp.float32),
        "bn2_beta": 0.1 * jax.random.normal(ks[7], (G,), jnp.float32),
        "bn2_mean": 0.1 * jax.random.normal(ks[8], (G,), jnp.float32),
        "bn2_var": 1.0 + 0.1 * jnp.abs(jax.random.normal(ks[9], (G,), jnp.float32)),
        "conv2_w": 0.05 * jax.random.normal(ks[10], (4, 4, G, Cout), jnp.float32),
        "conv2_b": 0.05 * jax.random.normal(ks[11], (Cout,), jnp.float32),
    }
    x = jax.random.normal(ks[12], (N, Cin, H, W), jnp.float32)   # NCHW like PyTorch

    fwd = jax.jit(dense_down_forward)
    dense_out, down_out = jax.block_until_ready(fwd(x, params))
    ref_dense, ref_down = jax.block_until_ready(reference_forward(x, params))

    assert dense_out.shape == (N, G, H, W) and down_out.shape == (N, Cout, H // 2, W // 2)
    # bf16 MXU operands with f32 accumulation -> slightly looser tolerance than pure f32
    assert jnp.allclose(dense_out, ref_dense, atol=2e-2, rtol=2e-2), \
        float(jnp.max(jnp.abs(dense_out - ref_dense)))
    assert jnp.allclose(down_out, ref_down, atol=2e-2, rtol=2e-2), \
        float(jnp.max(jnp.abs(down_out - ref_down)))
    print("KERNEL_OK")
</pallas_src>

<mosaic_0001>
module attributes {stable_mosaic.version = 11 : i64} {
  func.func @kernel(%arg0: i32, %arg1: memref<1x4x4x222xf32, #tpu.memory_space<vmem>>, %arg2: memref<1x222xf32, #tpu.memory_space<vmem>>, %arg3: memref<4x1xf32, #tpu.memory_space<vmem>>, %arg4: memref<4x1xf32, #tpu.memory_space<vmem>>, %arg5: memref<9x32x4xbf16, #tpu.memory_space<vmem>>, %arg6: memref<32x1xf32, #tpu.memory_space<vmem>>, %arg7: memref<32x1xf32, #tpu.memory_space<vmem>>, %arg8: memref<32x1xf32, #tpu.memory_space<vmem>>, %arg9: memref<16x8x32xbf16, #tpu.memory_space<vmem>>, %arg10: memref<8x1xf32, #tpu.memory_space<vmem>>, %arg11: memref<1x4x32x200xf32, #tpu.memory_space<vmem>>, %arg12: memref<1x8x200xf32, #tpu.memory_space<vmem>>, %arg13: memref<4x4x222xbf16, #tpu.memory_space<vmem>>, %arg14: memref<4x32x339xbf16, #tpu.memory_space<vmem>>) attributes {dimension_semantics = [#tpu.dimension_semantics<parallel>], iteration_bounds = array<i64: 1>, scalar_prefetch = 0 : i64, scratch_operands = 2 : i64, tpu.core_type = #tpu.core_type<tc>, window_params = [{transform_indices = @transform_0, window_bounds = array<i64: 1, 4, 4, 222>}, {pipeline_mode = #tpu.pipeline_mode<synchronous>, transform_indices = @transform_1, window_bounds = array<i64: 1, 222>}, {pipeline_mode = #tpu.pipeline_mode<synchronous>, transform_indices = @transform_2, window_bounds = array<i64: 4, 1>}, {pipeline_mode = #tpu.pipeline_mode<synchronous>, transform_indices = @transform_3, window_bounds = array<i64: 4, 1>}, {pipeline_mode = #tpu.pipeline_mode<synchronous>, transform_indices = @transform_4, window_bounds = array<i64: 9, 32, 4>}, {pipeline_mode = #tpu.pipeline_mode<synchronous>, transform_indices = @transform_5, window_bounds = array<i64: 32, 1>}, {pipeline_mode = #tpu.pipeline_mode<synchronous>, transform_indices = @transform_6, window_bounds = array<i64: 32, 1>}, {pipeline_mode = #tpu.pipeline_mode<synchronous>, transform_indices = @transform_7, window_bounds = array<i64: 32, 1>}, {pipeline_mode = #tpu.pipeline_mode<synchronous>, transform_indices = @transform_8, window_bounds = array<i64: 16, 8, 32>}, {pipeline_mode = #tpu.pipeline_mode<synchronous>, transform_indices = @transform_9, window_bounds = array<i64: 8, 1>}, {transform_indices = @transform_10, window_bounds = array<i64: 1, 4, 32, 200>}, {transform_indices = @transform_11, window_bounds = array<i64: 1, 8, 200>}]} {
    %c0 = arith.constant 0 : index
    %c0_0 = arith.constant 0 : index
    %0 = vector.load %arg2[%c0, %c0_0] : memref<1x222xf32, #tpu.memory_space<vmem>>, vector<1x222xf32>
    %1 = vector.extract_strided_slice %0 {offsets = [0, 11], sizes = [1, 200], strides = [1, 1]} : vector<1x222xf32> to vector<1x200xf32>
    %c0_1 = arith.constant 0 : index
    %c0_2 = arith.constant 0 : index
    %c0_3 = arith.constant 0 : index
    %c0_4 = arith.constant 0 : index
    %2 = vector.load %arg1[%c0_1, %c0_2, %c0_3, %c0_4] : memref<1x4x4x222xf32, #tpu.memory_space<vmem>>, vector<1x4x4x222xf32>
    %3 = vector.shape_cast %2 : vector<1x4x4x222xf32> to vector<4x4x222xf32>
    %c0_5 = arith.constant 0 : index
    %c0_6 = arith.constant 0 : index
    %4 = vector.load %arg3[%c0_5, %c0_6] : memref<4x1xf32, #tpu.memory_space<vmem>>, vector<4x1xf32>
    %5 = vector.shape_cast %4 : vector<4x1xf32> to vector<1x4x1xf32>
    %6 = vector.broadcast %5 : vector<1x4x1xf32> to vector<4x4x222xf32>
    %7 = arith.mulf %3, %6 : vector<4x4x222xf32>
    %c0_7 = arith.constant 0 : index
    %c0_8 = arith.constant 0 : index
    %8 = vector.load %arg4[%c0_7, %c0_8] : memref<4x1xf32, #tpu.memory_space<vmem>>, vector<4x1xf32>
    %9 = vector.shape_cast %8 : vector<4x1xf32> to vector<1x4x1xf32>
    %10 = vector.broadcast %9 : vector<1x4x1xf32> to vector<4x4x222xf32>
    %11 = arith.addf %7, %10 : vector<4x4x222xf32>
    %cst = arith.constant 0.000000e+00 : f32
    %12 = vector.broadcast %cst : f32 to vector<4x4x222xf32>
    %13 = arith.cmpf oge, %11, %12 : vector<4x4x222xf32>
    %cst_9 = arith.constant 0.00999999977 : f32
    %14 = vector.broadcast %cst_9 : f32 to vector<4x4x222xf32>
    %15 = arith.mulf %14, %11 : vector<4x4x222xf32>
    %16 = arith.select %13, %11, %15 : vector<4x4x222xi1>, vector<4x4x222xf32>
    %17 = vector.shape_cast %0 : vector<1x222xf32> to vector<1x1x222xf32>
    %18 = vector.broadcast %17 : vector<1x1x222xf32> to vector<4x4x222xf32>
    %19 = arith.mulf %16, %18 : vector<4x4x222xf32>
    %20 = arith.truncf %19 : vector<4x4x222xf32> to vector<4x4x222xbf16>
    %c0_10 = arith.constant 0 : index
    %c0_11 = arith.constant 0 : index
    %c0_12 = arith.constant 0 : index
    %21 = vector.load %arg13[%c0_10, %c0_11, %c0_12] : memref<4x4x222xbf16, #tpu.memory_space<vmem>>, vector<4x4x222xbf16>
    tpu.vector_store %arg13[%c0_10, %c0_11, %c0_12], %20 {strides = array<i32>} : memref<4x4x222xbf16, #tpu.memory_space<vmem>>, vector<4x4x222xbf16>,
    %cst_13 = arith.constant 0.000000e+00 : bf16
    %22 = vector.broadcast %cst_13 : bf16 to vector<4x32x128xbf16>
    %c0_14 = arith.constant 0 : index
    %c0_15 = arith.constant 0 : index
    %c0_16 = arith.constant 0 : index
    %23 = vector.load %arg14[%c0_14, %c0_15, %c0_16] : memref<4x32x339xbf16, #tpu.memory_space<vmem>>, vector<4x32x128xbf16>
    tpu.vector_store %arg14[%c0_14, %c0_15, %c0_16], %22 {strides = array<i32>} : memref<4x32x339xbf16, #tpu.memory_space<vmem>>, vector<4x32x128xbf16>,
    %cst_17 = arith.constant 0.000000e+00 : bf16
    %24 = vector.broadcast %cst_17 : bf16 to vector<4x32x83xbf16>
    %c0_18 = arith.constant 0 : index
    %c0_19 = arith.constant 0 : index
    %c256 = arith.constant 256 : index
    %25 = vector.load %arg14[%c0_18, %c0_19, %c256] : memref<4x32x339xbf16, #tpu.memory_space<vmem>>, vector<4x32x83xbf16>
    tpu.vector_store %arg14[%c0_18, %c0_19, %c256], %24 {strides = array<i32>} : memref<4x32x339xbf16, #tpu.memory_space<vmem>>, vector<4x32x83xbf16>,
    %c0_20 = arith.constant 0 : index
    %c0_21 = arith.constant 0 : index
    %c0_22 = arith.constant 0 : index
    %26 = vector.load %arg5[%c0_20, %c0_21, %c0_22] : memref<9x32x4xbf16, #tpu.memory_space<vmem>>, vector<9x32x4xbf16>
    %c0_23 = arith.constant 0 : index
    %c0_24 = arith.constant 0 : index
    %c0_25 = arith.constant 0 : index
    %27 = vector.load %arg9[%c0_23, %c0_24, %c0_25] : memref<16x8x32xbf16, #tpu.memory_space<vmem>>, vector<16x8x32xbf16>
    %c0_26 = arith.constant 0 : index
    %c0_27 = arith.constant 0 : index
    %28 = vector.load %arg6[%c0_26, %c0_27] : memref<32x1xf32, #tpu.memory_space<vmem>>, vector<32x1xf32>
    %c0_28 = arith.constant 0 : index
    %c0_29 = arith.constant 0 : index
    %29 = vector.load %arg7[%c0_28, %c0_29] : memref<32x1xf32, #tpu.memory_space<vmem>>, vector<32x1xf32>
    %c0_30 = arith.constant 0 : index
    %c0_31 = arith.constant 0 : index
    %30 = vector.load %arg8[%c0_30, %c0_31] : memref<32x1xf32, #tpu.memory_space<vmem>>, vector<32x1xf32>
    %c3 = arith.constant 3 : index
    %c0_32 = arith.constant 0 : index
    %c0_33 = arith.constant 0 : index
    %31 = vector.load %arg13[%c3, %c0_32, %c0_33] : memref<4x4x222xbf16, #tpu.memory_space<vmem>>, vector<1x4x200xbf16>
    %32 = vector.shape_cast %31 : vector<1x4x200xbf16> to vector<4x200xbf16>
    %33 = vector.extract_strided_slice %26 {offsets = [0, 0, 0], sizes = [1, 32, 4], strides = [1, 1, 1]} : vector<9x32x4xbf16> to vector<1x32x4xbf16>
    %34 = vector.shape_cast %33 : vector<1x32x4xbf16> to vector<32x4xbf16>
    %cst_34 = arith.constant dense<0.000000e+00> : vector<32x200xf32>
    %35 = tpu.matmul %34, %32, %cst_34 {dimension_numbers = #tpu.dot_dimension_numbers<[1], [0], [0], [1], [0, 0, 1, 1], [], []>} : vector<32x4xbf16>, vector<4x200xbf16>, vector<32x200xf32> -> vector<32x200xf32>
    %c2 = arith.constant 2 : index
    %c0_35 = arith.constant 0 : index
    %c1 = arith.constant 1 : index
    %36 = vector.load %arg13[%c2, %c0_35, %c1] : memref<4x4x222xbf16, #tpu.memory_space<vmem>>, vector<1x4x200xbf16>
    %37 = vector.shape_cast %36 : vector<1x4x200xbf16> to vector<4x200xbf16>
    %38 = vector.extract_strided_slice %26 {offsets = [1, 0, 0], sizes = [1, 32, 4], strides = [1, 1, 1]} : vector<9x32x4xbf16> to vector<1x32x4xbf16>
    %39 = vector.shape_cast %38 : vector<1x32x4xbf16> to vector<32x4xbf16>
    %cst_36 = arith.constant dense<0.000000e+00> : vector<32x200xf32>
    %40 = tpu.matmul %39, %37, %cst_36 {dimension_numbers = #tpu.dot_dimension_numbers<[1], [0], [0], [1], [0, 0, 1, 1], [], []>} : vector<32x4xbf16>, vector<4x200xbf16>, vector<32x200xf32> -> vector<32x200xf32>
    %41 = arith.addf %35, %40 : vector<32x200xf32>
    %c3_37 = arith.constant 3 : index
    %c0_38 = arith.constant 0 : index
    %c1_39 = arith.constant 1 : index
    %42 = vector.load %arg13[%c3_37, %c0_38, %c1_39] : memref<4x4x222xbf16, #tpu.memory_space<vmem>>, vector<1x4x200xbf16>
    %43 = vector.shape_cast %42 : vector<1x4x200xbf16> to vector<4x200xbf16>
    %44 = vector.extract_strided_slice %26 {offsets = [2, 0, 0], sizes = [1, 32, 4], strides = [1, 1, 1]} : vector<9x32x4xbf16> to vector<1x32x4xbf16>
    %45 = vector.shape_cast %44 : vector<1x32x4xbf16> to vector<32x4xbf16>
    %cst_40 = arith.constant dense<0.000000e+00> : vector<32x200xf32>
    %46 = tpu.matmul %45, %43, %cst_40 {dimension_numbers = #tpu.dot_dimension_numbers<[1], [0], [0], [1], [0, 0, 1, 1], [], []>} : vector<32x4xbf16>, vector<4x200xbf16>, vector<32x200xf32> -> vector<32x200xf32>
    %47 = arith.addf %41, %46 : vector<32x200xf32>
    %c1_41 = arith.constant 1 : index
    %c0_42 = arith.constant 0 : index
    %c10 = arith.constant 10 : index
    %48 = vector.load %arg13[%c1_41, %c0_42, %c10] : memref<4x4x222xbf16, #tpu.memory_space<vmem>>, vector<1x4x200xbf16>
    %49 = vector.shape_cast %48 : vector<1x4x200xbf16> to vector<4x200xbf16>
    %50 = vector.extract_strided_slice %26 {offsets = [3, 0, 0], sizes = [1, 32, 4], strides = [1, 1, 1]} : vector<9x32x4xbf16> to vector<1x32x4xbf16>
    %51 = vector.shape_cast %50 : vector<1x32x4xbf16> to vector<32x4xbf16>
    %cst_43 = arith.constant dense<0.000000e+00> : vector<32x200xf32>
    %52 = tpu.matmul %51, %49, %cst_43 {dimension_numbers = #tpu.dot_dimension_numbers<[1], [0], [0], [1], [0, 0, 1, 1], [], []>} : vector<32x4xbf16>, vector<4x200xbf16>, vector<32x200xf32> -> vector<32x200xf32>
    %53 = arith.addf %47, %52 : vector<32x200xf32>
    %c0_44 = arith.constant 0 : index
    %c0_45 = arith.constant 0 : index
    %c11 = arith.constant 11 : index
    %54 = vector.load %arg13[%c0_44, %c0_45, %c11] : memref<4x4x222xbf16, #tpu.memory_space<vmem>>, vector<1x4x200xbf16>
    %55 = vector.shape_cast %54 : vector<1x4x200xbf16> to vector<4x200xbf16>
    %56 = vector.extract_strided_slice %26 {offsets = [4, 0, 0], sizes = [1, 32, 4], strides = [1, 1, 1]} : vector<9x32x4xbf16> to vector<1x32x4xbf16>
    %57 = vector.shape_cast %56 : vector<1x32x4xbf16> to vector<32x4xbf16>
    %cst_46 = arith.constant dense<0.000000e+00> : vector<32x200xf32>
    %58 = tpu.matmul %57, %55, %cst_46 {dimension_numbers = #tpu.dot_dimension_numbers<[1], [0], [0], [1], [0, 0, 1, 1], [], []>} : vector<32x4xbf16>, vector<4x200xbf16>, vector<32x200xf32> -> vector<32x200xf32>
    %59 = arith.addf %53, %58 : vector<32x200xf32>
    %c1_47 = arith.constant 1 : index
    %c0_48 = arith.constant 0 : index
    %c11_49 = arith.constant 11 : index
    %60 = vector.load %arg13[%c1_47, %c0_48, %c11_49] : memref<4x4x222xbf16, #tpu.memory_space<vmem>>, vector<1x4x200xbf16>
    %61 = vector.shape_cast %60 : vector<1x4x200xbf16> to vector<4x200xbf16>
    %62 = vector.extract_strided_slice %26 {offsets = [5, 0, 0], sizes = [1, 32, 4], strides = [1, 1, 1]} : vector<9x32x4xbf16> to vector<1x32x4xbf16>
    %63 = vector.shape_cast %62 : vector<1x32x4xbf16> to vector<32x4xbf16>
    %cst_50 = arith.constant dense<0.000000e+00> : vector<32x200xf32>
    %64 = tpu.matmul %63, %61, %cst_50 {dimension_numbers = #tpu.dot_dimension_numbers<[1], [0], [0], [1], [0, 0, 1, 1], [], []>} : vector<32x4xbf16>, vector<4x200xbf16>, vector<32x200xf32> -> vector<32x200xf32>
    %65 = arith.addf %59, %64 : vector<32x200xf32>
    %c3_51 = arith.constant 3 : index
    %c0_52 = arith.constant 0 : index
    %c10_53 = arith.constant 10 : index
    %66 = vector.load %arg13[%c3_51, %c0_52, %c10_53] : memref<4x4x222xbf16, #tpu.memory_space<vmem>>, vector<1x4x200xbf16>
    %67 = vector.shape_cast %66 : vector<1x4x200xbf16> to vector<4x200xbf16>
    %68 = vector.extract_strided_slice %26 {offsets = [6, 0, 0], sizes = [1, 32, 4], strides = [1, 1, 1]} : vector<9x32x4xbf16> to vector<1x32x4xbf16>
    %69 = vector.shape_cast %68 : vector<1x32x4xbf16> to vector<32x4xbf16>
    %cst_54 = arith.constant dense<0.000000e+00> : vector<32x200xf32>
    %70 = tpu.matmul %69, %67, %cst_54 {dimension_numbers = #tpu.dot_dimension_numbers<[1], [0], [0], [1], [0, 0, 1, 1], [], []>} : vector<32x4xbf16>, vector<4x200xbf16>, vector<32x200xf32> -> vector<32x200xf32>
    %71 = arith.addf %65, %70 : vector<32x200xf32>
    %c2_55 = arith.constant 2 : index
    %c0_56 = arith.constant 0 : index
    %c11_57 = arith.constant 11 : index
    %72 = vector.load %arg13[%c2_55, %c0_56, %c11_57] : memref<4x4x222xbf16, #tpu.memory_space<vmem>>, vector<1x4x200xbf16>
    %73 = vector.shape_cast %72 : vector<1x4x200xbf16> to vector<4x200xbf16>
    %74 = vector.extract_strided_slice %26 {offsets = [7, 0, 0], sizes = [1, 32, 4], strides = [1, 1, 1]} : vector<9x32x4xbf16> to vector<1x32x4xbf16>
    %75 = vector.shape_cast %74 : vector<1x32x4xbf16> to vector<32x4xbf16>
    %cst_58 = arith.constant dense<0.000000e+00> : vector<32x200xf32>
    %76 = tpu.matmul %75, %73, %cst_58 {dimension_numbers = #tpu.dot_dimension_numbers<[1], [0], [0], [1], [0, 0, 1, 1], [], []>} : vector<32x4xbf16>, vector<4x200xbf16>, vector<32x200xf32> -> vector<32x200xf32>
    %77 = arith.addf %71, %76 : vector<32x200xf32>
    %c3_59 = arith.constant 3 : index
    %c0_60 = arith.constant 0 : index
    %c11_61 = arith.constant 11 : index
    %78 = vector.load %arg13[%c3_59, %c0_60, %c11_61] : memref<4x4x222xbf16, #tpu.memory_space<vmem>>, vector<1x4x200xbf16>
    %79 = vector.shape_cast %78 : vector<1x4x200xbf16> to vector<4x200xbf16>
    %80 = vector.extract_strided_slice %26 {offsets = [8, 0, 0], sizes = [1, 32, 4], strides = [1, 1, 1]} : vector<9x32x4xbf16> to vector<1x32x4xbf16>
    %81 = vector.shape_cast %80 : vector<1x32x4xbf16> to vector<32x4xbf16>
    %cst_62 = arith.constant dense<0.000000e+00> : vector<32x200xf32>
    %82 = tpu.matmul %81, %79, %cst_62 {dimension_numbers = #tpu.dot_dimension_numbers<[1], [0], [0], [1], [0, 0, 1, 1], [], []>} : vector<32x4xbf16>, vector<4x200xbf16>, vector<32x200xf32> -> vector<32x200xf32>
    %83 = arith.addf %77, %82 : vector<32x200xf32>
    %84 = vector.broadcast %28 : vector<32x1xf32> to vector<32x200xf32>
    %85 = arith.addf %83, %84 : vector<32x200xf32>
    %c0_63 = arith.constant 0 : index
    %c0_64 = arith.constant 0 : index
    %c0_65 = arith.constant 0 : index
    %c0_66 = arith.constant 0 : index
    %86 = vector.load %arg11[%c0_63, %c0_64, %c0_65, %c0_66] : memref<1x4x32x200xf32, #tpu.memory_space<vmem>>, vector<1x1x32x200xf32>
    %87 = vector.shape_cast %86 : vector<1x1x32x200xf32> to vector<32x200xf32>
    %88 = vector.shape_cast %85 : vector<32x200xf32> to vector<1x1x32x200xf32>
    tpu.vector_store %arg11[%c0_63, %c0_64, %c0_65, %c0_66], %88 {strides = array<i32>} : memref<1x4x32x200xf32, #tpu.memory_space<vmem>>, vector<1x1x32x200xf32>,
    %89 = vector.broadcast %29 : vector<32x1xf32> to vector<32x200xf32>
    %90 = arith.mulf %85, %89 : vector<32x200xf32>
    %91 = vector.broadcast %30 : vector<32x1xf32> to vector<32x200xf32>
    %92 = arith.addf %90, %91 : vector<32x200xf32>
    %cst_67 = arith.constant 0.000000e+00 : f32
    %93 = vector.broadcast %cst_67 : f32 to vector<32x200xf32>
    %94 = arith.cmpf oge, %92, %93 : vector<32x200xf32>
    %cst_68 = arith.constant 0.00999999977 : f32
    %95 = vector.broadcast %cst_68 : f32 to vector<32x200xf32>
    %96 = arith.mulf %95, %92 : vector<32x200xf32>
    %97 = arith.select %94, %92, %96 : vector<32x200xi1>, vector<32x200xf32>
    %98 = vector.broadcast %1 : vector<1x200xf32> to vector<32x200xf32>
    %99 = arith.mulf %97, %98 : vector<32x200xf32>
    %100 = arith.truncf %99 : vector<32x200xf32> to vector<32x200xbf16>
    %c0_69 = arith.constant 0 : index
    %c0_70 = arith.constant 0 : index
    %c128 = arith.constant 128 : index
    %101 = vector.load %arg14[%c0_69, %c0_70, %c128] : memref<4x32x339xbf16, #tpu.memory_space<vmem>>, vector<1x32x200xbf16>
    %102 = vector.shape_cast %101 : vector<1x32x200xbf16> to vector<32x200xbf16>
    %103 = vector.shape_cast %100 : vector<32x200xbf16> to vector<1x32x200xbf16>
    tpu.vector_store %arg14[%c0_69, %c0_70, %c128], %103 {strides = array<i32>} : memref<4x32x339xbf16, #tpu.memory_space<vmem>>, vector<1x32x200xbf16>,
    %c2_71 = arith.constant 2 : index
    %c0_72 = arith.constant 0 : index
    %c1_73 = arith.constant 1 : index
    %104 = vector.load %arg13[%c2_71, %c0_72, %c1_73] : memref<4x4x222xbf16, #tpu.memory_space<vmem>>, vector<1x4x200xbf16>
    %105 = vector.shape_cast %104 : vector<1x4x200xbf16> to vector<4x200xbf16>
    %106 = vector.extract_strided_slice %26 {offsets = [0, 0, 0], sizes = [1, 32, 4], strides = [1, 1, 1]} : vector<9x32x4xbf16> to vector<1x32x4xbf16>
    %107 = vector.shape_cast %106 : vector<1x32x4xbf16> to vector<32x4xbf16>
    %cst_74 = arith.constant dense<0.000000e+00> : vector<32x200xf32>
    %108 = tpu.matmul %107, %105, %cst_74 {dimension_numbers = #tpu.dot_dimension_numbers<[1], [0], [0], [1], [0, 0, 1, 1], [], []>} : vector<32x4xbf16>, vector<4x200xbf16>, vector<32x200xf32> -> vector<32x200xf32>
    %c3_75 = arith.constant 3 : index
    %c0_76 = arith.constant 0 : index
    %c1_77 = arith.constant 1 : index
    %109 = vector.load %arg13[%c3_75, %c0_76, %c1_77] : memref<4x4x222xbf16, #tpu.memory_space<vmem>>, vector<1x4x200xbf16>
    %110 = vector.shape_cast %109 : vector<1x4x200xbf16> to vector<4x200xbf16>
    %111 = vector.extract_strided_slice %26 {offsets = [1, 0, 0], sizes = [1, 32, 4], strides = [1, 1, 1]} : vector<9x32x4xbf16> to vector<1x32x4xbf16>
    %112 = vector.shape_cast %111 : vector<1x32x4xbf16> to vector<32x4xbf16>
    %cst_78 = arith.constant dense<0.000000e+00> : vector<32x200xf32>
    %113 = tpu.matmul %112, %110, %cst_78 {dimension_numbers = #tpu.dot_dimension_numbers<[1], [0], [0], [1], [0, 0, 1, 1], [], []>} : vector<32x4xbf16>, vector<4x200xbf16>, vector<32x200xf32> -> vector<32x200xf32>
    %114 = arith.addf %108, %113 : vector<32x200xf32>
    %c2_79 = arith.constant 2 : index
    %c0_80 = arith.constant 0 : index
    %c2_81 = arith.constant 2 : index
    %115 = vector.load %arg13[%c2_79, %c0_80, %c2_81] : memref<4x4x222xbf16, #tpu.memory_space<vmem>>, vector<1x4x200xbf16>
    %116 = vector.shape_cast %115 : vector<1x4x200xbf16> to vector<4x200xbf16>
    %117 = vector.extract_strided_slice %26 {offsets = [2, 0, 0], sizes = [1, 32, 4], strides = [1, 1, 1]} : vector<9x32x4xbf16> to vector<1x32x4xbf16>
    %118 = vector.shape_cast %117 : vector<1x32x4xbf16> to vector<32x4xbf16>
    %cst_82 = arith.constant dense<0.000000e+00> : vector<32x200xf32>
    %119 = tpu.matmul %118, %116, %cst_82 {dimension_numbers = #tpu.dot_dimension_numbers<[1], [0], [0], [1], [0, 0, 1, 1], [], []>} : vector<32x4xbf16>, vector<4x200xbf16>, vector<32x200xf32> -> vector<32x200xf32>
    %120 = arith.addf %114, %119 : vector<32x200xf32>
    %c0_83 = arith.constant 0 : index
    %c0_84 = arith.constant 0 : index
    %c11_85 = arith.constant 11 : index
    %121 = vector.load %arg13[%c0_83, %c0_84, %c11_85] : memref<4x4x222xbf16, #tpu.memory_space<vmem>>, vector<1x4x200xbf16>
    %122 = vector.shape_cast %121 : vector<1x4x200xbf16> to vector<4x200xbf16>
    %123 = vector.extract_strided_slice %26 {offsets = [3, 0, 0], sizes = [1, 32, 4], strides = [1, 1, 1]} : vector<9x32x4xbf16> to vector<1x32x4xbf16>
    %124 = vector.shape_cast %123 : vector<1x32x4xbf16> to vector<32x4xbf16>
    %cst_86 = arith.constant dense<0.000000e+00> : vector<32x200xf32>
    %125 = tpu.matmul %124, %122, %cst_86 {dimension_numbers = #tpu.dot_dimension_numbers<[1], [0], [0], [1], [0, 0, 1, 1], [], []>} : vector<32x4xbf16>, vector<4x200xbf16>, vector<32x200xf32> -> vector<32x200xf32>
    %126 = arith.addf %120, %125 : vector<32x200xf32>
    %c1_87 = arith.constant 1 : index
    %c0_88 = arith.constant 0 : index
    %c11_89 = arith.constant 11 : index
    %127 = vector.load %arg13[%c1_87, %c0_88, %c11_89] : memref<4x4x222xbf16, #tpu.memory_space<vmem>>, vector<1x4x200xbf16>
    %128 = vector.shape_cast %127 : vector<1x4x200xbf16> to vector<4x200xbf16>
    %129 = vector.extract_strided_slice %26 {offsets = [4, 0, 0], sizes = [1, 32, 4], strides = [1, 1, 1]} : vector<9x32x4xbf16> to vector<1x32x4xbf16>
    %130 = vector.shape_cast %129 : vector<1x32x4xbf16> to vector<32x4xbf16>
    %cst_90 = arith.constant dense<0.000000e+00> : vector<32x200xf32>
    %131 = tpu.matmul %130, %128, %cst_90 {dimension_numbers = #tpu.dot_dimension_numbers<[1], [0], [0], [1], [0, 0, 1, 1], [], []>} : vector<32x4xbf16>, vector<4x200xbf16>, vector<32x200xf32> -> vector<32x200xf32>
    %132 = arith.addf %126, %131 : vector<32x200xf32>
    %c0_91 = arith.constant 0 : index
    %c0_92 = arith.constant 0 : index
    %c12 = arith.constant 12 : index
    %133 = vector.load %arg13[%c0_91, %c0_92, %c12] : memref<4x4x222xbf16, #tpu.memory_space<vmem>>, vector<1x4x200xbf16>
    %134 = vector.shape_cast %133 : vector<1x4x200xbf16> to vector<4x200xbf16>
    %135 = vector.extract_strided_slice %26 {offsets = [5, 0, 0], sizes = [1, 32, 4], strides = [1, 1, 1]} : vector<9x32x4xbf16> to vector<1x32x4xbf16>
    %136 = vector.shape_cast %135 : vector<1x32x4xbf16> to vector<32x4xbf16>
    %cst_93 = arith.constant dense<0.000000e+00> : vector<32x200xf32>
    %137 = tpu.matmul %136, %134, %cst_93 {dimension_numbers = #tpu.dot_dimension_numbers<[1], [0], [0], [1], [0, 0, 1, 1], [], []>} : vector<32x4xbf16>, vector<4x200xbf16>, vector<32x200xf32> -> vector<32x200xf32>
    %138 = arith.addf %132, %137 : vector<32x200xf32>
    %c2_94 = arith.constant 2 : index
    %c0_95 = arith.constant 0 : index
    %c11_96 = arith.constant 11 : index
    %139 = vector.load %arg13[%c2_94, %c0_95, %c11_96] : memref<4x4x222xbf16, #tpu.memory_space<vmem>>, vector<1x4x200xbf16>
    %140 = vector.shape_cast %139 : vector<1x4x200xbf16> to vector<4x200xbf16>
    %141 = vector.extract_strided_slice %26 {offsets = [6, 0, 0], sizes = [1, 32, 4], strides = [1, 1, 1]} : vector<9x32x4xbf16> to vector<1x32x4xbf16>
    %142 = vector.shape_cast %141 : vector<1x32x4xbf16> to vector<32x4xbf16>
    %cst_97 = arith.constant dense<0.000000e+00> : vector<32x200xf32>
    %143 = tpu.matmul %142, %140, %cst_97 {dimension_numbers = #tpu.dot_dimension_numbers<[1], [0], [0], [1], [0, 0, 1, 1], [], []>} : vector<32x4xbf16>, vector<4x200xbf16>, vector<32x200xf32> -> vector<32x200xf32>
    %144 = arith.addf %138, %143 : vector<32x200xf32>
    %c3_98 = arith.constant 3 : index
    %c0_99 = arith.constant 0 : index
    %c11_100 = arith.constant 11 : index
    %145 = vector.load %arg13[%c3_98, %c0_99, %c11_100] : memref<4x4x222xbf16, #tpu.memory_space<vmem>>, vector<1x4x200xbf16>
    %146 = vector.shape_cast %145 : vector<1x4x200xbf16> to vector<4x200xbf16>
    %147 = vector.extract_strided_slice %26 {offsets = [7, 0, 0], sizes = [1, 32, 4], strides = [1, 1, 1]} : vector<9x32x4xbf16> to vector<1x32x4xbf16>
    %148 = vector.shape_cast %147 : vector<1x32x4xbf16> to vector<32x4xbf16>
    %cst_101 = arith.constant dense<0.000000e+00> : vector<32x200xf32>
    %149 = tpu.matmul %148, %146, %cst_101 {dimension_numbers = #tpu.dot_dimension_numbers<[1], [0], [0], [1], [0, 0, 1, 1], [], []>} : vector<32x4xbf16>, vector<4x200xbf16>, vector<32x200xf32> -> vector<32x200xf32>
    %150 = arith.addf %144, %149 : vector<32x200xf32>
    %c2_102 = arith.constant 2 : index
    %c0_103 = arith.constant 0 : index
    %c12_104 = arith.constant 12 : index
    %151 = vector.load %arg13[%c2_102, %c0_103, %c12_104] : memref<4x4x222xbf16, #tpu.memory_space<vmem>>, vector<1x4x200xbf16>
    %152 = vector.shape_cast %151 : vector<1x4x200xbf16> to vector<4x200xbf16>
    %153 = vector.extract_strided_slice %26 {offsets = [8, 0, 0], sizes = [1, 32, 4], strides = [1, 1, 1]} : vector<9x32x4xbf16> to vector<1x32x4xbf16>
    %154 = vector.shape_cast %153 : vector<1x32x4xbf16> to vector<32x4xbf16>
    %cst_105 = arith.constant dense<0.000000e+00> : vector<32x200xf32>
    %155 = tpu.matmul %154, %152, %cst_105 {dimension_numbers = #tpu.dot_dimension_numbers<[1], [0], [0], [1], [0, 0, 1, 1], [], []>} : vector<32x4xbf16>, vector<4x200xbf16>, vector<32x200xf32> -> vector<32x200xf32>
    %156 = arith.addf %150, %155 : vector<32x200xf32>
    %157 = vector.broadcast %28 : vector<32x1xf32> to vector<32x200xf32>
    %158 = arith.addf %156, %157 : vector<32x200xf32>
    %c0_106 = arith.constant 0 : index
    %c1_107 = arith.constant 1 : index
    %c0_108 = arith.constant 0 : index
    %c0_109 = arith.constant 0 : index
    %159 = vector.load %arg11[%c0_106, %c1_107, %c0_108, %c0_109] : memref<1x4x32x200xf32, #tpu.memory_space<vmem>>, vector<1x1x32x200xf32>
    %160 = vector.shape_cast %159 : vector<1x1x32x200xf32> to vector<32x200xf32>
    %161 = vector.shape_cast %158 : vector<32x200xf32> to vector<1x1x32x200xf32>
    tpu.vector_store %arg11[%c0_106, %c1_107, %c0_108, %c0_109], %161 {strides = array<i32>} : memref<1x4x32x200xf32, #tpu.memory_space<vmem>>, vector<1x1x32x200xf32>,
    %162 = vector.broadcast %29 : vector<32x1xf32> to vector<32x200xf32>
    %163 = arith.mulf %158, %162 : vector<32x200xf32>
    %164 = vector.broadcast %30 : vector<32x1xf32> to vector<32x200xf32>
    %165 = arith.addf %163, %164 : vector<32x200xf32>
    %cst_110 = arith.constant 0.000000e+00 : f32
    %166 = vector.broadcast %cst_110 : f32 to vector<32x200xf32>
    %167 = arith.cmpf oge, %165, %166 : vector<32x200xf32>
    %cst_111 = arith.constant 0.00999999977 : f32
    %168 = vector.broadcast %cst_111 : f32 to vector<32x200xf32>
    %169 = arith.mulf %168, %165 : vector<32x200xf32>
    %170 = arith.select %167, %165, %169 : vector<32x200xi1>, vector<32x200xf32>
    %171 = vector.broadcast %1 : vector<1x200xf32> to vector<32x200xf32>
    %172 = arith.mulf %170, %171 : vector<32x200xf32>
    %173 = arith.truncf %172 : vector<32x200xf32> to vector<32x200xbf16>
    %c1_112 = arith.constant 1 : index
    %c0_113 = arith.constant 0 : index
    %c128_114 = arith.constant 128 : index
    %174 = vector.load %arg14[%c1_112, %c0_113, %c128_114] : memref<4x32x339xbf16, #tpu.memory_space<vmem>>, vector<1x32x200xbf16>
    %175 = vector.shape_cast %174 : vector<1x32x200xbf16> to vector<32x200xbf16>
    %176 = vector.shape_cast %173 : vector<32x200xbf16> to vector<1x32x200xbf16>
    tpu.vector_store %arg14[%c1_112, %c0_113, %c128_114], %176 {strides = array<i32>} : memref<4x32x339xbf16, #tpu.memory_space<vmem>>, vector<1x32x200xbf16>,
    %c1_115 = arith.constant 1 : index
    %c0_116 = arith.constant 0 : index
    %c10_117 = arith.constant 10 : index
    %177 = vector.load %arg13[%c1_115, %c0_116, %c10_117] : memref<4x4x222xbf16, #tpu.memory_space<vmem>>, vector<1x4x200xbf16>
    %178 = vector.shape_cast %177 : vector<1x4x200xbf16> to vector<4x200xbf16>
    %179 = vector.extract_strided_slice %26 {offsets = [0, 0, 0], sizes = [1, 32, 4], strides = [1, 1, 1]} : vector<9x32x4xbf16> to vector<1x32x4xbf16>
    %180 = vector.shape_cast %179 : vector<1x32x4xbf16> to vector<32x4xbf16>
    %cst_118 = arith.constant dense<0.000000e+00> : vector<32x200xf32>
    %181 = tpu.matmul %180, %178, %cst_118 {dimension_numbers = #tpu.dot_dimension_numbers<[1], [0], [0], [1], [0, 0, 1, 1], [], []>} : vector<32x4xbf16>, vector<4x200xbf16>, vector<32x200xf32> -> vector<32x200xf32>
    %c0_119 = arith.constant 0 : index
    %c0_120 = arith.constant 0 : index
    %c11_121 = arith.constant 11 : index
    %182 = vector.load %arg13[%c0_119, %c0_120, %c11_121] : memref<4x4x222xbf16, #tpu.memory_space<vmem>>, vector<1x4x200xbf16>
    %183 = vector.shape_cast %182 : vector<1x4x200xbf16> to vector<4x200xbf16>
    %184 = vector.extract_strided_slice %26 {offsets = [1, 0, 0], sizes = [1, 32, 4], strides = [1, 1, 1]} : vector<9x32x4xbf16> to vector<1x32x4xbf16>
    %185 = vector.shape_cast %184 : vector<1x32x4xbf16> to vector<32x4xbf16>
    %cst_122 = arith.constant dense<0.000000e+00> : vector<32x200xf32>
    %186 = tpu.matmul %185, %183, %cst_122 {dimension_numbers = #tpu.dot_dimension_numbers<[1], [0], [0], [1], [0, 0, 1, 1], [], []>} : vector<32x4xbf16>, vector<4x200xbf16>, vector<32x200xf32> -> vector<32x200xf32>
    %187 = arith.addf %181, %186 : vector<32x200xf32>
    %c1_123 = arith.constant 1 : index
    %c0_124 = arith.constant 0 : index
    %c11_125 = arith.constant 11 : index
    %188 = vector.load %arg13[%c1_123, %c0_124, %c11_125] : memref<4x4x222xbf16, #tpu.memory_space<vmem>>, vector<1x4x200xbf16>
    %189 = vector.shape_cast %188 : vector<1x4x200xbf16> to vector<4x200xbf16>
    %190 = vector.extract_strided_slice %26 {offsets = [2, 0, 0], sizes = [1, 32, 4], strides = [1, 1, 1]} : vector<9x32x4xbf16> to vector<1x32x4xbf16>
    %191 = vector.shape_cast %190 : vector<1x32x4xbf16> to vector<32x4xbf16>
    %cst_126 = arith.constant dense<0.000000e+00> : vector<32x200xf32>
    %192 = tpu.matmul %191, %189, %cst_126 {dimension_numbers = #tpu.dot_dimension_numbers<[1], [0], [0], [1], [0, 0, 1, 1], [], []>} : vector<32x4xbf16>, vector<4x200xbf16>, vector<32x200xf32> -> vector<32x200xf32>
    %193 = arith.addf %187, %192 : vector<32x200xf32>
    %c3_127 = arith.constant 3 : index
    %c0_128 = arith.constant 0 : index
    %c10_129 = arith.constant 10 : index
    %194 = vector.load %arg13[%c3_127, %c0_128, %c10_129] : memref<4x4x222xbf16, #tpu.memory_space<vmem>>, vector<1x4x200xbf16>
    %195 = vector.shape_cast %194 : vector<1x4x200xbf16> to vector<4x200xbf16>
    %196 = vector.extract_strided_slice %26 {offsets = [3, 0, 0], sizes = [1, 32, 4], strides = [1, 1, 1]} : vector<9x32x4xbf16> to vector<1x32x4xbf16>
    %197 = vector.shape_cast %196 : vector<1x32x4xbf16> to vector<32x4xbf16>
    %cst_130 = arith.constant dense<0.000000e+00> : vector<32x200xf32>
    %198 = tpu.matmul %197, %195, %cst_130 {dimension_numbers = #tpu.dot_dimension_numbers<[1], [0], [0], [1], [0, 0, 1, 1], [], []>} : vector<32x4xbf16>, vector<4x200xbf16>, vector<32x200xf32> -> vector<32x200xf32>
    %199 = arith.addf %193, %198 : vector<32x200xf32>
    %c2_131 = arith.constant 2 : index
    %c0_132 = arith.constant 0 : index
    %c11_133 = arith.constant 11 : index
    %200 = vector.load %arg13[%c2_131, %c0_132, %c11_133] : memref<4x4x222xbf16, #tpu.memory_space<vmem>>, vector<1x4x200xbf16>
    %201 = vector.shape_cast %200 : vector<1x4x200xbf16> to vector<4x200xbf16>
    %202 = vector.extract_strided_slice %26 {offsets = [4, 0, 0], sizes = [1, 32, 4], strides = [1, 1, 1]} : vector<9x32x4xbf16> to vector<1x32x4xbf16>
    %203 = vector.shape_cast %202 : vector<1x32x4xbf16> to vector<32x4xbf16>
    %cst_134 = arith.constant dense<0.000000e+00> : vector<32x200xf32>
    %204 = tpu.matmul %203, %201, %cst_134 {dimension_numbers = #tpu.dot_dimension_numbers<[1], [0], [0], [1], [0, 0, 1, 1], [], []>} : vector<32x4xbf16>, vector<4x200xbf16>, vector<32x200xf32> -> vector<32x200xf32>
    %205 = arith.addf %199, %204 : vector<32x200xf32>
    %c3_135 = arith.constant 3 : index
    %c0_136 = arith.constant 0 : index
    %c11_137 = arith.constant 11 : index
    %206 = vector.load %arg13[%c3_135, %c0_136, %c11_137] : memref<4x4x222xbf16, #tpu.memory_space<vmem>>, vector<1x4x200xbf16>
    %207 = vector.shape_cast %206 : vector<1x4x200xbf16> to vector<4x200xbf16>
    %208 = vector.extract_strided_slice %26 {offsets = [5, 0, 0], sizes = [1, 32, 4], strides = [1, 1, 1]} : vector<9x32x4xbf16> to vector<1x32x4xbf16>
    %209 = vector.shape_cast %208 : vector<1x32x4xbf16> to vector<32x4xbf16>
    %cst_138 = arith.constant dense<0.000000e+00> : vector<32x200xf32>
    %210 = tpu.matmul %209, %207, %cst_138 {dimension_numbers = #tpu.dot_dimension_numbers<[1], [0], [0], [1], [0, 0, 1, 1], [], []>} : vector<32x4xbf16>, vector<4x200xbf16>, vector<32x200xf32> -> vector<32x200xf32>
    %211 = arith.addf %205, %210 : vector<32x200xf32>
    %c1_139 = arith.constant 1 : index
    %c0_140 = arith.constant 0 : index
    %c20 = arith.constant 20 : index
    %212 = vector.load %arg13[%c1_139, %c0_140, %c20] : memref<4x4x222xbf16, #tpu.memory_space<vmem>>, vector<1x4x200xbf16>
    %213 = vector.shape_cast %212 : vector<1x4x200xbf16> to vector<4x200xbf16>
    %214 = vector.extract_strided_slice %26 {offsets = [6, 0, 0], sizes = [1, 32, 4], strides = [1, 1, 1]} : vector<9x32x4xbf16> to vector<1x32x4xbf16>
    %215 = vector.shape_cast %214 : vector<1x32x4xbf16> to vector<32x4xbf16>
    %cst_141 = arith.constant dense<0.000000e+00> : vector<32x200xf32>
    %216 = tpu.matmul %215, %213, %cst_141 {dimension_numbers = #tpu.dot_dimension_numbers<[1], [0], [0], [1], [0, 0, 1, 1], [], []>} : vector<32x4xbf16>, vector<4x200xbf16>, vector<32x200xf32> -> vector<32x200xf32>
    %217 = arith.addf %211, %216 : vector<32x200xf32>
    %c0_142 = arith.constant 0 : index
    %c0_143 = arith.constant 0 : index
    %c21 = arith.constant 21 : index
    %218 = vector.load %arg13[%c0_142, %c0_143, %c21] : memref<4x4x222xbf16, #tpu.memory_space<vmem>>, vector<1x4x200xbf16>
    %219 = vector.shape_cast %218 : vector<1x4x200xbf16> to vector<4x200xbf16>
    %220 = vector.extract_strided_slice %26 {offsets = [7, 0, 0], sizes = [1, 32, 4], strides = [1, 1, 1]} : vector<9x32x4xbf16> to vector<1x32x4xbf16>
    %221 = vector.shape_cast %220 : vector<1x32x4xbf16> to vector<32x4xbf16>
    %cst_144 = arith.constant dense<0.000000e+00> : vector<32x200xf32>
    %222 = tpu.matmul %221, %219, %cst_144 {dimension_numbers = #tpu.dot_dimension_numbers<[1], [0], [0], [1], [0, 0, 1, 1], [], []>} : vector<32x4xbf16>, vector<4x200xbf16>, vector<32x200xf32> -> vector<32x200xf32>
    %223 = arith.addf %217, %222 : vector<32x200xf32>
    %c1_145 = arith.constant 1 : index
    %c0_146 = arith.constant 0 : index
    %c21_147 = arith.constant 21 : index
    %224 = vector.load %arg13[%c1_145, %c0_146, %c21_147] : memref<4x4x222xbf16, #tpu.memory_space<vmem>>, vector<1x4x200xbf16>
    %225 = vector.shape_cast %224 : vector<1x4x200xbf16> to vector<4x200xbf16>
    %226 = vector.extract_strided_slice %26 {offsets = [8, 0, 0], sizes = [1, 32, 4], strides = [1, 1, 1]} : vector<9x32x4xbf16> to vector<1x32x4xbf16>
    %227 = vector.shape_cast %226 : vector<1x32x4xbf16> to vector<32x4xbf16>
    %cst_148 = arith.constant dense<0.000000e+00> : vector<32x200xf32>
    %228 = tpu.matmul %227, %225, %cst_148 {dimension_numbers = #tpu.dot_dimension_numbers<[1], [0], [0], [1], [0, 0, 1, 1], [], []>} : vector<32x4xbf16>, vector<4x200xbf16>, vector<32x200xf32> -> vector<32x200xf32>
    %229 = arith.addf %223, %228 : vector<32x200xf32>
    %230 = vector.broadcast %28 : vector<32x1xf32> to vector<32x200xf32>
    %231 = arith.addf %229, %230 : vector<32x200xf32>
    %c0_149 = arith.constant 0 : index
    %c2_150 = arith.constant 2 : index
    %c0_151 = arith.constant 0 : index
    %c0_152 = arith.constant 0 : index
    %232 = vector.load %arg11[%c0_149, %c2_150, %c0_151, %c0_152] : memref<1x4x32x200xf32, #tpu.memory_space<vmem>>, vector<1x1x32x200xf32>
    %233 = vector.shape_cast %232 : vector<1x1x32x200xf32> to vector<32x200xf32>
    %234 = vector.shape_cast %231 : vector<32x200xf32> to vector<1x1x32x200xf32>
    tpu.vector_store %arg11[%c0_149, %c2_150, %c0_151, %c0_152], %234 {strides = array<i32>} : memref<1x4x32x200xf32, #tpu.memory_space<vmem>>, vector<1x1x32x200xf32>,
    %235 = vector.broadcast %29 : vector<32x1xf32> to vector<32x200xf32>
    %236 = arith.mulf %231, %235 : vector<32x200xf32>
    %237 = vector.broadcast %30 : vector<32x1xf32> to vector<32x200xf32>
    %238 = arith.addf %236, %237 : vector<32x200xf32>
    %cst_153 = arith.constant 0.000000e+00 : f32
    %239 = vector.broadcast %cst_153 : f32 to vector<32x200xf32>
    %240 = arith.cmpf oge, %238, %239 : vector<32x200xf32>
    %cst_154 = arith.constant 0.00999999977 : f32
    %241 = vector.broadcast %cst_154 : f32 to vector<32x200xf32>
    %242 = arith.mulf %241, %238 : vector<32x200xf32>
    %243 = arith.select %240, %238, %242 : vector<32x200xi1>, vector<32x200xf32>
    %244 = vector.broadcast %1 : vector<1x200xf32> to vector<32x200xf32>
    %245 = arith.mulf %243, %244 : vector<32x200xf32>
    %246 = arith.truncf %245 : vector<32x200xf32> to vector<32x200xbf16>
    %c2_155 = arith.constant 2 : index
    %c0_156 = arith.constant 0 : index
    %c128_157 = arith.constant 128 : index
    %247 = vector.load %arg14[%c2_155, %c0_156, %c128_157] : memref<4x32x339xbf16, #tpu.memory_space<vmem>>, vector<1x32x200xbf16>
    %248 = vector.shape_cast %247 : vector<1x32x200xbf16> to vector<32x200xbf16>
    %249 = vector.shape_cast %246 : vector<32x200xbf16> to vector<1x32x200xbf16>
    tpu.vector_store %arg14[%c2_155, %c0_156, %c128_157], %249 {strides = array<i32>} : memref<4x32x339xbf16, #tpu.memory_space<vmem>>, vector<1x32x200xbf16>,
    %c0_158 = arith.constant 0 : index
    %c0_159 = arith.constant 0 : index
    %c11_160 = arith.constant 11 : index
    %250 = vector.load %arg13[%c0_158, %c0_159, %c11_160] : memref<4x4x222xbf16, #tpu.memory_space<vmem>>, vector<1x4x200xbf16>
    %251 = vector.shape_cast %250 : vector<1x4x200xbf16> to vector<4x200xbf16>
    %252 = vector.extract_strided_slice %26 {offsets = [0, 0, 0], sizes = [1, 32, 4], strides = [1, 1, 1]} : vector<9x32x4xbf16> to vector<1x32x4xbf16>
    %253 = vector.shape_cast %252 : vector<1x32x4xbf16> to vector<32x4xbf16>
    %cst_161 = arith.constant dense<0.000000e+00> : vector<32x200xf32>
    %254 = tpu.matmul %253, %251, %cst_161 {dimension_numbers = #tpu.dot_dimension_numbers<[1], [0], [0], [1], [0, 0, 1, 1], [], []>} : vector<32x4xbf16>, vector<4x200xbf16>, vector<32x200xf32> -> vector<32x200xf32>
    %c1_162 = arith.constant 1 : index
    %c0_163 = arith.constant 0 : index
    %c11_164 = arith.constant 11 : index
    %255 = vector.load %arg13[%c1_162, %c0_163, %c11_164] : memref<4x4x222xbf16, #tpu.memory_space<vmem>>, vector<1x4x200xbf16>
    %256 = vector.shape_cast %255 : vector<1x4x200xbf16> to vector<4x200xbf16>
    %257 = vector.extract_strided_slice %26 {offsets = [1, 0, 0], sizes = [1, 32, 4], strides = [1, 1, 1]} : vector<9x32x4xbf16> to vector<1x32x4xbf16>
    %258 = vector.shape_cast %257 : vector<1x32x4xbf16> to vector<32x4xbf16>
    %cst_165 = arith.constant dense<0.000000e+00> : vector<32x200xf32>
    %259 = tpu.matmul %258, %256, %cst_165 {dimension_numbers = #tpu.dot_dimension_numbers<[1], [0], [0], [1], [0, 0, 1, 1], [], []>} : vector<32x4xbf16>, vector<4x200xbf16>, vector<32x200xf32> -> vector<32x200xf32>
    %260 = arith.addf %254, %259 : vector<32x200xf32>
    %c0_166 = arith.constant 0 : index
    %c0_167 = arith.constant 0 : index
    %c12_168 = arith.constant 12 : index
    %261 = vector.load %arg13[%c0_166, %c0_167, %c12_168] : memref<4x4x222xbf16, #tpu.memory_space<vmem>>, vector<1x4x200xbf16>
    %262 = vector.shape_cast %261 : vector<1x4x200xbf16> to vector<4x200xbf16>
    %263 = vector.extract_strided_slice %26 {offsets = [2, 0, 0], sizes = [1, 32, 4], strides = [1, 1, 1]} : vector<9x32x4xbf16> to vector<1x32x4xbf16>
    %264 = vector.shape_cast %263 : vector<1x32x4xbf16> to vector<32x4xbf16>
    %cst_169 = arith.constant dense<0.000000e+00> : vector<32x200xf32>
    %265 = tpu.matmul %264, %262, %cst_169 {dimension_numbers = #tpu.dot_dimension_numbers<[1], [0], [0], [1], [0, 0, 1, 1], [], []>} : vector<32x4xbf16>, vector<4x200xbf16>, vector<32x200xf32> -> vector<32x200xf32>
    %266 = arith.addf %260, %265 : vector<32x200xf32>
    %c2_170 = arith.constant 2 : index
    %c0_171 = arith.constant 0 : index
    %c11_172 = arith.constant 11 : index
    %267 = vector.load %arg13[%c2_170, %c0_171, %c11_172] : memref<4x4x222xbf16, #tpu.memory_space<vmem>>, vector<1x4x200xbf16>
    %268 = vector.shape_cast %267 : vector<1x4x200xbf16> to vector<4x200xbf16>
    %269 = vector.extract_strided_slice %26 {offsets = [3, 0, 0], sizes = [1, 32, 4], strides = [1, 1, 1]} : vector<9x32x4xbf16> to vector<1x32x4xbf16>
    %270 = vector.shape_cast %269 : vector<1x32x4xbf16> to vector<32x4xbf16>
    %cst_173 = arith.constant dense<0.000000e+00> : vector<32x200xf32>
    %271 = tpu.matmul %270, %268, %cst_173 {dimension_numbers = #tpu.dot_dimension_numbers<[1], [0], [0], [1], [0, 0, 1, 1], [], []>} : vector<32x4xbf16>, vector<4x200xbf16>, vector<32x200xf32> -> vector<32x200xf32>
    %272 = arith.addf %266, %271 : vector<32x200xf32>
    %c3_174 = arith.constant 3 : index
    %c0_175 = arith.constant 0 : index
    %c11_176 = arith.constant 11 : index
    %273 = vector.load %arg13[%c3_174, %c0_175, %c11_176] : memref<4x4x222xbf16, #tpu.memory_space<vmem>>, vector<1x4x200xbf16>
    %274 = vector.shape_cast %273 : vector<1x4x200xbf16> to vector<4x200xbf16>
    %275 = vector.extract_strided_slice %26 {offsets = [4, 0, 0], sizes = [1, 32, 4], strides = [1, 1, 1]} : vector<9x32x4xbf16> to vector<1x32x4xbf16>
    %276 = vector.shape_cast %275 : vector<1x32x4xbf16> to vector<32x4xbf16>
    %cst_177 = arith.constant dense<0.000000e+00> : vector<32x200xf32>
    %277 = tpu.matmul %276, %274, %cst_177 {dimension_numbers = #tpu.dot_dimension_numbers<[1], [0], [0], [1], [0, 0, 1, 1], [], []>} : vector<32x4xbf16>, vector<4x200xbf16>, vector<32x200xf32> -> vector<32x200xf32>
    %278 = arith.addf %272, %277 : vector<32x200xf32>
    %c2_178 = arith.constant 2 : index
    %c0_179 = arith.constant 0 : index
    %c12_180 = arith.constant 12 : index
    %279 = vector.load %arg13[%c2_178, %c0_179, %c12_180] : memref<4x4x222xbf16, #tpu.memory_space<vmem>>, vector<1x4x200xbf16>
    %280 = vector.shape_cast %279 : vector<1x4x200xbf16> to vector<4x200xbf16>
    %281 = vector.extract_strided_slice %26 {offsets = [5, 0, 0], sizes = [1, 32, 4], strides = [1, 1, 1]} : vector<9x32x4xbf16> to vector<1x32x4xbf16>
    %282 = vector.shape_cast %281 : vector<1x32x4xbf16> to vector<32x4xbf16>
    %cst_181 = arith.constant dense<0.000000e+00> : vector<32x200xf32>
    %283 = tpu.matmul %282, %280, %cst_181 {dimension_numbers = #tpu.dot_dimension_numbers<[1], [0], [0], [1], [0, 0, 1, 1], [], []>} : vector<32x4xbf16>, vector<4x200xbf16>, vector<32x200xf32> -> vector<32x200xf32>
    %284 = arith.addf %278, %283 : vector<32x200xf32>
    %c0_182 = arith.constant 0 : index
    %c0_183 = arith.constant 0 : index
    %c21_184 = arith.constant 21 : index
    %285 = vector.load %arg13[%c0_182, %c0_183, %c21_184] : memref<4x4x222xbf16, #tpu.memory_space<vmem>>, vector<1x4x200xbf16>
    %286 = vector.shape_cast %285 : vector<1x4x200xbf16> to vector<4x200xbf16>
    %287 = vector.extract_strided_slice %26 {offsets = [6, 0, 0], sizes = [1, 32, 4], strides = [1, 1, 1]} : vector<9x32x4xbf16> to vector<1x32x4xbf16>
    %288 = vector.shape_cast %287 : vector<1x32x4xbf16> to vector<32x4xbf16>
    %cst_185 = arith.constant dense<0.000000e+00> : vector<32x200xf32>
    %289 = tpu.matmul %288, %286, %cst_185 {dimension_numbers = #tpu.dot_dimension_numbers<[1], [0], [0], [1], [0, 0, 1, 1], [], []>} : vector<32x4xbf16>, vector<4x200xbf16>, vector<32x200xf32> -> vector<32x200xf32>
    %290 = arith.addf %284, %289 : vector<32x200xf32>
    %c1_186 = arith.constant 1 : index
    %c0_187 = arith.constant 0 : index
    %c21_188 = arith.constant 21 : index
    %291 = vector.load %arg13[%c1_186, %c0_187, %c21_188] : memref<4x4x222xbf16, #tpu.memory_space<vmem>>, vector<1x4x200xbf16>
    %292 = vector.shape_cast %291 : vector<1x4x200xbf16> to vector<4x200xbf16>
    %293 = vector.extract_strided_slice %26 {offsets = [7, 0, 0], sizes = [1, 32, 4], strides = [1, 1, 1]} : vector<9x32x4xbf16> to vector<1x32x4xbf16>
    %294 = vector.shape_cast %293 : vector<1x32x4xbf16> to vector<32x4xbf16>
    %cst_189 = arith.constant dense<0.000000e+00> : vector<32x200xf32>
    %295 = tpu.matmul %294, %292, %cst_189 {dimension_numbers = #tpu.dot_dimension_numbers<[1], [0], [0], [1], [0, 0, 1, 1], [], []>} : vector<32x4xbf16>, vector<4x200xbf16>, vector<32x200xf32> -> vector<32x200xf32>
    %296 = arith.addf %290, %295 : vector<32x200xf32>
    %c0_190 = arith.constant 0 : index
    %c0_191 = arith.constant 0 : index
    %c22 = arith.constant 22 : index
    %297 = vector.load %arg13[%c0_190, %c0_191, %c22] : memref<4x4x222xbf16, #tpu.memory_space<vmem>>, vector<1x4x200xbf16>
    %298 = vector.shape_cast %297 : vector<1x4x200xbf16> to vector<4x200xbf16>
    %299 = vector.extract_strided_slice %26 {offsets = [8, 0, 0], sizes = [1, 32, 4], strides = [1, 1, 1]} : vector<9x32x4xbf16> to vector<1x32x4xbf16>
    %300 = vector.shape_cast %299 : vector<1x32x4xbf16> to vector<32x4xbf16>
    %cst_192 = arith.constant dense<0.000000e+00> : vector<32x200xf32>
    %301 = tpu.matmul %300, %298, %cst_192 {dimension_numbers = #tpu.dot_dimension_numbers<[1], [0], [0], [1], [0, 0, 1, 1], [], []>} : vector<32x4xbf16>, vector<4x200xbf16>, vector<32x200xf32> -> vector<32x200xf32>
    %302 = arith.addf %296, %301 : vector<32x200xf32>
    %303 = vector.broadcast %28 : vector<32x1xf32> to vector<32x200xf32>
    %304 = arith.addf %302, %303 : vector<32x200xf32>
    %c0_193 = arith.constant 0 : index
    %c3_194 = arith.constant 3 : index
    %c0_195 = arith.constant 0 : index
    %c0_196 = arith.constant 0 : index
    %305 = vector.load %arg11[%c0_193, %c3_194, %c0_195, %c0_196] : memref<1x4x32x200xf32, #tpu.memory_space<vmem>>, vector<1x1x32x200xf32>
    %306 = vector.shape_cast %305 : vector<1x1x32x200xf32> to vector<32x200xf32>
    %307 = vector.shape_cast %304 : vector<32x200xf32> to vector<1x1x32x200xf32>
    tpu.vector_store %arg11[%c0_193, %c3_194, %c0_195, %c0_196], %307 {strides = array<i32>} : memref<1x4x32x200xf32, #tpu.memory_space<vmem>>, vector<1x1x32x200xf32>,
    %308 = vector.broadcast %29 : vector<32x1xf32> to vector<32x200xf32>
    %309 = arith.mulf %304, %308 : vector<32x200xf32>
    %310 = vector.broadcast %30 : vector<32x1xf32> to vector<32x200xf32>
    %311 = arith.addf %309, %310 : vector<32x200xf32>
    %cst_197 = arith.constant 0.000000e+00 : f32
    %312 = vector.broadcast %cst_197 : f32 to vector<32x200xf32>
    %313 = arith.cmpf oge, %311, %312 : vector<32x200xf32>
    %cst_198 = arith.constant 0.00999999977 : f32
    %314 = vector.broadcast %cst_198 : f32 to vector<32x200xf32>
    %315 = arith.mulf %314, %311 : vector<32x200xf32>
    %316 = arith.select %313, %311, %315 : vector<32x200xi1>, vector<32x200xf32>
    %317 = vector.broadcast %1 : vector<1x200xf32> to vector<32x200xf32>
    %318 = arith.mulf %316, %317 : vector<32x200xf32>
    %319 = arith.truncf %318 : vector<32x200xf32> to vector<32x200xbf16>
    %c3_199 = arith.constant 3 : index
    %c0_200 = arith.constant 0 : index
    %c128_201 = arith.constant 128 : index
    %320 = vector.load %arg14[%c3_199, %c0_200, %c128_201] : memref<4x32x339xbf16, #tpu.memory_space<vmem>>, vector<1x32x200xbf16>
    %321 = vector.shape_cast %320 : vector<1x32x200xbf16> to vector<32x200xbf16>
    %322 = vector.shape_cast %319 : vector<32x200xbf16> to vector<1x32x200xbf16>
    tpu.vector_store %arg14[%c3_199, %c0_200, %c128_201], %322 {strides = array<i32>} : memref<4x32x339xbf16, #tpu.memory_space<vmem>>, vector<1x32x200xbf16>,
    %c3_202 = arith.constant 3 : index
    %c0_203 = arith.constant 0 : index
    %c117 = arith.constant 117 : index
    %323 = vector.load %arg14[%c3_202, %c0_203, %c117] : memref<4x32x339xbf16, #tpu.memory_space<vmem>>, vector<1x32x200xbf16>
    %324 = vector.shape_cast %323 : vector<1x32x200xbf16> to vector<32x200xbf16>
    %325 = vector.extract_strided_slice %27 {offsets = [0, 0, 0], sizes = [1, 8, 32], strides = [1, 1, 1]} : vector<16x8x32xbf16> to vector<1x8x32xbf16>
    %326 = vector.shape_cast %325 : vector<1x8x32xbf16> to vector<8x32xbf16>
    %cst_204 = arith.constant dense<0.000000e+00> : vector<8x200xf32>
    %327 = tpu.matmul %326, %324, %cst_204 {dimension_numbers = #tpu.dot_dimension_numbers<[1], [0], [0], [1], [0, 0, 1, 1], [], []>} : vector<8x32xbf16>, vector<32x200xbf16>, vector<8x200xf32> -> vector<8x200xf32>
    %c2_205 = arith.constant 2 : index
    %c0_206 = arith.constant 0 : index
    %c118 = arith.constant 118 : index
    %328 = vector.load %arg14[%c2_205, %c0_206, %c118] : memref<4x32x339xbf16, #tpu.memory_space<vmem>>, vector<1x32x200xbf16>
    %329 = vector.shape_cast %328 : vector<1x32x200xbf16> to vector<32x200xbf16>
    %330 = vector.extract_strided_slice %27 {offsets = [1, 0, 0], sizes = [1, 8, 32], strides = [1, 1, 1]} : vector<16x8x32xbf16> to vector<1x8x32xbf16>
    %331 = vector.shape_cast %330 : vector<1x8x32xbf16> to vector<8x32xbf16>
    %cst_207 = arith.constant dense<0.000000e+00> : vector<8x200xf32>
    %332 = tpu.matmul %331, %329, %cst_207 {dimension_numbers = #tpu.dot_dimension_numbers<[1], [0], [0], [1], [0, 0, 1, 1], [], []>} : vector<8x32xbf16>, vector<32x200xbf16>, vector<8x200xf32> -> vector<8x200xf32>
    %333 = arith.addf %327, %332 : vector<8x200xf32>
    %c3_208 = arith.constant 3 : index
    %c0_209 = arith.constant 0 : index
    %c118_210 = arith.constant 118 : index
    %334 = vector.load %arg14[%c3_208, %c0_209, %c118_210] : memref<4x32x339xbf16, #tpu.memory_space<vmem>>, vector<1x32x200xbf16>
    %335 = vector.shape_cast %334 : vector<1x32x200xbf16> to vector<32x200xbf16>
    %336 = vector.extract_strided_slice %27 {offsets = [2, 0, 0], sizes = [1, 8, 32], strides = [1, 1, 1]} : vector<16x8x32xbf16> to vector<1x8x32xbf16>
    %337 = vector.shape_cast %336 : vector<1x8x32xbf16> to vector<8x32xbf16>
    %cst_211 = arith.constant dense<0.000000e+00> : vector<8x200xf32>
    %338 = tpu.matmul %337, %335, %cst_211 {dimension_numbers = #tpu.dot_dimension_numbers<[1], [0], [0], [1], [0, 0, 1, 1], [], []>} : vector<8x32xbf16>, vector<32x200xbf16>, vector<8x200xf32> -> vector<8x200xf32>
    %339 = arith.addf %333, %338 : vector<8x200xf32>
    %c2_212 = arith.constant 2 : index
    %c0_213 = arith.constant 0 : index
    %c119 = arith.constant 119 : index
    %340 = vector.load %arg14[%c2_212, %c0_213, %c119] : memref<4x32x339xbf16, #tpu.memory_space<vmem>>, vector<1x32x200xbf16>
    %341 = vector.shape_cast %340 : vector<1x32x200xbf16> to vector<32x200xbf16>
    %342 = vector.extract_strided_slice %27 {offsets = [3, 0, 0], sizes = [1, 8, 32], strides = [1, 1, 1]} : vector<16x8x32xbf16> to vector<1x8x32xbf16>
    %343 = vector.shape_cast %342 : vector<1x8x32xbf16> to vector<8x32xbf16>
    %cst_214 = arith.constant dense<0.000000e+00> : vector<8x200xf32>
    %344 = tpu.matmul %343, %341, %cst_214 {dimension_numbers = #tpu.dot_dimension_numbers<[1], [0], [0], [1], [0, 0, 1, 1], [], []>} : vector<8x32xbf16>, vector<32x200xbf16>, vector<8x200xf32> -> vector<8x200xf32>
    %345 = arith.addf %339, %344 : vector<8x200xf32>
    %c1_215 = arith.constant 1 : index
    %c0_216 = arith.constant 0 : index
    %c127 = arith.constant 127 : index
    %346 = vector.load %arg14[%c1_215, %c0_216, %c127] : memref<4x32x339xbf16, #tpu.memory_space<vmem>>, vector<1x32x200xbf16>
    %347 = vector.shape_cast %346 : vector<1x32x200xbf16> to vector<32x200xbf16>
    %348 = vector.extract_strided_slice %27 {offsets = [4, 0, 0], sizes = [1, 8, 32], strides = [1, 1, 1]} : vector<16x8x32xbf16> to vector<1x8x32xbf16>
    %349 = vector.shape_cast %348 : vector<1x8x32xbf16> to vector<8x32xbf16>
    %cst_217 = arith.constant dense<0.000000e+00> : vector<8x200xf32>
    %350 = tpu.matmul %349, %347, %cst_217 {dimension_numbers = #tpu.dot_dimension_numbers<[1], [0], [0], [1], [0, 0, 1, 1], [], []>} : vector<8x32xbf16>, vector<32x200xbf16>, vector<8x200xf32> -> vector<8x200xf32>
    %351 = arith.addf %345, %350 : vector<8x200xf32>
    %c0_218 = arith.constant 0 : index
    %c0_219 = arith.constant 0 : index
    %c128_220 = arith.constant 128 : index
    %352 = vector.load %arg14[%c0_218, %c0_219, %c128_220] : memref<4x32x339xbf16, #tpu.memory_space<vmem>>, vector<1x32x200xbf16>
    %353 = vector.shape_cast %352 : vector<1x32x200xbf16> to vector<32x200xbf16>
    %354 = vector.extract_strided_slice %27 {offsets = [5, 0, 0], sizes = [1, 8, 32], strides = [1, 1, 1]} : vector<16x8x32xbf16> to vector<1x8x32xbf16>
    %355 = vector.shape_cast %354 : vector<1x8x32xbf16> to vector<8x32xbf16>
    %cst_221 = arith.constant dense<0.000000e+00> : vector<8x200xf32>
    %356 = tpu.matmul %355, %353, %cst_221 {dimension_numbers = #tpu.dot_dimension_numbers<[1], [0], [0], [1], [0, 0, 1, 1], [], []>} : vector<8x32xbf16>, vector<32x200xbf16>, vector<8x200xf32> -> vector<8x200xf32>
    %357 = arith.addf %351, %356 : vector<8x200xf32>
    %c1_222 = arith.constant 1 : index
    %c0_223 = arith.constant 0 : index
    %c128_224 = arith.constant 128 : index
    %358 = vector.load %arg14[%c1_222, %c0_223, %c128_224] : memref<4x32x339xbf16, #tpu.memory_space<vmem>>, vector<1x32x200xbf16>
    %359 = vector.shape_cast %358 : vector<1x32x200xbf16> to vector<32x200xbf16>
    %360 = vector.extract_strided_slice %27 {offsets = [6, 0, 0], sizes = [1, 8, 32], strides = [1, 1, 1]} : vector<16x8x32xbf16> to vector<1x8x32xbf16>
    %361 = vector.shape_cast %360 : vector<1x8x32xbf16> to vector<8x32xbf16>
    %cst_225 = arith.constant dense<0.000000e+00> : vector<8x200xf32>
    %362 = tpu.matmul %361, %359, %cst_225 {dimension_numbers = #tpu.dot_dimension_numbers<[1], [0], [0], [1], [0, 0, 1, 1], [], []>} : vector<8x32xbf16>, vector<32x200xbf16>, vector<8x200xf32> -> vector<8x200xf32>
    %363 = arith.addf %357, %362 : vector<8x200xf32>
    %c0_226 = arith.constant 0 : index
    %c0_227 = arith.constant 0 : index
    %c129 = arith.constant 129 : index
    %364 = vector.load %arg14[%c0_226, %c0_227, %c129] : memref<4x32x339xbf16, #tpu.memory_space<vmem>>, vector<1x32x200xbf16>
    %365 = vector.shape_cast %364 : vector<1x32x200xbf16> to vector<32x200xbf16>
    %366 = vector.extract_strided_slice %27 {offsets = [7, 0, 0], sizes = [1, 8, 32], strides = [1, 1, 1]} : vector<16x8x32xbf16> to vector<1x8x32xbf16>
    %367 = vector.shape_cast %366 : vector<1x8x32xbf16> to vector<8x32xbf16>
    %cst_228 = arith.constant dense<0.000000e+00> : vector<8x200xf32>
    %368 = tpu.matmul %367, %365, %cst_228 {dimension_numbers = #tpu.dot_dimension_numbers<[1], [0], [0], [1], [0, 0, 1, 1], [], []>} : vector<8x32xbf16>, vector<32x200xbf16>, vector<8x200xf32> -> vector<8x200xf32>
    %369 = arith.addf %363, %368 : vector<8x200xf32>
    %c3_229 = arith.constant 3 : index
    %c0_230 = arith.constant 0 : index
    %c127_231 = arith.constant 127 : index
    %370 = vector.load %arg14[%c3_229, %c0_230, %c127_231] : memref<4x32x339xbf16, #tpu.memory_space<vmem>>, vector<1x32x200xbf16>
    %371 = vector.shape_cast %370 : vector<1x32x200xbf16> to vector<32x200xbf16>
    %372 = vector.extract_strided_slice %27 {offsets = [8, 0, 0], sizes = [1, 8, 32], strides = [1, 1, 1]} : vector<16x8x32xbf16> to vector<1x8x32xbf16>
    %373 = vector.shape_cast %372 : vector<1x8x32xbf16> to vector<8x32xbf16>
    %cst_232 = arith.constant dense<0.000000e+00> : vector<8x200xf32>
    %374 = tpu.matmul %373, %371, %cst_232 {dimension_numbers = #tpu.dot_dimension_numbers<[1], [0], [0], [1], [0, 0, 1, 1], [], []>} : vector<8x32xbf16>, vector<32x200xbf16>, vector<8x200xf32> -> vector<8x200xf32>
    %375 = arith.addf %369, %374 : vector<8x200xf32>
    %c2_233 = arith.constant 2 : index
    %c0_234 = arith.constant 0 : index
    %c128_235 = arith.constant 128 : index
    %376 = vector.load %arg14[%c2_233, %c0_234, %c128_235] : memref<4x32x339xbf16, #tpu.memory_space<vmem>>, vector<1x32x200xbf16>
    %377 = vector.shape_cast %376 : vector<1x32x200xbf16> to vector<32x200xbf16>
    %378 = vector.extract_strided_slice %27 {offsets = [9, 0, 0], sizes = [1, 8, 32], strides = [1, 1, 1]} : vector<16x8x32xbf16> to vector<1x8x32xbf16>
    %379 = vector.shape_cast %378 : vector<1x8x32xbf16> to vector<8x32xbf16>
    %cst_236 = arith.constant dense<0.000000e+00> : vector<8x200xf32>
    %380 = tpu.matmul %379, %377, %cst_236 {dimension_numbers = #tpu.dot_dimension_numbers<[1], [0], [0], [1], [0, 0, 1, 1], [], []>} : vector<8x32xbf16>, vector<32x200xbf16>, vector<8x200xf32> -> vector<8x200xf32>
    %381 = arith.addf %375, %380 : vector<8x200xf32>
    %c3_237 = arith.constant 3 : index
    %c0_238 = arith.constant 0 : index
    %c128_239 = arith.constant 128 : index
    %382 = vector.load %arg14[%c3_237, %c0_238, %c128_239] : memref<4x32x339xbf16, #tpu.memory_space<vmem>>, vector<1x32x200xbf16>
    %383 = vector.shape_cast %382 : vector<1x32x200xbf16> to vector<32x200xbf16>
    %384 = vector.extract_strided_slice %27 {offsets = [10, 0, 0], sizes = [1, 8, 32], strides = [1, 1, 1]} : vector<16x8x32xbf16> to vector<1x8x32xbf16>
    %385 = vector.shape_cast %384 : vector<1x8x32xbf16> to vector<8x32xbf16>
    %cst_240 = arith.constant dense<0.000000e+00> : vector<8x200xf32>
    %386 = tpu.matmul %385, %383, %cst_240 {dimension_numbers = #tpu.dot_dimension_numbers<[1], [0], [0], [1], [0, 0, 1, 1], [], []>} : vector<8x32xbf16>, vector<32x200xbf16>, vector<8x200xf32> -> vector<8x200xf32>
    %387 = arith.addf %381, %386 : vector<8x200xf32>
    %c2_241 = arith.constant 2 : index
    %c0_242 = arith.constant 0 : index
    %c129_243 = arith.constant 129 : index
    %388 = vector.load %arg14[%c2_241, %c0_242, %c129_243] : memref<4x32x339xbf16, #tpu.memory_space<vmem>>, vector<1x32x200xbf16>
    %389 = vector.shape_cast %388 : vector<1x32x200xbf16> to vector<32x200xbf16>
    %390 = vector.extract_strided_slice %27 {offsets = [11, 0, 0], sizes = [1, 8, 32], strides = [1, 1, 1]} : vector<16x8x32xbf16> to vector<1x8x32xbf16>
    %391 = vector.shape_cast %390 : vector<1x8x32xbf16> to vector<8x32xbf16>
    %cst_244 = arith.constant dense<0.000000e+00> : vector<8x200xf32>
    %392 = tpu.matmul %391, %389, %cst_244 {dimension_numbers = #tpu.dot_dimension_numbers<[1], [0], [0], [1], [0, 0, 1, 1], [], []>} : vector<8x32xbf16>, vector<32x200xbf16>, vector<8x200xf32> -> vector<8x200xf32>
    %393 = arith.addf %387, %392 : vector<8x200xf32>
    %c1_245 = arith.constant 1 : index
    %c0_246 = arith.constant 0 : index
    %c137 = arith.constant 137 : index
    %394 = vector.load %arg14[%c1_245, %c0_246, %c137] : memref<4x32x339xbf16, #tpu.memory_space<vmem>>, vector<1x32x200xbf16>
    %395 = vector.shape_cast %394 : vector<1x32x200xbf16> to vector<32x200xbf16>
    %396 = vector.extract_strided_slice %27 {offsets = [12, 0, 0], sizes = [1, 8, 32], strides = [1, 1, 1]} : vector<16x8x32xbf16> to vector<1x8x32xbf16>
    %397 = vector.shape_cast %396 : vector<1x8x32xbf16> to vector<8x32xbf16>
    %cst_247 = arith.constant dense<0.000000e+00> : vector<8x200xf32>
    %398 = tpu.matmul %397, %395, %cst_247 {dimension_numbers = #tpu.dot_dimension_numbers<[1], [0], [0], [1], [0, 0, 1, 1], [], []>} : vector<8x32xbf16>, vector<32x200xbf16>, vector<8x200xf32> -> vector<8x200xf32>
    %399 = arith.addf %393, %398 : vector<8x200xf32>
    %c0_248 = arith.constant 0 : index
    %c0_249 = arith.constant 0 : index
    %c138 = arith.constant 138 : index
    %400 = vector.load %arg14[%c0_248, %c0_249, %c138] : memref<4x32x339xbf16, #tpu.memory_space<vmem>>, vector<1x32x200xbf16>
    %401 = vector.shape_cast %400 : vector<1x32x200xbf16> to vector<32x200xbf16>
    %402 = vector.extract_strided_slice %27 {offsets = [13, 0, 0], sizes = [1, 8, 32], strides = [1, 1, 1]} : vector<16x8x32xbf16> to vector<1x8x32xbf16>
    %403 = vector.shape_cast %402 : vector<1x8x32xbf16> to vector<8x32xbf16>
    %cst_250 = arith.constant dense<0.000000e+00> : vector<8x200xf32>
    %404 = tpu.matmul %403, %401, %cst_250 {dimension_numbers = #tpu.dot_dimension_numbers<[1], [0], [0], [1], [0, 0, 1, 1], [], []>} : vector<8x32xbf16>, vector<32x200xbf16>, vector<8x200xf32> -> vector<8x200xf32>
    %405 = arith.addf %399, %404 : vector<8x200xf32>
    %c1_251 = arith.constant 1 : index
    %c0_252 = arith.constant 0 : index
    %c138_253 = arith.constant 138 : index
    %406 = vector.load %arg14[%c1_251, %c0_252, %c138_253] : memref<4x32x339xbf16, #tpu.memory_space<vmem>>, vector<1x32x200xbf16>
    %407 = vector.shape_cast %406 : vector<1x32x200xbf16> to vector<32x200xbf16>
    %408 = vector.extract_strided_slice %27 {offsets = [14, 0, 0], sizes = [1, 8, 32], strides = [1, 1, 1]} : vector<16x8x32xbf16> to vector<1x8x32xbf16>
    %409 = vector.shape_cast %408 : vector<1x8x32xbf16> to vector<8x32xbf16>
    %cst_254 = arith.constant dense<0.000000e+00> : vector<8x200xf32>
    %410 = tpu.matmul %409, %407, %cst_254 {dimension_numbers = #tpu.dot_dimension_numbers<[1], [0], [0], [1], [0, 0, 1, 1], [], []>} : vector<8x32xbf16>, vector<32x200xbf16>, vector<8x200xf32> -> vector<8x200xf32>
    %411 = arith.addf %405, %410 : vector<8x200xf32>
    %c0_255 = arith.constant 0 : index
    %c0_256 = arith.constant 0 : index
    %c139 = arith.constant 139 : index
    %412 = vector.load %arg14[%c0_255, %c0_256, %c139] : memref<4x32x339xbf16, #tpu.memory_space<vmem>>, vector<1x32x200xbf16>
    %413 = vector.shape_cast %412 : vector<1x32x200xbf16> to vector<32x200xbf16>
    %414 = vector.extract_strided_slice %27 {offsets = [15, 0, 0], sizes = [1, 8, 32], strides = [1, 1, 1]} : vector<16x8x32xbf16> to vector<1x8x32xbf16>
    %415 = vector.shape_cast %414 : vector<1x8x32xbf16> to vector<8x32xbf16>
    %cst_257 = arith.constant dense<0.000000e+00> : vector<8x200xf32>
    %416 = tpu.matmul %415, %413, %cst_257 {dimension_numbers = #tpu.dot_dimension_numbers<[1], [0], [0], [1], [0, 0, 1, 1], [], []>} : vector<8x32xbf16>, vector<32x200xbf16>, vector<8x200xf32> -> vector<8x200xf32>
    %417 = arith.addf %411, %416 : vector<8x200xf32>
    %c0_258 = arith.constant 0 : index
    %c0_259 = arith.constant 0 : index
    %418 = vector.load %arg10[%c0_258, %c0_259] : memref<8x1xf32, #tpu.memory_space<vmem>>, vector<8x1xf32>
    %419 = vector.broadcast %418 : vector<8x1xf32> to vector<8x200xf32>
    %420 = arith.addf %417, %419 : vector<8x200xf32>
    %c0_260 = arith.constant 0 : index
    %c0_261 = arith.constant 0 : index
    %c0_262 = arith.constant 0 : index
    %421 = vector.load %arg12[%c0_260, %c0_261, %c0_262] : memref<1x8x200xf32, #tpu.memory_space<vmem>>, vector<1x8x200xf32>
    %422 = vector.shape_cast %421 : vector<1x8x200xf32> to vector<8x200xf32>
    %423 = vector.shape_cast %420 : vector<8x200xf32> to vector<1x8x200xf32>
    tpu.vector_store %arg12[%c0_260, %c0_261, %c0_262], %423 {strides = array<i32>} : memref<1x8x200xf32, #tpu.memory_space<vmem>>, vector<1x8x200xf32>,
    return
  }
  func.func @transform_0(%arg0: i32) -> (i32, i32, i32, i32) {
    %c0_i32 = arith.constant 0 : i32
    %c0_i32_0 = arith.constant 0 : i32
    %c0_i32_1 = arith.constant 0 : i32
    %c0_i32_2 = arith.constant 0 : i32
    return %arg0, %c0_i32, %c0_i32_0, %c0_i32_1 : i32, i32, i32, i32
  }
  func.func @transform_1(%arg0: i32) -> (i32, i32) {
    %c0_i32 = arith.constant 0 : i32
    %c0_i32_0 = arith.constant 0 : i32
    %c0_i32_1 = arith.constant 0 : i32
    return %c0_i32, %c0_i32_0 : i32, i32
  }
  func.func @transform_2(%arg0: i32) -> (i32, i32) {
    %c0_i32 = arith.constant 0 : i32
    %c0_i32_0 = arith.constant 0 : i32
    %c0_i32_1 = arith.constant 0 : i32
    return %c0_i32, %c0_i32_0 : i32, i32
  }
  func.func @transform_3(%arg0: i32) -> (i32, i32) {
    %c0_i32 = arith.constant 0 : i32
    %c0_i32_0 = arith.constant 0 : i32
    %c0_i32_1 = arith.constant 0 : i32
    return %c0_i32, %c0_i32_0 : i32, i32
  }
  func.func @transform_4(%arg0: i32) -> (i32, i32, i32) {
    %c0_i32 = arith.constant 0 : i32
    %c0_i32_0 = arith.constant 0 : i32
    %c0_i32_1 = arith.constant 0 : i32
    %c0_i32_2 = arith.constant 0 : i32
    return %c0_i32, %c0_i32_0, %c0_i32_1 : i32, i32, i32
  }
  func.func @transform_5(%arg0: i32) -> (i32, i32) {
    %c0_i32 = arith.constant 0 : i32
    %c0_i32_0 = arith.constant 0 : i32
    %c0_i32_1 = arith.constant 0 : i32
    return %c0_i32, %c0_i32_0 : i32, i32
  }
  func.func @transform_6(%arg0: i32) -> (i32, i32) {
    %c0_i32 = arith.constant 0 : i32
    %c0_i32_0 = arith.constant 0 : i32
    %c0_i32_1 = arith.constant 0 : i32
    return %c0_i32, %c0_i32_0 : i32, i32
  }
  func.func @transform_7(%arg0: i32) -> (i32, i32) {
    %c0_i32 = arith.constant 0 : i32
    %c0_i32_0 = arith.constant 0 : i32
    %c0_i32_1 = arith.constant 0 : i32
    return %c0_i32, %c0_i32_0 : i32, i32
  }
  func.func @transform_8(%arg0: i32) -> (i32, i32, i32) {
    %c0_i32 = arith.constant 0 : i32
    %c0_i32_0 = arith.constant 0 : i32
    %c0_i32_1 = arith.constant 0 : i32
    %c0_i32_2 = arith.constant 0 : i32
    return %c0_i32, %c0_i32_0, %c0_i32_1 : i32, i32, i32
  }
  func.func @transform_9(%arg0: i32) -> (i32, i32) {
    %c0_i32 = arith.constant 0 : i32
    %c0_i32_0 = arith.constant 0 : i32
    %c0_i32_1 = arith.constant 0 : i32
    return %c0_i32, %c0_i32_0 : i32, i32
  }
  func.func @transform_10(%arg0: i32) -> (i32, i32, i32, i32) {
    %c0_i32 = arith.constant 0 : i32
    %c0_i32_0 = arith.constant 0 : i32
    %c0_i32_1 = arith.constant 0 : i32
    %c0_i32_2 = arith.constant 0 : i32
    return %arg0, %c0_i32, %c0_i32_0, %c0_i32_1 : i32, i32, i32, i32
  }
  func.func @transform_11(%arg0: i32) -> (i32, i32, i32) {
    %c0_i32 = arith.constant 0 : i32
    %c0_i32_0 = arith.constant 0 : i32
    %c0_i32_1 = arith.constant 0 : i32
    return %arg0, %c0_i32, %c0_i32_0 : i32, i32, i32
  }
}

</mosaic_0001>

<llo_original>
// kernel: tile.5
$region0: #{tile.5}
  %s0 = inlined_call_operand.vmem [shape: f32[10,10], index: 0, kind: input, shape index: {}]
  %s1 = inlined_call_operand.vmem [shape: f32[100], index: 1, kind: output, shape index: {}]
  $region1: #{tile.5} parent=0
    #allocation0 [shape = 'u8[4096]{0}', space=vmem, size = 0x1000, scoped, tag = 'scoped mem for output reshape']
    %v2 = vld [vmem:[%s0] sm:$0x1]
    %vm3 = vcmask 80896
    %4 = vst.msk [vmem:[#allocation0] sm:$0x1] %vm3, %v2
    %s5 = scalar_lea.vmem %s0, 9
    %v6 = vld [vmem:[%s5] sm:$0x1]
    %7 = vrot.lane.b32.xlu0 %v6, 90
    %v8 = vpop.permute.xlu0 %7
    %vm9 = vcmask 818896
    %10 = vst.msk [vmem:[#allocation0] sm:$0x1] %vm9, %v8
    %s11 = scalar_lea.vmem %s0, 8
    %v12 = vld [vmem:[%s11] sm:$0x1]
    %13 = vrot.lane.b32.xlu0 %v12, 80
    %v14 = vpop.permute.xlu0 %13
    %vm15 = vcmask 736896
    %16 = vst.msk [vmem:[#allocation0] sm:$0x1] %vm15, %v14
    %s17 = scalar_lea.vmem %s0, 7
    %v18 = vld [vmem:[%s17] sm:$0x1]
    %19 = vrot.lane.b32.xlu0 %v18, 70
    %v20 = vpop.permute.xlu0 %19
    %vm21 = vcmask 654896
    %22 = vst.msk [vmem:[#allocation0] sm:$0x1] %vm21, %v20
    %s23 = scalar_lea.vmem %s0, 6
    %v24 = vld [vmem:[%s23] sm:$0x1]
    %25 = vrot.lane.b32.xlu0 %v24, 60
    %v26 = vpop.permute.xlu0 %25
    %vm27 = vcmask 572896
    %28 = vst.msk [vmem:[#allocation0] sm:$0x1] %vm27, %v26
    %s29 = scalar_lea.vmem %s0, 5
    %v30 = vld [vmem:[%s29] sm:$0x1]
    %31 = vrot.lane.b32.xlu0 %v30, 50
    %v32 = vpop.permute.xlu0 %31
    %vm33 = vcmask 490896
    %34 = vst.msk [vmem:[#allocation0] sm:$0x1] %vm33, %v32
    %s35 = scalar_lea.vmem %s0, 4
    %v36 = vld [vmem:[%s35] sm:$0x1]
    %37 = vrot.lane.b32.xlu0 %v36, 40
    %v38 = vpop.permute.xlu0 %37
    %vm39 = vcmask 408896
    %40 = vst.msk [vmem:[#allocation0] sm:$0x1] %vm39, %v38
    %s41 = scalar_lea.vmem %s0, 3
    %v42 = vld [vmem:[%s41] sm:$0x1]
    %43 = vrot.lane.b32.xlu0 %v42, 30
    %v44 = vpop.permute.xlu0 %43
    %vm45 = vcmask 326896
    %46 = vst.msk [vmem:[#allocation0] sm:$0x1] %vm45, %v44
    %s47 = scalar_lea.vmem %s0, 2
    %v48 = vld [vmem:[%s47] sm:$0x1]
    %49 = vrot.lane.b32.xlu0 %v48, 20
    %v50 = vpop.permute.xlu0 %49
    %vm51 = vcmask 244896
    %52 = vst.msk [vmem:[#allocation0] sm:$0x1] %vm51, %v50
    %s53 = scalar_lea.vmem %s0, 1
    %v54 = vld [vmem:[%s53] sm:$0x1]
    %55 = vrot.lane.b32.xlu0 %v54, 10
    %v56 = vpop.permute.xlu0 %55
    %vm57 = vcmask 162896
    %58 = vst.msk [vmem:[#allocation0] sm:$0x1] %vm57, %v56
    %s60 = sshllo.u32 0, 1
    %v62 = vld [vmem:[#allocation0] sm:%s60]
    %s63 = sshllo.u32 0, 1
    %64 = vst [vmem:[%s1] sm:%s63] %v62

// kernel: tile.6
$region0: #{tile.6}
  #allocation0 [shape = 's32[1]{0}', space=sflag, size = 0x4, scoped, tag = 'scoped memory for tile.6']
  %s0 = inlined_call_operand.vmem [shape: f32[100], index: 0, kind: input, shape index: {}]
  %s1 = inlined_call_operand.vmem [shape: f32[2,100], index: 1, kind: output, shape index: {}]
  // Predicated region
  $region2: #{tile.6} parent=0 // pred_check
    _
  $region3: #{tile.6} parent=0 // pred_check_branch
    %3 = sbr.rel (0) target = $region5
  $region4: #{tile.6} parent=0 // pred_region
    _
  $region5: #{tile.6} parent=0 // pred_fallthru
    _
  %v4 = vld [vmem:[%s0] ss:$0 sm:$0xff]
  %5 = vst [vmem:[%s1] sm:$0x3] %v4

// kernel: tile.7
$region0: #{tile.7}
  %s0 = inlined_call_operand.vmem [shape: f32[2,100], index: 0, kind: input, shape index: {}]
  %s1 = inlined_call_operand.vmem [shape: f32[200], index: 1, kind: output, shape index: {}]
  $region1: #{tile.7} parent=0
    #allocation0 [shape = 'u8[4096]{0}', space=vmem, size = 0x1000, scoped, tag = 'scoped mem for output reshape']
    #allocation1 [shape = 'u8[4096]{0}', space=vmem, size = 0x1000, scoped, tag = 'scoped mem for input reshape']
    %s3 = sshllo.u32 0, 2
    %v4 = vld [vmem:[%s0] sm:%s3]
    %5 = vst [vmem:[#allocation1] sm:%s3] %v4
    %v6 = vld [vmem:[#allocation1] sm:$0x1]
    %vm7 = vcmask 818176
    %8 = vst.msk [vmem:[#allocation0] sm:$0x1] %vm7, %v6
    %s9 = scalar_lea.vmem [#allocation1], 1
    %v10 = vld [vmem:[%s9] sm:$0x1]
    %s11 = scalar_lea.vmem [#allocation1], 1
    %v12 = vld [vmem:[%s11] sm:$0x1]
    %vm13 = vcmask 228352
    %v14 = vsel %vm13, %v12, %v10
    %15 = vrot.lane.b32.xlu0 %v14, 100
    %v16 = vpop.permute.xlu0 %15
    %vm17 = vcmask 588800
    %s18 = scalar_lea.vmem [#allocation0], 1
    %19 = vst.msk [vmem:[%s18] sm:$0x1] %vm17, %v16
    %vm20 = vcmask 1048352
    %21 = vst.msk [vmem:[#allocation0] sm:$0x1] %vm20, %v16
    %s23 = sshllo.u32 0, 2
    %v25 = vld [vmem:[#allocation0] sm:%s23]
    %s26 = sshllo.u32 0, 2
    %27 = vst [vmem:[%s1] sm:%s26] %v25

// kernel: dense_down_forward.1
$region0: #{dense_down_forward.1}
  #allocation0 [shape = 'u32[]', space=smem, size = 0x4, offset = 0x4, fixed_abs, tag = 'smem constant byte address 0x4 - core index']
  #allocation1 [shape = 'u32[144,128]{1,0:T(1,128)}', space=vmem, size = 0x12000, scoped, tag = 'internal scratch']
  #allocation2 [shape = 'bf16[4,4,222]{2,1,0:T(4,128)(2,1)}', space=vmem, size = 0x2000, scoped, tag = 'scratch operand']
  #allocation3 [shape = 'bf16[4,32,339]{2,1,0:T(16,128)(2,1)}', space=vmem, size = 0x18000, scoped, tag = 'scratch operand']
  %s0 = inlined_call_operand.vmem [shape: f32[1,4,4,222], index: 0, kind: input, shape index: {}]
  %s1 = inlined_call_operand.vmem [shape: f32[1,222], index: 1, kind: input, shape index: {}]
  %s2 = inlined_call_operand.vmem [shape: f32[4,1], index: 2, kind: input, shape index: {}]
  %s3 = inlined_call_operand.vmem [shape: f32[4,1], index: 3, kind: input, shape index: {}]
  %s4 = inlined_call_operand.vmem [shape: bf16[9,32,4], index: 4, kind: input, shape index: {}]
  %s5 = inlined_call_operand.vmem [shape: f32[32,1], index: 5, kind: input, shape index: {}]
  %s6 = inlined_call_operand.vmem [shape: f32[32,1], index: 6, kind: input, shape index: {}]
  %s7 = inlined_call_operand.vmem [shape: f32[32,1], index: 7, kind: input, shape index: {}]
  %s8 = inlined_call_operand.vmem [shape: bf16[16,8,32], index: 8, kind: input, shape index: {}]
  %s9 = inlined_call_operand.vmem [shape: f32[8,1], index: 9, kind: input, shape index: {}]
  %s10 = inlined_call_operand.vmem [shape: f32[1,4,32,200], index: 10, kind: output, shape index: {0}]
  %s11 = inlined_call_operand.vmem [shape: f32[1,8,200], index: 11, kind: output, shape index: {1}]
  %12 = xla_tuple %s10, %s11
  %s13 = sld [smem:[#allocation0]]
  $region58: #{dense_down_forward.1} parent=0
    _
  %s15 = ssub.s32 1, %s13
  %s16 = scalar_select 0, %s15, %s13
  // Predicated region
  $region2: #{dense_down_forward.1} parent=0 // pred_check
    _
  $region3: #{dense_down_forward.1} parent=0 // pred_check_branch
    %18 = sbr.rel (0) target = $region5
  $region4: #{dense_down_forward.1} parent=0 // pred_region
    _
  $region5: #{dense_down_forward.1} parent=0 // pred_fallthru
    _
  // Predicated region
  $region6: #{dense_down_forward.1} parent=0 // pred_check
    _
  $region7: #{dense_down_forward.1} parent=0 // pred_check_branch
    %20 = sbr.rel (0) target = $region9
  $region8: #{dense_down_forward.1} parent=0 // pred_region
    _
  $region9: #{dense_down_forward.1} parent=0 // pred_fallthru
    _
  // Predicated region
  $region10: #{dense_down_forward.1} parent=0 // pred_check
    _
  $region11: #{dense_down_forward.1} parent=0 // pred_check_branch
    %22 = sbr.rel (0) target = $region13
  $region12: #{dense_down_forward.1} parent=0 // pred_region
    _
  $region13: #{dense_down_forward.1} parent=0 // pred_fallthru
    _
  // Predicated region
  $region14: #{dense_down_forward.1} parent=0 // pred_check
    _
  $region15: #{dense_down_forward.1} parent=0 // pred_check_branch
    %24 = sbr.rel (0) target = $region17
  $region16: #{dense_down_forward.1} parent=0 // pred_region
    _
  $region17: #{dense_down_forward.1} parent=0 // pred_fallthru
    _
  // Predicated region
  $region18: #{dense_down_forward.1} parent=0 // pred_check
    _
  $region19: #{dense_down_forward.1} parent=0 // pred_check_branch
    %26 = sbr.rel (0) target = $region21
  $region20: #{dense_down_forward.1} parent=0 // pred_region
    _
  $region21: #{dense_down_forward.1} parent=0 // pred_fallthru
    _
  // Predicated region
  $region22: #{dense_down_forward.1} parent=0 // pred_check
    _
  $region23: #{dense_down_forward.1} parent=0 // pred_check_branch
    %28 = sbr.rel (0) target = $region25
  $region24: #{dense_down_forward.1} parent=0 // pred_region
    _
  $region25: #{dense_down_forward.1} parent=0 // pred_fallthru
    _
  // Predicated region
  $region26: #{dense_down_forward.1} parent=0 // pred_check
    _
  $region27: #{dense_down_forward.1} parent=0 // pred_check_branch
    %30 = sbr.rel (0) target = $region29
  $region28: #{dense_down_forward.1} parent=0 // pred_region
    _
  $region29: #{dense_down_forward.1} parent=0 // pred_fallthru
    _
  // Predicated region
  $region30: #{dense_down_forward.1} parent=0 // pred_check
    _
  $region31: #{dense_down_forward.1} parent=0 // pred_check_branch
    %32 = sbr.rel (0) target = $region33
  $region32: #{dense_down_forward.1} parent=0 // pred_region
    _
  $region33: #{dense_down_forward.1} parent=0 // pred_fallthru
    _
  // Predicated region
  $region34: #{dense_down_forward.1} parent=0 // pred_check
    _
  $region35: #{dense_down_forward.1} parent=0 // pred_check_branch
    %34 = sbr.rel (0) target = $region37
  $region36: #{dense_down_forward.1} parent=0 // pred_region
    _
  $region37: #{dense_down_forward.1} parent=0 // pred_fallthru
    _
  // Predicated region
  $region38: #{dense_down_forward.1} parent=0 // pred_check
    _
  $region39: #{dense_down_forward.1} parent=0 // pred_check_branch
    %36 = sbr.rel (0) target = $region41
  $region40: #{dense_down_forward.1} parent=0 // pred_region
    _
  $region41: #{dense_down_forward.1} parent=0 // pred_fallthru
    _
  %v38 = vld [vmem:[%s1] sm:$0x3]
  %v39 = vld [vmem:[%s0] sm:$0xff]
  %v40 = vld [vmem:[%s0 + $0x8] sm:$0xff]
  %v41 = vld [vmem:[%s0 + $0x10] sm:$0xff]
  %v42 = vld [vmem:[%s0 + $0x18] sm:$0xff]
  %v43 = vld [vmem:[%s2] sm:$0xf]
  %45 = vset.pattern.permute.xlu0 0
  %46 = vperm.xlu0 %45, %v43
  %v47 = vpop.permute.xlu0 %46
  %v49 = vunpack.c.l.s4 839922192
  %v50 = vunpack.c.0.s8 %v49
  %v51 = vlaneseq
  %v52 = vshrl.u32 %v51, 7
  %v53 = vsub.s32 %v50, %v52
  %v54 = vrot.slane %v47, %v53
  %v56 = vmul.f32 %v39, %v54
  %v57 = vmul.f32 %v40, %v54
  %v58 = vmul.f32 %v41, %v54
  %v59 = vmul.f32 %v42, %v54
  %v60 = vld [vmem:[%s3] sm:$0xf]
  %62 = vset.pattern.permute.xlu0 0
  %63 = vperm.xlu0 %62, %v60
  %v64 = vpop.permute.xlu0 %63
  %v66 = vunpack.c.l.s4 839922192
  %v67 = vunpack.c.0.s8 %v66
  %v68 = vlaneseq
  %v69 = vshrl.u32 %v68, 7
  %v70 = vsub.s32 %v67, %v69
  %v71 = vrot.slane %v64, %v70
  %v73 = vadd.f32 %v56, %v71
  %v74 = vadd.f32 %v57, %v71
  %v75 = vadd.f32 %v58, %v71
  %v76 = vadd.f32 %v59, %v71
  %vm77 = vcmp.ge.f32.partialorder %v73, 0.0
  %vm78 = vcmp.ge.f32.partialorder %v74, 0.0
  %vm79 = vcmp.ge.f32.partialorder %v75, 0.0
  %vm80 = vcmp.ge.f32.partialorder %v76, 0.0
  %v81 = vmul.f32 %v73, 0.01
  %v82 = vmul.f32 %v74, 0.01
  %v83 = vmul.f32 %v75, 0.01
  %v84 = vmul.f32 %v76, 0.01
  %v85 = vsel %vm77, %v73, %v81
  %v86 = vsel %vm78, %v74, %v82
  %v87 = vsel %vm79, %v75, %v83
  %v88 = vsel %vm80, %v76, %v84
  %v90 = vlaneseq
  %v91 = vshrl.u32 %v90, 7
  %v92 = vsub.s32 0, %v91
  %v93 = vrot.slane %v38, %v92
  %v94 = vlaneseq
  %v95 = vshrl.u32 %v94, 7
  %v96 = vsub.s32 1, %v95
  %v97 = vrot.slane %v38, %v96
  %v98 = vcombine.low %v93, %v97
  %v100 = vmul.f32 %v85, %v98
  %v101 = vmul.f32 %v86, %v98
  %v102 = vmul.f32 %v87, %v98
  %v103 = vmul.f32 %v88, %v98
  %v108 = vcombine.high %v100, %v100
  %v109 = vcombine.high %v101, %v101
  %v110 = vcombine.high %v102, %v102
  %v111 = vcombine.high %v103, %v103
  %v116 = vpack.c.bf16 %v100, %v100
  %v117 = vpack.c.bf16 %v108, %v108
  %v118 = vpack.c.bf16 %v101, %v101
  %v119 = vpack.c.bf16 %v109, %v109
  %v120 = vpack.c.bf16 %v102, %v102
  %v121 = vpack.c.bf16 %v110, %v110
  %v122 = vpack.c.bf16 %v103, %v103
  %v123 = vpack.c.bf16 %v111, %v111
  %v132 = vcombine.low %v116, %v117
  %v134 = vunpack.c.l.s4 1983009808
  %v135 = vunpack.c.0.s8 %v134
  %v136 = vlaneseq
  %v137 = vshrl.u32 %v136, 7
  %v138 = vsub.s32 %v135, %v137
  %v139 = vrot.slane %v132, %v138
  %v140 = vcombine.low %v118, %v119
  %v142 = vunpack.c.l.s4 1983009808
  %v143 = vunpack.c.0.s8 %v142
  %v144 = vlaneseq
  %v145 = vshrl.u32 %v144, 7
  %v146 = vsub.s32 %v143, %v145
  %v147 = vrot.slane %v140, %v146
  %v148 = vcombine.low %v120, %v121
  %v150 = vunpack.c.l.s4 1983009808
  %v151 = vunpack.c.0.s8 %v150
  %v152 = vlaneseq
  %v153 = vshrl.u32 %v152, 7
  %v154 = vsub.s32 %v151, %v153
  %v155 = vrot.slane %v148, %v154
  %v156 = vcombine.low %v122, %v123
  %v158 = vunpack.c.l.s4 1983009808
  %v159 = vunpack.c.0.s8 %v158
  %v160 = vlaneseq
  %v161 = vshrl.u32 %v160, 7
  %v162 = vsub.s32 %v159, %v161
  %v163 = vrot.slane %v156, %v162
  %vm168 = vcmask 1041408
  %vm169 = vcmask 764930
  %vm170 = vmor %vm169, %vm168
  %171 = vst.msk [vmem:[#allocation2] sm:$0xf] %vm170, %v139
  %172 = vst.msk [vmem:[#allocation2 + $0x4] sm:$0xf] %vm170, %v147
  %173 = vst.msk [vmem:[#allocation2 + $0x8] sm:$0xf] %vm170, %v155
  %174 = vst.msk [vmem:[#allocation2 + $0xc] sm:$0xf] %vm170, %v163
  %175 = vst [vmem:[#allocation3] sm:$0xff] 0
  %176 = vst [vmem:[#allocation3 + $0x18] sm:$0xff] 0
  %177 = vst [vmem:[#allocation3 + $0x30] sm:$0xff] 0
  %178 = vst [vmem:[#allocation3 + $0x48] sm:$0xff] 0
  %179 = vst [vmem:[#allocation3 + $0x60] sm:$0xff] 0
  %180 = vst [vmem:[#allocation3 + $0x78] sm:$0xff] 0
  %181 = vst [vmem:[#allocation3 + $0x90] sm:$0xff] 0
  %182 = vst [vmem:[#allocation3 + $0xa8] sm:$0xff] 0
  %vm183 = vcmask 678912
  %184 = vst.msk [vmem:[#allocation3 + $0x10] sm:$0xff] %vm183, 0
  %185 = vst.msk [vmem:[#allocation3 + $0x28] sm:$0xff] %vm183, 0
  %186 = vst.msk [vmem:[#allocation3 + $0x40] sm:$0xff] %vm183, 0
  %187 = vst.msk [vmem:[#allocation3 + $0x58] sm:$0xff] %vm183, 0
  %188 = vst.msk [vmem:[#allocation3 + $0x70] sm:$0xff] %vm183, 0
  %189 = vst.msk [vmem:[#allocation3 + $0x88] sm:$0xff] %vm183, 0
  %190 = vst.msk [vmem:[#allocation3 + $0xa0] sm:$0xff] %vm183, 0
  %191 = vst.msk [vmem:[#allocation3 + $0xb8] sm:$0xff] %vm183, 0
  %v192 = vld [vmem:[%s4] sm:$0xf]
  %v193 = vld [vmem:[%s4 + $0x4] sm:$0xf]
  %v194 = vld [vmem:[%s4 + $0x8] sm:$0xf]
  %v195 = vld [vmem:[%s4 + $0xc] sm:$0xf]
  %v196 = vld [vmem:[%s4 + $0x10] sm:$0xf]
  %v197 = vld [vmem:[%s4 + $0x14] sm:$0xf]
  %v198 = vld [vmem:[%s4 + $0x18] sm:$0xf]
  %v199 = vld [vmem:[%s4 + $0x1c] sm:$0xf]
  %v200 = vld [vmem:[%s4 + $0x20] sm:$0xf]
  %v201 = vld [vmem:[%s4 + $0x24] sm:$0xf]
  %v202 = vld [vmem:[%s4 + $0x28] sm:$0xf]
  %v203 = vld [vmem:[%s4 + $0x2c] sm:$0xf]
  %v204 = vld [vmem:[%s4 + $0x30] sm:$0xf]
  %v205 = vld [vmem:[%s4 + $0x34] sm:$0xf]
  %v206 = vld [vmem:[%s4 + $0x38] sm:$0xf]
  %v207 = vld [vmem:[%s4 + $0x3c] sm:$0xf]
  %v208 = vld [vmem:[%s4 + $0x40] sm:$0xf]
  %v209 = vld [vmem:[%s4 + $0x44] sm:$0xf]
  %v210 = vld [vmem:[%s4 + $0x48] sm:$0xf]
  %v211 = vld [vmem:[%s4 + $0x4c] sm:$0xf]
  %v212 = vld [vmem:[%s4 + $0x50] sm:$0xf]
  %v213 = vld [vmem:[%s4 + $0x54] sm:$0xf]
  %v214 = vld [vmem:[%s4 + $0x58] sm:$0xf]
  %v215 = vld [vmem:[%s4 + $0x5c] sm:$0xf]
  %v216 = vld [vmem:[%s4 + $0x60] sm:$0xf]
  %v217 = vld [vmem:[%s4 + $0x64] sm:$0xf]
  %v218 = vld [vmem:[%s4 + $0x68] sm:$0xf]
  %v219 = vld [vmem:[%s4 + $0x6c] sm:$0xf]
  %v220 = vld [vmem:[%s4 + $0x70] sm:$0xf]
  %v221 = vld [vmem:[%s4 + $0x74] sm:$0xf]
  %v222 = vld [vmem:[%s4 + $0x78] sm:$0xf]
  %v223 = vld [vmem:[%s4 + $0x7c] sm:$0xf]
  %v224 = vld [vmem:[%s4 + $0x80] sm:$0xf]
  %v225 = vld [vmem:[%s4 + $0x84] sm:$0xf]
  %v226 = vld [vmem:[%s4 + $0x88] sm:$0xf]
  %v227 = vld [vmem:[%s4 + $0x8c] sm:$0xf]
  %v228 = vld [vmem:[%s8] sm:$0xf]
  %v229 = vld [vmem:[%s8 + $0x4] sm:$0xf]
  %v230 = vld [vmem:[%s8 + $0x8] sm:$0xf]
  %v231 = vld [vmem:[%s8 + $0xc] sm:$0xf]
  %v232 = vld [vmem:[%s8 + $0x10] sm:$0xf]
  %v233 = vld [vmem:[%s8 + $0x14] sm:$0xf]
  %v234 = vld [vmem:[%s8 + $0x18] sm:$0xf]
  %v235 = vld [vmem:[%s8 + $0x1c] sm:$0xf]
  %v236 = vld [vmem:[%s8 + $0x20] sm:$0xf]
  %v237 = vld [vmem:[%s8 + $0x24] sm:$0xf]
  %v238 = vld [vmem:[%s8 + $0x28] sm:$0xf]
  %v239 = vld [vmem:[%s8 + $0x2c] sm:$0xf]
  %v240 = vld [vmem:[%s8 + $0x30] sm:$0xf]
  %v241 = vld [vmem:[%s8 + $0x34] sm:$0xf]
  %v242 = vld [vmem:[%s8 + $0x38] sm:$0xf]
  %v243 = vld [vmem:[%s8 + $0x3c] sm:$0xf]
  %v244 = vld [vmem:[%s5] sm:$0xff]
  %v245 = vld [vmem:[%s5 + $0x8] sm:$0xff]
  %v246 = vld [vmem:[%s5 + $0x10] sm:$0xff]
  %v247 = vld [vmem:[%s5 + $0x18] sm:$0xff]
  %v248 = vld [vmem:[%s6] sm:$0xff]
  %v249 = vld [vmem:[%s6 + $0x8] sm:$0xff]
  %v250 = vld [vmem:[%s6 + $0x10] sm:$0xff]
  %v251 = vld [vmem:[%s6 + $0x18] sm:$0xff]
  %v252 = vld [vmem:[%s7] sm:$0xff]
  %v253 = vld [vmem:[%s7 + $0x8] sm:$0xff]
  %v254 = vld [vmem:[%s7 + $0x10] sm:$0xff]
  %v255 = vld [vmem:[%s7 + $0x18] sm:$0xff]
  %s256 = scalar_lea.vmem [#allocation2], 12
  %v257 = vld [vmem:[%s256] sm:$0xf]
  %s258 = scalar_lea.vmem [#allocation2], 8
  %v259 = vld [vmem:[%s258] sm:$0xf]
  %v264 = vunpack.c.l.b16 %v196
  %v265 = vunpack.c.l.b16 %v197
  %v266 = vunpack.c.l.b16 %v198
  %v267 = vunpack.c.l.b16 %v199
  %v268 = vpack.c.b16 %v265, %v264
  %v269 = vpack.c.b16 %v267, %v266
  %v272 = vunpack.c.l.s4 1983009808
  %v273 = vunpack.c.0.s8 %v272
  %v274 = vlaneseq
  %v275 = vshrl.u32 %v274, 7
  %v276 = vsub.s32 %v273, %v275
  %v277 = vrot.slane %v259, %v276
  %v278 = vcombine.high %v277, %v277
  %279 = vrot.lane.b32.xlu0 %v277, 127
  %v280 = vpop.permute.xlu0 %279
  %281 = vrot.lane.b32.xlu0 %v278, 127
  %v282 = vpop.permute.xlu0 %281
  %vm283 = vcmask 1039360
  %v284 = vsel %vm283, %v280, %v282
  %vm285 = vcmask 31744
  %v287 = vsel %vm285, %v268, 0
  %v290 = vsel %vm285, %v269, 0
  %v293 = vsel %vm168, %v284, 0
  %v296 = vsel %vm168, %v282, 0
  %298 = vmatprep.subr.bf16.mxu0 %v296
  %299 = vmatpush1.bf16.msra.mxu0 %v293
  %300 = vmatprep.subr.bf16.mxu0 0
  %301 = vmatpush1.bf16.msra.mxu0 0
  %302 = vmatprep.subr.bf16.mxu0 0
  %303 = vmatpush1.bf16.msra.mxu0 0
  %304 = vmatprep.subr.bf16.mxu0 0
  %305 = vmatpush1.bf16.msra.mxu0 0
  %306 = vmatprep.subr.bf16.mxu0 0
  %307 = vmatpush1.bf16.msra.mxu0 0
  %308 = vmatprep.subr.bf16.mxu0 0
  %309 = vmatpush1.bf16.msra.mxu0 0
  %310 = vmatprep.subr.bf16.mxu0 0
  %311 = vmatpush1.bf16.msra.mxu0 0
  %312 = vmatprep.subr.bf16.mxu0 0
  %313 = vmatpush1.bf16.msra.mxu0 0
  %314 = vmatprep.subr.bf16.mxu0 0
  %315 = vmatpush1.bf16.msra.mxu0 0
  %316 = vmatprep.subr.bf16.mxu0 0
  %317 = vmatpush1.bf16.msra.mxu0 0
  %318 = vmatprep.subr.bf16.mxu0 0
  %319 = vmatpush1.bf16.msra.mxu0 0
  %320 = vmatprep.subr.bf16.mxu0 0
  %321 = vmatpush1.bf16.msra.mxu0 0
  %322 = vmatprep.subr.bf16.mxu0 0
  %323 = vmatpush1.bf16.msra.mxu0 0
  %324 = vmatprep.subr.bf16.mxu0 0
  %325 = vmatpush1.bf16.msra.mxu0 0
  %326 = vmatprep.subr.bf16.mxu0 0
  %327 = vmatpush1.bf16.msra.mxu0 0
  %328 = vmatprep.subr.bf16.mxu0 0
  %329 = vmatpush1.bf16.msra.mxu0 0
  %330 = vmatprep.mubr.bf16.mxu0 0
  %331 = vmatmul.mubr.bf16.gmra.mrb[0].mxu0 %v287
  %v332 = vpop.f32.mrb[0].mxu0
  %v333 = vadd.f32 0.0, %v332
  %v334 = vpop.f32.mrb[0].mxu0
  %v335 = vadd.f32 0.0, %v334
  %v336 = vpop.f32.mrb[0].mxu0
  %v337 = vadd.f32 0.0, %v336
  %v338 = vpop.f32.mrb[0].mxu0
  %v339 = vadd.f32 0.0, %v338
  %340 = vmatprep.mubr.bf16.mxu0 0
  %341 = vmatmul.mubr.bf16.gmra.mrb[0].mxu0 %v290
  %v342 = vpop.f32.mrb[0].mxu0
  %v343 = vadd.f32 0.0, %v342
  %v344 = vpop.f32.mrb[0].mxu0
  %v345 = vadd.f32 0.0, %v344
  %v346 = vpop.f32.mrb[0].mxu0
  %v347 = vadd.f32 0.0, %v346
  %v348 = vpop.f32.mrb[0].mxu0
  %v349 = vadd.f32 0.0, %v348
  %350 = vdwg.mxu0
  %v355 = vunpack.c.l.b16 %v192
  %v356 = vunpack.c.l.b16 %v193
  %v357 = vunpack.c.l.b16 %v194
  %v358 = vunpack.c.l.b16 %v195
  %v359 = vpack.c.b16 %v356, %v355
  %v360 = vpack.c.b16 %v358, %v357
  %v363 = vunpack.c.l.s4 1983009808
  %v364 = vunpack.c.0.s8 %v363
  %v365 = vlaneseq
  %v366 = vshrl.u32 %v365, 7
  %v367 = vsub.s32 %v364, %v366
  %v368 = vrot.slane %v257, %v367
  %v369 = vcombine.high %v368, %v368
  %v371 = vsel %vm285, %v359, 0
  %v374 = vsel %vm285, %v360, 0
  %v377 = vsel %vm168, %v368, 0
  %v380 = vsel %vm168, %v369, 0
  %382 = vmatprep.subr.bf16.mxu0 %v380
  %383 = vmatpush1.bf16.msra.mxu0 %v377
  %384 = vmatprep.subr.bf16.mxu0 0
  %385 = vmatpush1.bf16.msra.mxu0 0
  %386 = vmatprep.subr.bf16.mxu0 0
  %387 = vmatpush1.bf16.msra.mxu0 0
  %388 = vmatprep.subr.bf16.mxu0 0
  %389 = vmatpush1.bf16.msra.mxu0 0
  %390 = vmatprep.subr.bf16.mxu0 0
  %391 = vmatpush1.bf16.msra.mxu0 0
  %392 = vmatprep.subr.bf16.mxu0 0
  %393 = vmatpush1.bf16.msra.mxu0 0
  %394 = vmatprep.subr.bf16.mxu0 0
  %395 = vmatpush1.bf16.msra.mxu0 0
  %396 = vmatprep.subr.bf16.mxu0 0
  %397 = vmatpush1.bf16.msra.mxu0 0
  %398 = vmatprep.subr.bf16.mxu0 0
  %399 = vmatpush1.bf16.msra.mxu0 0
  %400 = vmatprep.subr.bf16.mxu0 0
  %401 = vmatpush1.bf16.msra.mxu0 0
  %402 = vmatprep.subr.bf16.mxu0 0
  %403 = vmatpush1.bf16.msra.mxu0 0
  %404 = vmatprep.subr.bf16.mxu0 0
  %405 = vmatpush1.bf16.msra.mxu0 0
  %406 = vmatprep.subr.bf16.mxu0 0
  %407 = vmatpush1.bf16.msra.mxu0 0
  %408 = vmatprep.subr.bf16.mxu0 0
  %409 = vmatpush1.bf16.msra.mxu0 0
  %410 = vmatprep.subr.bf16.mxu0 0
  %411 = vmatpush1.bf16.msra.mxu0 0
  %412 = vmatprep.subr.bf16.mxu0 0
  %413 = vmatpush1.bf16.msra.mxu0 0
  %414 = vmatprep.mubr.bf16.mxu0 0
  %415 = vmatmul.mubr.bf16.gmra.mrb[0].mxu0 %v371
  %v416 = vpop.f32.mrb[0].mxu0
  %v417 = vadd.f32 %v333, %v416
  %v418 = vpop.f32.mrb[0].mxu0
  %v419 = vadd.f32 %v335, %v418
  %v420 = vpop.f32.mrb[0].mxu0
  %v421 = vadd.f32 %v337, %v420
  %v422 = vpop.f32.mrb[0].mxu0
  %v423 = vadd.f32 %v339, %v422
  %424 = vmatprep.mubr.bf16.mxu0 0
  %425 = vmatmul.mubr.bf16.gmra.mrb[0].mxu0 %v374
  %v426 = vpop.f32.mrb[0].mxu0
  %v427 = vadd.f32 %v343, %v426
  %v428 = vpop.f32.mrb[0].mxu0
  %v429 = vadd.f32 %v345, %v428
  %v430 = vpop.f32.mrb[0].mxu0
  %v431 = vadd.f32 %v347, %v430
  %v432 = vpop.f32.mrb[0].mxu0
  %v433 = vadd.f32 %v349, %v432
  %434 = vdwg.mxu0
  %v435 = vld [vmem:[%s256] sm:$0xf]
  %v440 = vunpack.c.l.b16 %v200
  %v441 = vunpack.c.l.b16 %v201
  %v442 = vunpack.c.l.b16 %v202
  %v443 = vunpack.c.l.b16 %v203
  %v444 = vpack.c.b16 %v441, %v440
  %v445 = vpack.c.b16 %v443, %v442
  %v448 = vunpack.c.l.s4 1983009808
  %v449 = vunpack.c.0.s8 %v448
  %v450 = vlaneseq
  %v451 = vshrl.u32 %v450, 7
  %v452 = vsub.s32 %v449, %v451
  %v453 = vrot.slane %v435, %v452
  %v454 = vcombine.high %v453, %v453
  %455 = vrot.lane.b32.xlu0 %v453, 127
  %v456 = vpop.permute.xlu0 %455
  %457 = vrot.lane.b32.xlu0 %v454, 127
  %v458 = vpop.permute.xlu0 %457
  %v459 = vsel %vm283, %v456, %v458
  %v461 = vsel %vm285, %v444, 0
  %v464 = vsel %vm285, %v445, 0
  %v467 = vsel %vm168, %v459, 0
  %v470 = vsel %vm168, %v458, 0
  %472 = vmatprep.subr.bf16.mxu0 %v470
  %473 = vmatpush1.bf16.msra.mxu0 %v467
  %474 = vmatprep.subr.bf16.mxu0 0
  %475 = vmatpush1.bf16.msra.mxu0 0
  %476 = vmatprep.subr.bf16.mxu0 0
  %477 = vmatpush1.bf16.msra.mxu0 0
  %478 = vmatprep.subr.bf16.mxu0 0
  %479 = vmatpush1.bf16.msra.mxu0 0
  %480 = vmatprep.subr.bf16.mxu0 0
  %481 = vmatpush1.bf16.msra.mxu0 0
  %482 = vmatprep.subr.bf16.mxu0 0
  %483 = vmatpush1.bf16.msra.mxu0 0
  %484 = vmatprep.subr.bf16.mxu0 0
  %485 = vmatpush1.bf16.msra.mxu0 0
  %486 = vmatprep.subr.bf16.mxu0 0
  %487 = vmatpush1.bf16.msra.mxu0 0
  %488 = vmatprep.subr.bf16.mxu0 0
  %489 = vmatpush1.bf16.msra.mxu0 0
  %490 = vmatprep.subr.bf16.mxu0 0
  %491 = vmatpush1.bf16.msra.mxu0 0
  %492 = vmatprep.subr.bf16.mxu0 0
  %493 = vmatpush1.bf16.msra.mxu0 0
  %494 = vmatprep.subr.bf16.mxu0 0
  %495 = vmatpush1.bf16.msra.mxu0 0
  %496 = vmatprep.subr.bf16.mxu0 0
  %497 = vmatpush1.bf16.msra.mxu0 0
  %498 = vmatprep.subr.bf16.mxu0 0
  %499 = vmatpush1.bf16.msra.mxu0 0
  %500 = vmatprep.subr.bf16.mxu0 0
  %501 = vmatpush1.bf16.msra.mxu0 0
  %502 = vmatprep.subr.bf16.mxu0 0
  %503 = vmatpush1.bf16.msra.mxu0 0
  %504 = vmatprep.mubr.bf16.mxu0 0
  %505 = vmatmul.mubr.bf16.gmra.mrb[0].mxu0 %v461
  %v506 = vpop.f32.mrb[0].mxu0
  %v507 = vadd.f32 0.0, %v506
  %v508 = vpop.f32.mrb[0].mxu0
  %v509 = vadd.f32 0.0, %v508
  %v510 = vpop.f32.mrb[0].mxu0
  %v511 = vadd.f32 0.0, %v510
  %v512 = vpop.f32.mrb[0].mxu0
  %v513 = vadd.f32 0.0, %v512
  %514 = vmatprep.mubr.bf16.mxu0 0
  %515 = vmatmul.mubr.bf16.gmra.mrb[0].mxu0 %v464
  %v516 = vpop.f32.mrb[0].mxu0
  %v517 = vadd.f32 0.0, %v516
  %v518 = vpop.f32.mrb[0].mxu0
  %v519 = vadd.f32 0.0, %v518
  %v520 = vpop.f32.mrb[0].mxu0
  %v521 = vadd.f32 0.0, %v520
  %v522 = vpop.f32.mrb[0].mxu0
  %v523 = vadd.f32 0.0, %v522
  %524 = vdwg.mxu0
  %v525 = vadd.f32 %v417, %v507
  %v526 = vadd.f32 %v419, %v509
  %v527 = vadd.f32 %v421, %v511
  %v528 = vadd.f32 %v423, %v513
  %v529 = vadd.f32 %v427, %v517
  %v530 = vadd.f32 %v429, %v519
  %v531 = vadd.f32 %v431, %v521
  %v532 = vadd.f32 %v433, %v523
  %s533 = scalar_lea.vmem [#allocation2], 4
  %v534 = vld [vmem:[%s533] sm:$0xf]
  %v539 = vunpack.c.l.b16 %v204
  %v540 = vunpack.c.l.b16 %v205
  %v541 = vunpack.c.l.b16 %v206
  %v542 = vunpack.c.l.b16 %v207
  %v543 = vpack.c.b16 %v540, %v539
  %v544 = vpack.c.b16 %v542, %v541
  %v547 = vunpack.c.l.s4 1983009808
  %v548 = vunpack.c.0.s8 %v547
  %v549 = vlaneseq
  %v550 = vshrl.u32 %v549, 7
  %v551 = vsub.s32 %v548, %v550
  %v552 = vrot.slane %v534, %v551
  %v553 = vcombine.high %v552, %v552
  %554 = vrot.lane.b32.xlu0 %v552, 118
  %v555 = vpop.permute.xlu0 %554
  %556 = vrot.lane.b32.xlu0 %v553, 118
  %v557 = vpop.permute.xlu0 %556
  %vm558 = vcmask 965632
  %v559 = vsel %vm558, %v555, %v557
  %v561 = vsel %vm285, %v543, 0
  %v564 = vsel %vm285, %v544, 0
  %v567 = vsel %vm168, %v559, 0
  %v570 = vsel %vm168, %v557, 0
  %572 = vmatprep.subr.bf16.mxu0 %v570
  %573 = vmatpush1.bf16.msra.mxu0 %v567
  %574 = vmatprep.subr.bf16.mxu0 0
  %575 = vmatpush1.bf16.msra.mxu0 0
  %576 = vmatprep.subr.bf16.mxu0 0
  %577 = vmatpush1.bf16.msra.mxu0 0
  %578 = vmatprep.subr.bf16.mxu0 0
  %579 = vmatpush1.bf16.msra.mxu0 0
  %580 = vmatprep.subr.bf16.mxu0 0
  %581 = vmatpush1.bf16.msra.mxu0 0
  %582 = vmatprep.subr.bf16.mxu0 0
  %583 = vmatpush1.bf16.msra.mxu0 0
  %584 = vmatprep.subr.bf16.mxu0 0
  %585 = vmatpush1.bf16.msra.mxu0 0
  %586 = vmatprep.subr.bf16.mxu0 0
  %587 = vmatpush1.bf16.msra.mxu0 0
  %588 = vmatprep.subr.bf16.mxu0 0
  %589 = vmatpush1.bf16.msra.mxu0 0
  %590 = vmatprep.subr.bf16.mxu0 0
  %591 = vmatpush1.bf16.msra.mxu0 0
  %592 = vmatprep.subr.bf16.mxu0 0
  %593 = vmatpush1.bf16.msra.mxu0 0
  %594 = vmatprep.subr.bf16.mxu0 0
  %595 = vmatpush1.bf16.msra.mxu0 0
  %596 = vmatprep.subr.bf16.mxu0 0
  %597 = vmatpush1.bf16.msra.mxu0 0
  %598 = vmatprep.subr.bf16.mxu0 0
  %599 = vmatpush1.bf16.msra.mxu0 0
  %600 = vmatprep.subr.bf16.mxu0 0
  %601 = vmatpush1.bf16.msra.mxu0 0
  %602 = vmatprep.subr.bf16.mxu0 0
  %603 = vmatpush1.bf16.msra.mxu0 0
  %604 = vmatprep.mubr.bf16.mxu0 0
  %605 = vmatmul.mubr.bf16.gmra.mrb[0].mxu0 %v561
  %v606 = vpop.f32.mrb[0].mxu0
  %v607 = vadd.f32 0.0, %v606
  %v608 = vpop.f32.mrb[0].mxu0
  %v609 = vadd.f32 0.0, %v608
  %v610 = vpop.f32.mrb[0].mxu0
  %v611 = vadd.f32 0.0, %v610
  %v612 = vpop.f32.mrb[0].mxu0
  %v613 = vadd.f32 0.0, %v612
  %614 = vmatprep.mubr.bf16.mxu0 0
  %615 = vmatmul.mubr.bf16.gmra.mrb[0].mxu0 %v564
  %v616 = vpop.f32.mrb[0].mxu0
  %v617 = vadd.f32 0.0, %v616
  %v618 = vpop.f32.mrb[0].mxu0
  %v619 = vadd.f32 0.0, %v618
  %v620 = vpop.f32.mrb[0].mxu0
  %v621 = vadd.f32 0.0, %v620
  %v622 = vpop.f32.mrb[0].mxu0
  %v623 = vadd.f32 0.0, %v622
  %624 = vdwg.mxu0
  %v625 = vadd.f32 %v525, %v607
  %v626 = vadd.f32 %v526, %v609
  %v627 = vadd.f32 %v527, %v611
  %v628 = vadd.f32 %v528, %v613
  %v629 = vadd.f32 %v529, %v617
  %v630 = vadd.f32 %v530, %v619
  %v631 = vadd.f32 %v531, %v621
  %v632 = vadd.f32 %v532, %v623
  %v633 = vld [vmem:[#allocation2] sm:$0xf]
  %v638 = vunpack.c.l.b16 %v208
  %v639 = vunpack.c.l.b16 %v209
  %v640 = vunpack.c.l.b16 %v210
  %v641 = vunpack.c.l.b16 %v211
  %v642 = vpack.c.b16 %v639, %v638
  %v643 = vpack.c.b16 %v641, %v640
  %v646 = vunpack.c.l.s4 1983009808
  %v647 = vunpack.c.0.s8 %v646
  %v648 = vlaneseq
  %v649 = vshrl.u32 %v648, 7
  %v650 = vsub.s32 %v647, %v649
  %v651 = vrot.slane %v633, %v650
  %v652 = vcombine.high %v651, %v651
  %653 = vrot.lane.b32.xlu0 %v651, 117
  %v654 = vpop.permute.xlu0 %653
  %655 = vrot.lane.b32.xlu0 %v652, 117
  %v656 = vpop.permute.xlu0 %655
  %vm657 = vcmask 957440
  %v658 = vsel %vm657, %v654, %v656
  %v660 = vsel %vm285, %v642, 0
  %v663 = vsel %vm285, %v643, 0
  %v666 = vsel %vm168, %v658, 0
  %v669 = vsel %vm168, %v656, 0
  %671 = vmatprep.subr.bf16.mxu0 %v669
  %672 = vmatpush1.bf16.msra.mxu0 %v666
  %673 = vmatprep.subr.bf16.mxu0 0
  %674 = vmatpush1.bf16.msra.mxu0 0
  %675 = vmatprep.subr.bf16.mxu0 0
  %676 = vmatpush1.bf16.msra.mxu0 0
  %677 = vmatprep.subr.bf16.mxu0 0
  %678 = vmatpush1.bf16.msra.mxu0 0
  %679 = vmatprep.subr.bf16.mxu0 0
  %680 = vmatpush1.bf16.msra.mxu0 0
  %681 = vmatprep.subr.bf16.mxu0 0
  %682 = vmatpush1.bf16.msra.mxu0 0
  %683 = vmatprep.subr.bf16.mxu0 0
  %684 = vmatpush1.bf16.msra.mxu0 0
  %685 = vmatprep.subr.bf16.mxu0 0
  %686 = vmatpush1.bf16.msra.mxu0 0
  %687 = vmatprep.subr.bf16.mxu0 0
  %688 = vmatpush1.bf16.msra.mxu0 0
  %689 = vmatprep.subr.bf16.mxu0 0
  %690 = vmatpush1.bf16.msra.mxu0 0
  %691 = vmatprep.subr.bf16.mxu0 0
  %692 = vmatpush1.bf16.msra.mxu0 0
  %693 = vmatprep.subr.bf16.mxu0 0
  %694 = vmatpush1.bf16.msra.mxu0 0
  %695 = vmatprep.subr.bf16.mxu0 0
  %696 = vmatpush1.bf16.msra.mxu0 0
  %697 = vmatprep.subr.bf16.mxu0 0
  %698 = vmatpush1.bf16.msra.mxu0 0
  %699 = vmatprep.subr.bf16.mxu0 0
  %700 = vmatpush1.bf16.msra.mxu0 0
  %701 = vmatprep.subr.bf16.mxu0 0
  %702 = vmatpush1.bf16.msra.mxu0 0
  %703 = vmatprep.mubr.bf16.mxu0 0
  %704 = vmatmul.mubr.bf16.gmra.mrb[0].mxu0 %v660
  %v705 = vpop.f32.mrb[0].mxu0
  %v706 = vadd.f32 0.0, %v705
  %v707 = vpop.f32.mrb[0].mxu0
  %v708 = vadd.f32 0.0, %v707
  %v709 = vpop.f32.mrb[0].mxu0
  %v710 = vadd.f32 0.0, %v709
  %v711 = vpop.f32.mrb[0].mxu0
  %v712 = vadd.f32 0.0, %v711
  %713 = vmatprep.mubr.bf16.mxu0 0
  %714 = vmatmul.mubr.bf16.gmra.mrb[0].mxu0 %v663
  %v715 = vpop.f32.mrb[0].mxu0
  %v716 = vadd.f32 0.0, %v715
  %v717 = vpop.f32.mrb[0].mxu0
  %v718 = vadd.f32 0.0, %v717
  %v719 = vpop.f32.mrb[0].mxu0
  %v720 = vadd.f32 0.0, %v719
  %v721 = vpop.f32.mrb[0].mxu0
  %v722 = vadd.f32 0.0, %v721
  %723 = vdwg.mxu0
  %v724 = vadd.f32 %v625, %v706
  %v725 = vadd.f32 %v626, %v708
  %v726 = vadd.f32 %v627, %v710
  %v727 = vadd.f32 %v628, %v712
  %v728 = vadd.f32 %v629, %v716
  %v729 = vadd.f32 %v630, %v718
  %v730 = vadd.f32 %v631, %v720
  %v731 = vadd.f32 %v632, %v722
  %v732 = vld [vmem:[%s533] sm:$0xf]
  %v737 = vunpack.c.l.b16 %v212
  %v738 = vunpack.c.l.b16 %v213
  %v739 = vunpack.c.l.b16 %v214
  %v740 = vunpack.c.l.b16 %v215
  %v741 = vpack.c.b16 %v738, %v737
  %v742 = vpack.c.b16 %v740, %v739
  %v745 = vunpack.c.l.s4 1983009808
  %v746 = vunpack.c.0.s8 %v745
  %v747 = vlaneseq
  %v748 = vshrl.u32 %v747, 7
  %v749 = vsub.s32 %v746, %v748
  %v750 = vrot.slane %v732, %v749
  %v751 = vcombine.high %v750, %v750
  %752 = vrot.lane.b32.xlu0 %v750, 117
  %v753 = vpop.permute.xlu0 %752
  %754 = vrot.lane.b32.xlu0 %v751, 117
  %v755 = vpop.permute.xlu0 %754
  %v756 = vsel %vm657, %v753, %v755
  %v758 = vsel %vm285, %v741, 0
  %v761 = vsel %vm285, %v742, 0
  %v764 = vsel %vm168, %v756, 0
  %v767 = vsel %vm168, %v755, 0
  %769 = vmatprep.subr.bf16.mxu0 %v767
  %770 = vmatpush1.bf16.msra.mxu0 %v764
  %771 = vmatprep.subr.bf16.mxu0 0
  %772 = vmatpush1.bf16.msra.mxu0 0
  %773 = vmatprep.subr.bf16.mxu0 0
  %774 = vmatpush1.bf16.msra.mxu0 0
  %775 = vmatprep.subr.bf16.mxu0 0
  %776 = vmatpush1.bf16.msra.mxu0 0
  %777 = vmatprep.subr.bf16.mxu0 0
  %778 = vmatpush1.bf16.msra.mxu0 0
  %779 = vmatprep.subr.bf16.mxu0 0
  %780 = vmatpush1.bf16.msra.mxu0 0
  %781 = vmatprep.subr.bf16.mxu0 0
  %782 = vmatpush1.bf16.msra.mxu0 0
  %783 = vmatprep.subr.bf16.mxu0 0
  %784 = vmatpush1.bf16.msra.mxu0 0
  %785 = vmatprep.subr.bf16.mxu0 0
  %786 = vmatpush1.bf16.msra.mxu0 0
  %787 = vmatprep.subr.bf16.mxu0 0
  %788 = vmatpush1.bf16.msra.mxu0 0
  %789 = vmatprep.subr.bf16.mxu0 0
  %790 = vmatpush1.bf16.msra.mxu0 0
  %791 = vmatprep.subr.bf16.mxu0 0
  %792 = vmatpush1.bf16.msra.mxu0 0
  %793 = vmatprep.subr.bf16.mxu0 0
  %794 = vmatpush1.bf16.msra.mxu0 0
  %795 = vmatprep.subr.bf16.mxu0 0
  %796 = vmatpush1.bf16.msra.mxu0 0
  %797 = vmatprep.subr.bf16.mxu0 0
  %798 = vmatpush1.bf16.msra.mxu0 0
  %799 = vmatprep.subr.bf16.mxu0 0
  %800 = vmatpush1.bf16.msra.mxu0 0
  %801 = vmatprep.mubr.bf16.mxu0 0
  %802 = vmatmul.mubr.bf16.gmra.mrb[0].mxu0 %v758
  %v803 = vpop.f32.mrb[0].mxu0
  %v804 = vadd.f32 0.0, %v803
  %v805 = vpop.f32.mrb[0].mxu0
  %v806 = vadd.f32 0.0, %v805
  %v807 = vpop.f32.mrb[0].mxu0
  %v808 = vadd.f32 0.0, %v807
  %v809 = vpop.f32.mrb[0].mxu0
  %v810 = vadd.f32 0.0, %v809
  %811 = vmatprep.mubr.bf16.mxu0 0
  %812 = vmatmul.mubr.bf16.gmra.mrb[0].mxu0 %v761
  %v813 = vpop.f32.mrb[0].mxu0
  %v814 = vadd.f32 0.0, %v813
  %v815 = vpop.f32.mrb[0].mxu0
  %v816 = vadd.f32 0.0, %v815
  %v817 = vpop.f32.mrb[0].mxu0
  %v818 = vadd.f32 0.0, %v817
  %v819 = vpop.f32.mrb[0].mxu0
  %v820 = vadd.f32 0.0, %v819
  %821 = vdwg.mxu0
  %v822 = vadd.f32 %v724, %v804
  %v823 = vadd.f32 %v725, %v806
  %v824 = vadd.f32 %v726, %v808
  %v825 = vadd.f32 %v727, %v810
  %v826 = vadd.f32 %v728, %v814
  %v827 = vadd.f32 %v729, %v816
  %v828 = vadd.f32 %v730, %v818
  %v829 = vadd.f32 %v731, %v820
  %v830 = vld [vmem:[%s256] sm:$0xf]
  %v835 = vunpack.c.l.b16 %v216
  %v836 = vunpack.c.l.b16 %v217
  %v837 = vunpack.c.l.b16 %v218
  %v838 = vunpack.c.l.b16 %v219
  %v839 = vpack.c.b16 %v836, %v835
  %v840 = vpack.c.b16 %v838, %v837
  %v843 = vunpack.c.l.s4 1983009808
  %v844 = vunpack.c.0.s8 %v843
  %v845 = vlaneseq
  %v846 = vshrl.u32 %v845, 7
  %v847 = vsub.s32 %v844, %v846
  %v848 = vrot.slane %v830, %v847
  %v849 = vcombine.high %v848, %v848
  %850 = vrot.lane.b32.xlu0 %v848, 118
  %v851 = vpop.permute.xlu0 %850
  %852 = vrot.lane.b32.xlu0 %v849, 118
  %v853 = vpop.permute.xlu0 %852
  %v854 = vsel %vm558, %v851, %v853
  %v856 = vsel %vm285, %v839, 0
  %v859 = vsel %vm285, %v840, 0
  %v862 = vsel %vm168, %v854, 0
  %v865 = vsel %vm168, %v853, 0
  %867 = vmatprep.subr.bf16.mxu0 %v865
  %868 = vmatpush1.bf16.msra.mxu0 %v862
  %869 = vmatprep.subr.bf16.mxu0 0
  %870 = vmatpush1.bf16.msra.mxu0 0
  %871 = vmatprep.subr.bf16.mxu0 0
  %872 = vmatpush1.bf16.msra.mxu0 0
  %873 = vmatprep.subr.bf16.mxu0 0
  %874 = vmatpush1.bf16.msra.mxu0 0
  %875 = vmatprep.subr.bf16.mxu0 0
  %876 = vmatpush1.bf16.msra.mxu0 0
  %877 = vmatprep.subr.bf16.mxu0 0
  %878 = vmatpush1.bf16.msra.mxu0 0
  %879 = vmatprep.subr.bf16.mxu0 0
  %880 = vmatpush1.bf16.msra.mxu0 0
  %881 = vmatprep.subr.bf16.mxu0 0
  %882 = vmatpush1.bf16.msra.mxu0 0
  %883 = vmatprep.subr.bf16.mxu0 0
  %884 = vmatpush1.bf16.msra.mxu0 0
  %885 = vmatprep.subr.bf16.mxu0 0
  %886 = vmatpush1.bf16.msra.mxu0 0
  %887 = vmatprep.subr.bf16.mxu0 0
  %888 = vmatpush1.bf16.msra.mxu0 0
  %889 = vmatprep.subr.bf16.mxu0 0
  %890 = vmatpush1.bf16.msra.mxu0 0
  %891 = vmatprep.subr.bf16.mxu0 0
  %892 = vmatpush1.bf16.msra.mxu0 0
  %893 = vmatprep.subr.bf16.mxu0 0
  %894 = vmatpush1.bf16.msra.mxu0 0
  %895 = vmatprep.subr.bf16.mxu0 0
  %896 = vmatpush1.bf16.msra.mxu0 0
  %897 = vmatprep.subr.bf16.mxu0 0
  %898 = vmatpush1.bf16.msra.mxu0 0
  %899 = vmatprep.mubr.bf16.mxu0 0
  %900 = vmatmul.mubr.bf16.gmra.mrb[0].mxu0 %v856
  %v901 = vpop.f32.mrb[0].mxu0
  %v902 = vadd.f32 0.0, %v901
  %v903 = vpop.f32.mrb[0].mxu0
  %v904 = vadd.f32 0.0, %v903
  %v905 = vpop.f32.mrb[0].mxu0
  %v906 = vadd.f32 0.0, %v905
  %v907 = vpop.f32.mrb[0].mxu0
  %v908 = vadd.f32 0.0, %v907
  %909 = vmatprep.mubr.bf16.mxu0 0
  %910 = vmatmul.mubr.bf16.gmra.mrb[0].mxu0 %v859
  %v911 = vpop.f32.mrb[0].mxu0
  %v912 = vadd.f32 0.0, %v911
  %v913 = vpop.f32.mrb[0].mxu0
  %v914 = vadd.f32 0.0, %v913
  %v915 = vpop.f32.mrb[0].mxu0
  %v916 = vadd.f32 0.0, %v915
  %v917 = vpop.f32.mrb[0].mxu0
  %v918 = vadd.f32 0.0, %v917
  %919 = vdwg.mxu0
  %v920 = vadd.f32 %v822, %v902
  %v921 = vadd.f32 %v823, %v904
  %v922 = vadd.f32 %v824, %v906
  %v923 = vadd.f32 %v825, %v908
  %v924 = vadd.f32 %v826, %v912
  %v925 = vadd.f32 %v827, %v914
  %v926 = vadd.f32 %v828, %v916
  %v927 = vadd.f32 %v829, %v918
  %v928 = vld [vmem:[%s258] sm:$0xf]
  %v933 = vunpack.c.l.b16 %v220
  %v934 = vunpack.c.l.b16 %v221
  %v935 = vunpack.c.l.b16 %v222
  %v936 = vunpack.c.l.b16 %v223
  %v937 = vpack.c.b16 %v934, %v933
  %v938 = vpack.c.b16 %v936, %v935
  %v941 = vunpack.c.l.s4 1983009808
  %v942 = vunpack.c.0.s8 %v941
  %v943 = vlaneseq
  %v944 = vshrl.u32 %v943, 7
  %v945 = vsub.s32 %v942, %v944
  %v946 = vrot.slane %v928, %v945
  %v947 = vcombine.high %v946, %v946
  %948 = vrot.lane.b32.xlu0 %v946, 117
  %v949 = vpop.permute.xlu0 %948
  %950 = vrot.lane.b32.xlu0 %v947, 117
  %v951 = vpop.permute.xlu0 %950
  %v952 = vsel %vm657, %v949, %v951
  %v954 = vsel %vm285, %v937, 0
  %v957 = vsel %vm285, %v938, 0
  %v960 = vsel %vm168, %v952, 0
  %v963 = vsel %vm168, %v951, 0
  %965 = vmatprep.subr.bf16.mxu0 %v963
  %966 = vmatpush1.bf16.msra.mxu0 %v960
  %967 = vmatprep.subr.bf16.mxu0 0
  %968 = vmatpush1.bf16.msra.mxu0 0
  %969 = vmatprep.subr.bf16.mxu0 0
  %970 = vmatpush1.bf16.msra.mxu0 0
  %971 = vmatprep.subr.bf16.mxu0 0
  %972 = vmatpush1.bf16.msra.mxu0 0
  %973 = vmatprep.subr.bf16.mxu0 0
  %974 = vmatpush1.bf16.msra.mxu0 0
  %975 = vmatprep.subr.bf16.mxu0 0
  %976 = vmatpush1.bf16.msra.mxu0 0
  %977 = vmatprep.subr.bf16.mxu0 0
  %978 = vmatpush1.bf16.msra.mxu0 0
  %979 = vmatprep.subr.bf16.mxu0 0
  %980 = vmatpush1.bf16.msra.mxu0 0
  %981 = vmatprep.subr.bf16.mxu0 0
  %982 = vmatpush1.bf16.msra.mxu0 0
  %983 = vmatprep.subr.bf16.mxu0 0
  %984 = vmatpush1.bf16.msra.mxu0 0
  %985 = vmatprep.subr.bf16.mxu0 0
  %986 = vmatpush1.bf16.msra.mxu0 0
  %987 = vmatprep.subr.bf16.mxu0 0
  %988 = vmatpush1.bf16.msra.mxu0 0
  %989 = vmatprep.subr.bf16.mxu0 0
  %990 = vmatpush1.bf16.msra.mxu0 0
  %991 = vmatprep.subr.bf16.mxu0 0
  %992 = vmatpush1.bf16.msra.mxu0 0
  %993 = vmatprep.subr.bf16.mxu0 0
  %994 = vmatpush1.bf16.msra.mxu0 0
  %995 = vmatprep.subr.bf16.mxu0 0
  %996 = vmatpush1.bf16.msra.mxu0 0
  %997 = vmatprep.mubr.bf16.mxu0 0
  %998 = vmatmul.mubr.bf16.gmra.mrb[0].mxu0 %v954
  %v999 = vpop.f32.mrb[0].mxu0
  %v1000 = vadd.f32 0.0, %v999
  %v1001 = vpop.f32.mrb[0].mxu0
  %v1002 = vadd.f32 0.0, %v1001
  %v1003 = vpop.f32.mrb[0].mxu0
  %v1004 = vadd.f32 0.0, %v1003
  %v1005 = vpop.f32.mrb[0].mxu0
  %v1006 = vadd.f32 0.0, %v1005
  %1007 = vmatprep.mubr.bf16.mxu0 0
  %1008 = vmatmul.mubr.bf16.gmra.mrb[0].mxu0 %v957
  %v1009 = vpop.f32.mrb[0].mxu0
  %v1010 = vadd.f32 0.0, %v1009
  %v1011 = vpop.f32.mrb[0].mxu0
  %v1012 = vadd.f32 0.0, %v1011
  %v1013 = vpop.f32.mrb[0].mxu0
  %v1014 = vadd.f32 0.0, %v1013
  %v1015 = vpop.f32.mrb[0].mxu0
  %v1016 = vadd.f32 0.0, %v1015
  %1017 = vdwg.mxu0
  %v1018 = vadd.f32 %v920, %v1000
  %v1019 = vadd.f32 %v921, %v1002
  %v1020 = vadd.f32 %v922, %v1004
  %v1021 = vadd.f32 %v923, %v1006
  %v1022 = vadd.f32 %v924, %v1010
  %v1023 = vadd.f32 %v925, %v1012
  %v1024 = vadd.f32 %v926, %v1014
  %v1025 = vadd.f32 %v927, %v1016
  %v1026 = vld [vmem:[%s256] sm:$0xf]
  %v1031 = vunpack.c.l.b16 %v224
  %v1032 = vunpack.c.l.b16 %v225
  %v1033 = vunpack.c.l.b16 %v226
  %v1034 = vunpack.c.l.b16 %v227
  %v1035 = vpack.c.b16 %v1032, %v1031
  %v1036 = vpack.c.b16 %v1034, %v1033
  %v1039 = vunpack.c.l.s4 1983009808
  %v1040 = vunpack.c.0.s8 %v1039
  %v1041 = vlaneseq
  %v1042 = vshrl.u32 %v1041, 7
  %v1043 = vsub.s32 %v1040, %v1042
  %v1044 = vrot.slane %v1026, %v1043
  %v1045 = vcombine.high %v1044, %v1044
  %1046 = vrot.lane.b32.xlu0 %v1044, 117
  %v1047 = vpop.permute.xlu0 %1046
  %1048 = vrot.lane.b32.xlu0 %v1045, 117
  %v1049 = vpop.permute.xlu0 %1048
  %v1050 = vsel %vm657, %v1047, %v1049
  %v1052 = vsel %vm285, %v1035, 0
  %v1055 = vsel %vm285, %v1036, 0
  %v1058 = vsel %vm168, %v1050, 0
  %v1061 = vsel %vm168, %v1049, 0
  %1063 = vmatprep.subr.bf16.mxu0 %v1061
  %1064 = vmatpush1.bf16.msra.mxu0 %v1058
  %1065 = vmatprep.subr.bf16.mxu0 0
  %1066 = vmatpush1.bf16.msra.mxu0 0
  %1067 = vmatprep.subr.bf16.mxu0 0
  %1068 = vmatpush1.bf16.msra.mxu0 0
  %1069 = vmatprep.subr.bf16.mxu0 0
  %1070 = vmatpush1.bf16.msra.mxu0 0
  %1071 = vmatprep.subr.bf16.mxu0 0
  %1072 = vmatpush1.bf16.msra.mxu0 0
  %1073 = vmatprep.subr.bf16.mxu0 0
  %1074 = vmatpush1.bf16.msra.mxu0 0
  %1075 = vmatprep.subr.bf16.mxu0 0
  %1076 = vmatpush1.bf16.msra.mxu0 0
  %1077 = vmatprep.subr.bf16.mxu0 0
  %1078 = vmatpush1.bf16.msra.mxu0 0
  %1079 = vmatprep.subr.bf16.mxu0 0
  %1080 = vmatpush1.bf16.msra.mxu0 0
  %1081 = vmatprep.subr.bf16.mxu0 0
  %1082 = vmatpush1.bf16.msra.mxu0 0
  %1083 = vmatprep.subr.bf16.mxu0 0
  %1084 = vmatpush1.bf16.msra.mxu0 0
  %1085 = vmatprep.subr.bf16.mxu0 0
  %1086 = vmatpush1.bf16.msra.mxu0 0
  %1087 = vmatprep.subr.bf16.mxu0 0
  %1088 = vmatpush1.bf16.msra.mxu0 0
  %1089 = vmatprep.subr.bf16.mxu0 0
  %1090 = vmatpush1.bf16.msra.mxu0 0
  %1091 = vmatprep.subr.bf16.mxu0 0
  %1092 = vmatpush1.bf16.msra.mxu0 0
  %1093 = vmatprep.subr.bf16.mxu0 0
  %1094 = vmatpush1.bf16.msra.mxu0 0
  %1095 = vmatprep.mubr.bf16.mxu0 0
  %1096 = vmatmul.mubr.bf16.gmra.mrb[0].mxu0 %v1052
  %v1097 = vpop.f32.mrb[0].mxu0
  %v1098 = vadd.f32 0.0, %v1097
  %v1099 = vpop.f32.mrb[0].mxu0
  %v1100 = vadd.f32 0.0, %v1099
  %v1101 = vpop.f32.mrb[0].mxu0
  %v1102 = vadd.f32 0.0, %v1101
  %v1103 = vpop.f32.mrb[0].mxu0
  %v1104 = vadd.f32 0.0, %v1103
  %1105 = vmatprep.mubr.bf16.mxu0 0
  %1106 = vmatmul.mubr.bf16.gmra.mrb[0].mxu0 %v1055
  %v1107 = vpop.f32.mrb[0].mxu0
  %v1108 = vadd.f32 0.0, %v1107
  %v1109 = vpop.f32.mrb[0].mxu0
  %v1110 = vadd.f32 0.0, %v1109
  %v1111 = vpop.f32.mrb[0].mxu0
  %v1112 = vadd.f32 0.0, %v1111
  %v1113 = vpop.f32.mrb[0].mxu0
  %v1114 = vadd.f32 0.0, %v1113
  %1115 = vdwg.mxu0
  %v1116 = vadd.f32 %v1018, %v1098
  %v1117 = vadd.f32 %v1019, %v1100
  %v1118 = vadd.f32 %v1020, %v1102
  %v1119 = vadd.f32 %v1021, %v1104
  %v1120 = vadd.f32 %v1022, %v1108
  %v1121 = vadd.f32 %v1023, %v1110
  %v1122 = vadd.f32 %v1024, %v1112
  %v1123 = vadd.f32 %v1025, %v1114
  %1125 = vset.pattern.permute.xlu0 0
  %1126 = vperm.xlu0 %1125, %v244
  %v1127 = vpop.permute.xlu0 %1126
  %1130 = vset.pattern.permute.xlu0 0
  %1131 = vperm.xlu0 %1130, %v245
  %v1132 = vpop.permute.xlu0 %1131
  %1135 = vset.pattern.permute.xlu0 0
  %1136 = vperm.xlu0 %1135, %v246
  %v1137 = vpop.permute.xlu0 %1136
  %1140 = vset.pattern.permute.xlu0 0
  %1141 = vperm.xlu0 %1140, %v247
  %v1142 = vpop.permute.xlu0 %1141
  %v1144 = vadd.f32 %v1116, %v1127
  %v1145 = vadd.f32 %v1117, %v1127
  %v1146 = vadd.f32 %v1118, %v1132
  %v1147 = vadd.f32 %v1119, %v1132
  %v1148 = vadd.f32 %v1120, %v1137
  %v1149 = vadd.f32 %v1121, %v1137
  %v1150 = vadd.f32 %v1122, %v1142
  %v1151 = vadd.f32 %v1123, %v1142
  %1152 = vst [vmem:[%s10] sm:$0xff] %v1144
  %vm1153 = vcmask 588800
  %1154 = vst.msk [vmem:[%s10 + $0x8] sm:$0xff] %vm1153, %v1145
  %1155 = vst [vmem:[%s10 + $0x10] sm:$0xff] %v1146
  %1156 = vst.msk [vmem:[%s10 + $0x18] sm:$0xff] %vm1153, %v1147
  %1157 = vst [vmem:[%s10 + $0x20] sm:$0xff] %v1148
  %1158 = vst.msk [vmem:[%s10 + $0x28] sm:$0xff] %vm1153, %v1149
  %1159 = vst [vmem:[%s10 + $0x30] sm:$0xff] %v1150
  %1160 = vst.msk [vmem:[%s10 + $0x38] sm:$0xff] %vm1153, %v1151
  %1162 = vset.pattern.permute.xlu0 0
  %1163 = vperm.xlu0 %1162, %v248
  %v1164 = vpop.permute.xlu0 %1163
  %1167 = vset.pattern.permute.xlu0 0
  %1168 = vperm.xlu0 %1167, %v249
  %v1169 = vpop.permute.xlu0 %1168
  %1172 = vset.pattern.permute.xlu0 0
  %1173 = vperm.xlu0 %1172, %v250
  %v1174 = vpop.permute.xlu0 %1173
  %1177 = vset.pattern.permute.xlu0 0
  %1178 = vperm.xlu0 %1177, %v251
  %v1179 = vpop.permute.xlu0 %1178
  %v1181 = vmul.f32 %v1144, %v1164
  %v1182 = vmul.f32 %v1145, %v1164
  %v1183 = vmul.f32 %v1146, %v1169
  %v1184 = vmul.f32 %v1147, %v1169
  %v1185 = vmul.f32 %v1148, %v1174
  %v1186 = vmul.f32 %v1149, %v1174
  %v1187 = vmul.f32 %v1150, %v1179
  %v1188 = vmul.f32 %v1151, %v1179
  %1190 = vset.pattern.permute.xlu0 0
  %1191 = vperm.xlu0 %1190, %v252
  %v1192 = vpop.permute.xlu0 %1191
  %1195 = vset.pattern.permute.xlu0 0
  %1196 = vperm.xlu0 %1195, %v253
  %v1197 = vpop.permute.xlu0 %1196
  %1200 = vset.pattern.permute.xlu0 0
  %1201 = vperm.xlu0 %1200, %v254
  %v1202 = vpop.permute.xlu0 %1201
  %1205 = vset.pattern.permute.xlu0 0
  %1206 = vperm.xlu0 %1205, %v255
  %v1207 = vpop.permute.xlu0 %1206
  %v1209 = vadd.f32 %v1181, %v1192
  %v1210 = vadd.f32 %v1182, %v1192
  %v1211 = vadd.f32 %v1183, %v1197
  %v1212 = vadd.f32 %v1184, %v1197
  %v1213 = vadd.f32 %v1185, %v1202
  %v1214 = vadd.f32 %v1186, %v1202
  %v1215 = vadd.f32 %v1187, %v1207
  %v1216 = vadd.f32 %v1188, %v1207
  %vm1217 = vcmp.ge.f32.partialorder %v1209, 0.0
  %vm1218 = vcmp.ge.f32.partialorder %v1210, 0.0
  %vm1219 = vcmp.ge.f32.partialorder %v1211, 0.0
  %vm1220 = vcmp.ge.f32.partialorder %v1212, 0.0
  %vm1221 = vcmp.ge.f32.partialorder %v1213, 0.0
  %vm1222 = vcmp.ge.f32.partialorder %v1214, 0.0
  %vm1223 = vcmp.ge.f32.partialorder %v1215, 0.0
  %vm1224 = vcmp.ge.f32.partialorder %v1216, 0.0
  %v1225 = vmul.f32 %v1209, 0.01
  %v1226 = vmul.f32 %v1210, 0.01
  %v1227 = vmul.f32 %v1211, 0.01
  %v1228 = vmul.f32 %v1212, 0.01
  %v1229 = vmul.f32 %v1213, 0.01
  %v1230 = vmul.f32 %v1214, 0.01
  %v1231 = vmul.f32 %v1215, 0.01
  %v1232 = vmul.f32 %v1216, 0.01
  %v1233 = vsel %vm1217, %v1209, %v1225
  %v1234 = vsel %vm1218, %v1210, %v1226
  %v1235 = vsel %vm1219, %v1211, %v1227
  %v1236 = vsel %vm1220, %v1212, %v1228
  %v1237 = vsel %vm1221, %v1213, %v1229
  %v1238 = vsel %vm1222, %v1214, %v1230
  %v1239 = vsel %vm1223, %v1215, %v1231
  %v1240 = vsel %vm1224, %v1216, %v1232
  %1241 = vrot.lane.b32.xlu0 %v93, 117
  %v1242 = vpop.permute.xlu0 %1241
  %1243 = vrot.lane.b32.xlu0 %v97, 117
  %v1244 = vpop.permute.xlu0 %1243
  %vm1245 = vcmask 957440
  %v1246 = vsel %vm1245, %v1242, %v1244
  %v1249 = vmul.f32 %v1233, %v1246
  %v1250 = vmul.f32 %v1234, %v1244
  %v1251 = vmul.f32 %v1235, %v1246
  %v1252 = vmul.f32 %v1236, %v1244
  %v1253 = vmul.f32 %v1237, %v1246
  %v1254 = vmul.f32 %v1238, %v1244
  %v1255 = vmul.f32 %v1239, %v1246
  %v1256 = vmul.f32 %v1240, %v1244
  %v1257 = vpack.c.bf16 %v1251, %v1249
  %v1258 = vpack.c.bf16 %v1252, %v1250
  %v1259 = vpack.c.bf16 %v1255, %v1253
  %v1260 = vpack.c.bf16 %v1256, %v1254
  %1261 = vst [vmem:[#allocation3 + $0x8] sm:$0xff] %v1257
  %1262 = vst.msk [vmem:[#allocation3 + $0x10] sm:$0xff] %vm1153, %v1258
  %1263 = vst [vmem:[#allocation3 + $0x20] sm:$0xff] %v1259
  %1264 = vst.msk [vmem:[#allocation3 + $0x28] sm:$0xff] %vm1153, %v1260
  %v1265 = vld [vmem:[%s258] sm:$0xf]
  %v1266 = vld [vmem:[%s256] sm:$0xf]
  %v1269 = vunpack.c.l.s4 1983009808
  %v1270 = vunpack.c.0.s8 %v1269
  %v1271 = vlaneseq
  %v1272 = vshrl.u32 %v1271, 7
  %v1273 = vsub.s32 %v1270, %v1272
  %v1274 = vrot.slane %v1266, %v1273
  %v1275 = vcombine.high %v1274, %v1274
  %1276 = vrot.lane.b32.xlu0 %v1274, 127
  %v1277 = vpop.permute.xlu0 %1276
  %1278 = vrot.lane.b32.xlu0 %v1275, 127
  %v1279 = vpop.permute.xlu0 %1278
  %v1280 = vsel %vm283, %v1277, %v1279
  %v1282 = vsel %vm168, %v1280, 0
  %v1285 = vsel %vm168, %v1279, 0
  %1287 = vmatprep.subr.bf16.mxu0 %v1285
  %1288 = vmatpush1.bf16.msra.mxu0 %v1282
  %1289 = vmatprep.subr.bf16.mxu0 0
  %1290 = vmatpush1.bf16.msra.mxu0 0
  %1291 = vmatprep.subr.bf16.mxu0 0
  %1292 = vmatpush1.bf16.msra.mxu0 0
  %1293 = vmatprep.subr.bf16.mxu0 0
  %1294 = vmatpush1.bf16.msra.mxu0 0
  %1295 = vmatprep.subr.bf16.mxu0 0
  %1296 = vmatpush1.bf16.msra.mxu0 0
  %1297 = vmatprep.subr.bf16.mxu0 0
  %1298 = vmatpush1.bf16.msra.mxu0 0
  %1299 = vmatprep.subr.bf16.mxu0 0
  %1300 = vmatpush1.bf16.msra.mxu0 0
  %1301 = vmatprep.subr.bf16.mxu0 0
  %1302 = vmatpush1.bf16.msra.mxu0 0
  %1303 = vmatprep.subr.bf16.mxu0 0
  %1304 = vmatpush1.bf16.msra.mxu0 0
  %1305 = vmatprep.subr.bf16.mxu0 0
  %1306 = vmatpush1.bf16.msra.mxu0 0
  %1307 = vmatprep.subr.bf16.mxu0 0
  %1308 = vmatpush1.bf16.msra.mxu0 0
  %1309 = vmatprep.subr.bf16.mxu0 0
  %1310 = vmatpush1.bf16.msra.mxu0 0
  %1311 = vmatprep.subr.bf16.mxu0 0
  %1312 = vmatpush1.bf16.msra.mxu0 0
  %1313 = vmatprep.subr.bf16.mxu0 0
  %1314 = vmatpush1.bf16.msra.mxu0 0
  %1315 = vmatprep.subr.bf16.mxu0 0
  %1316 = vmatpush1.bf16.msra.mxu0 0
  %1317 = vmatprep.subr.bf16.mxu0 0
  %1318 = vmatpush1.bf16.msra.mxu0 0
  %1319 = vmatprep.mubr.bf16.mxu0 0
  %1320 = vmatmul.mubr.bf16.gmra.mrb[0].mxu0 %v287
  %v1321 = vpop.f32.mrb[0].mxu0
  %v1322 = vadd.f32 0.0, %v1321
  %v1323 = vpop.f32.mrb[0].mxu0
  %v1324 = vadd.f32 0.0, %v1323
  %v1325 = vpop.f32.mrb[0].mxu0
  %v1326 = vadd.f32 0.0, %v1325
  %v1327 = vpop.f32.mrb[0].mxu0
  %v1328 = vadd.f32 0.0, %v1327
  %1329 = vmatprep.mubr.bf16.mxu0 0
  %1330 = vmatmul.mubr.bf16.gmra.mrb[0].mxu0 %v290
  %v1331 = vpop.f32.mrb[0].mxu0
  %v1332 = vadd.f32 0.0, %v1331
  %v1333 = vpop.f32.mrb[0].mxu0
  %v1334 = vadd.f32 0.0, %v1333
  %v1335 = vpop.f32.mrb[0].mxu0
  %v1336 = vadd.f32 0.0, %v1335
  %v1337 = vpop.f32.mrb[0].mxu0
  %v1338 = vadd.f32 0.0, %v1337
  %1339 = vdwg.mxu0
  %v1342 = vunpack.c.l.s4 1983009808
  %v1343 = vunpack.c.0.s8 %v1342
  %v1344 = vlaneseq
  %v1345 = vshrl.u32 %v1344, 7
  %v1346 = vsub.s32 %v1343, %v1345
  %v1347 = vrot.slane %v1265, %v1346
  %v1348 = vcombine.high %v1347, %v1347
  %1349 = vrot.lane.b32.xlu0 %v1347, 127
  %v1350 = vpop.permute.xlu0 %1349
  %1351 = vrot.lane.b32.xlu0 %v1348, 127
  %v1352 = vpop.permute.xlu0 %1351
  %v1353 = vsel %vm283, %v1350, %v1352
  %v1355 = vsel %vm168, %v1353, 0
  %v1358 = vsel %vm168, %v1352, 0
  %1360 = vmatprep.subr.bf16.mxu0 %v1358
  %1361 = vmatpush1.bf16.msra.mxu0 %v1355
  %1362 = vmatprep.subr.bf16.mxu0 0
  %1363 = vmatpush1.bf16.msra.mxu0 0
  %1364 = vmatprep.subr.bf16.mxu0 0
  %1365 = vmatpush1.bf16.msra.mxu0 0
  %1366 = vmatprep.subr.bf16.mxu0 0
  %1367 = vmatpush1.bf16.msra.mxu0 0
  %1368 = vmatprep.subr.bf16.mxu0 0
  %1369 = vmatpush1.bf16.msra.mxu0 0
  %1370 = vmatprep.subr.bf16.mxu0 0
  %1371 = vmatpush1.bf16.msra.mxu0 0
  %1372 = vmatprep.subr.bf16.mxu0 0
  %1373 = vmatpush1.bf16.msra.mxu0 0
  %1374 = vmatprep.subr.bf16.mxu0 0
  %1375 = vmatpush1.bf16.msra.mxu0 0
  %1376 = vmatprep.subr.bf16.mxu0 0
  %1377 = vmatpush1.bf16.msra.mxu0 0
  %1378 = vmatprep.subr.bf16.mxu0 0
  %1379 = vmatpush1.bf16.msra.mxu0 0
  %1380 = vmatprep.subr.bf16.mxu0 0
  %1381 = vmatpush1.bf16.msra.mxu0 0
  %1382 = vmatprep.subr.bf16.mxu0 0
  %1383 = vmatpush1.bf16.msra.mxu0 0
  %1384 = vmatprep.subr.bf16.mxu0 0
  %1385 = vmatpush1.bf16.msra.mxu0 0
  %1386 = vmatprep.subr.bf16.mxu0 0
  %1387 = vmatpush1.bf16.msra.mxu0 0
  %1388 = vmatprep.subr.bf16.mxu0 0
  %1389 = vmatpush1.bf16.msra.mxu0 0
  %1390 = vmatprep.subr.bf16.mxu0 0
  %1391 = vmatpush1.bf16.msra.mxu0 0
  %1392 = vmatprep.mubr.bf16.mxu0 0
  %1393 = vmatmul.mubr.bf16.gmra.mrb[0].mxu0 %v371
  %v1394 = vpop.f32.mrb[0].mxu0
  %v1395 = vadd.f32 %v1322, %v1394
  %v1396 = vpop.f32.mrb[0].mxu0
  %v1397 = vadd.f32 %v1324, %v1396
  %v1398 = vpop.f32.mrb[0].mxu0
  %v1399 = vadd.f32 %v1326, %v1398
  %v1400 = vpop.f32.mrb[0].mxu0
  %v1401 = vadd.f32 %v1328, %v1400
  %1402 = vmatprep.mubr.bf16.mxu0 0
  %1403 = vmatmul.mubr.bf16.gmra.mrb[0].mxu0 %v374
  %v1404 = vpop.f32.mrb[0].mxu0
  %v1405 = vadd.f32 %v1332, %v1404
  %v1406 = vpop.f32.mrb[0].mxu0
  %v1407 = vadd.f32 %v1334, %v1406
  %v1408 = vpop.f32.mrb[0].mxu0
  %v1409 = vadd.f32 %v1336, %v1408
  %v1410 = vpop.f32.mrb[0].mxu0
  %v1411 = vadd.f32 %v1338, %v1410
  %1412 = vdwg.mxu0
  %v1413 = vld [vmem:[%s258] sm:$0xf]
  %v1416 = vunpack.c.l.s4 1983009808
  %v1417 = vunpack.c.0.s8 %v1416
  %v1418 = vlaneseq
  %v1419 = vshrl.u32 %v1418, 7
  %v1420 = vsub.s32 %v1417, %v1419
  %v1421 = vrot.slane %v1413, %v1420
  %v1422 = vcombine.high %v1421, %v1421
  %1423 = vrot.lane.b32.xlu0 %v1421, 126
  %v1424 = vpop.permute.xlu0 %1423
  %1425 = vrot.lane.b32.xlu0 %v1422, 126
  %v1426 = vpop.permute.xlu0 %1425
  %vm1427 = vcmask 1031168
  %v1428 = vsel %vm1427, %v1424, %v1426
  %v1430 = vsel %vm168, %v1428, 0
  %v1433 = vsel %vm168, %v1426, 0
  %1435 = vmatprep.subr.bf16.mxu0 %v1433
  %1436 = vmatpush1.bf16.msra.mxu0 %v1430
  %1437 = vmatprep.subr.bf16.mxu0 0
  %1438 = vmatpush1.bf16.msra.mxu0 0
  %1439 = vmatprep.subr.bf16.mxu0 0
  %1440 = vmatpush1.bf16.msra.mxu0 0
  %1441 = vmatprep.subr.bf16.mxu0 0
  %1442 = vmatpush1.bf16.msra.mxu0 0
  %1443 = vmatprep.subr.bf16.mxu0 0
  %1444 = vmatpush1.bf16.msra.mxu0 0
  %1445 = vmatprep.subr.bf16.mxu0 0
  %1446 = vmatpush1.bf16.msra.mxu0 0
  %1447 = vmatprep.subr.bf16.mxu0 0
  %1448 = vmatpush1.bf16.msra.mxu0 0
  %1449 = vmatprep.subr.bf16.mxu0 0
  %1450 = vmatpush1.bf16.msra.mxu0 0
  %1451 = vmatprep.subr.bf16.mxu0 0
  %1452 = vmatpush1.bf16.msra.mxu0 0
  %1453 = vmatprep.subr.bf16.mxu0 0
  %1454 = vmatpush1.bf16.msra.mxu0 0
  %1455 = vmatprep.subr.bf16.mxu0 0
  %1456 = vmatpush1.bf16.msra.mxu0 0
  %1457 = vmatprep.subr.bf16.mxu0 0
  %1458 = vmatpush1.bf16.msra.mxu0 0
  %1459 = vmatprep.subr.bf16.mxu0 0
  %1460 = vmatpush1.bf16.msra.mxu0 0
  %1461 = vmatprep.subr.bf16.mxu0 0
  %1462 = vmatpush1.bf16.msra.mxu0 0
  %1463 = vmatprep.subr.bf16.mxu0 0
  %1464 = vmatpush1.bf16.msra.mxu0 0
  %1465 = vmatprep.subr.bf16.mxu0 0
  %1466 = vmatpush1.bf16.msra.mxu0 0
  %1467 = vmatprep.mubr.bf16.mxu0 0
  %1468 = vmatmul.mubr.bf16.gmra.mrb[0].mxu0 %v461
  %v1469 = vpop.f32.mrb[0].mxu0
  %v1470 = vadd.f32 0.0, %v1469
  %v1471 = vpop.f32.mrb[0].mxu0
  %v1472 = vadd.f32 0.0, %v1471
  %v1473 = vpop.f32.mrb[0].mxu0
  %v1474 = vadd.f32 0.0, %v1473
  %v1475 = vpop.f32.mrb[0].mxu0
  %v1476 = vadd.f32 0.0, %v1475
  %1477 = vmatprep.mubr.bf16.mxu0 0
  %1478 = vmatmul.mubr.bf16.gmra.mrb[0].mxu0 %v464
  %v1479 = vpop.f32.mrb[0].mxu0
  %v1480 = vadd.f32 0.0, %v1479
  %v1481 = vpop.f32.mrb[0].mxu0
  %v1482 = vadd.f32 0.0, %v1481
  %v1483 = vpop.f32.mrb[0].mxu0
  %v1484 = vadd.f32 0.0, %v1483
  %v1485 = vpop.f32.mrb[0].mxu0
  %v1486 = vadd.f32 0.0, %v1485
  %1487 = vdwg.mxu0
  %v1488 = vadd.f32 %v1395, %v1470
  %v1489 = vadd.f32 %v1397, %v1472
  %v1490 = vadd.f32 %v1399, %v1474
  %v1491 = vadd.f32 %v1401, %v1476
  %v1492 = vadd.f32 %v1405, %v1480
  %v1493 = vadd.f32 %v1407, %v1482
  %v1494 = vadd.f32 %v1409, %v1484
  %v1495 = vadd.f32 %v1411, %v1486
  %v1496 = vld [vmem:[#allocation2] sm:$0xf]
  %v1499 = vunpack.c.l.s4 1983009808
  %v1500 = vunpack.c.0.s8 %v1499
  %v1501 = vlaneseq
  %v1502 = vshrl.u32 %v1501, 7
  %v1503 = vsub.s32 %v1500, %v1502
  %v1504 = vrot.slane %v1496, %v1503
  %v1505 = vcombine.high %v1504, %v1504
  %1506 = vrot.lane.b32.xlu0 %v1504, 117
  %v1507 = vpop.permute.xlu0 %1506
  %1508 = vrot.lane.b32.xlu0 %v1505, 117
  %v1509 = vpop.permute.xlu0 %1508
  %v1510 = vsel %vm657, %v1507, %v1509
  %v1512 = vsel %vm168, %v1510, 0
  %v1515 = vsel %vm168, %v1509, 0
  %1517 = vmatprep.subr.bf16.mxu0 %v1515
  %1518 = vmatpush1.bf16.msra.mxu0 %v1512
  %1519 = vmatprep.subr.bf16.mxu0 0
  %1520 = vmatpush1.bf16.msra.mxu0 0
  %1521 = vmatprep.subr.bf16.mxu0 0
  %1522 = vmatpush1.bf16.msra.mxu0 0
  %1523 = vmatprep.subr.bf16.mxu0 0
  %1524 = vmatpush1.bf16.msra.mxu0 0
  %1525 = vmatprep.subr.bf16.mxu0 0
  %1526 = vmatpush1.bf16.msra.mxu0 0
  %1527 = vmatprep.subr.bf16.mxu0 0
  %1528 = vmatpush1.bf16.msra.mxu0 0
  %1529 = vmatprep.subr.bf16.mxu0 0
  %1530 = vmatpush1.bf16.msra.mxu0 0
  %1531 = vmatprep.subr.bf16.mxu0 0
  %1532 = vmatpush1.bf16.msra.mxu0 0
  %1533 = vmatprep.subr.bf16.mxu0 0
  %1534 = vmatpush1.bf16.msra.mxu0 0
  %1535 = vmatprep.subr.bf16.mxu0 0
  %1536 = vmatpush1.bf16.msra.mxu0 0
  %1537 = vmatprep.subr.bf16.mxu0 0
  %1538 = vmatpush1.bf16.msra.mxu0 0
  %1539 = vmatprep.subr.bf16.mxu0 0
  %1540 = vmatpush1.bf16.msra.mxu0 0
  %1541 = vmatprep.subr.bf16.mxu0 0
  %1542 = vmatpush1.bf16.msra.mxu0 0
  %1543 = vmatprep.subr.bf16.mxu0 0
  %1544 = vmatpush1.bf16.msra.mxu0 0
  %1545 = vmatprep.subr.bf16.mxu0 0
  %1546 = vmatpush1.bf16.msra.mxu0 0
  %1547 = vmatprep.subr.bf16.mxu0 0
  %1548 = vmatpush1.bf16.msra.mxu0 0
  %1549 = vmatprep.mubr.bf16.mxu0 0
  %1550 = vmatmul.mubr.bf16.gmra.mrb[0].mxu0 %v561
  %v1551 = vpop.f32.mrb[0].mxu0
  %v1552 = vadd.f32 0.0, %v1551
  %v1553 = vpop.f32.mrb[0].mxu0
  %v1554 = vadd.f32 0.0, %v1553
  %v1555 = vpop.f32.mrb[0].mxu0
  %v1556 = vadd.f32 0.0, %v1555
  %v1557 = vpop.f32.mrb[0].mxu0
  %v1558 = vadd.f32 0.0, %v1557
  %1559 = vmatprep.mubr.bf16.mxu0 0
  %1560 = vmatmul.mubr.bf16.gmra.mrb[0].mxu0 %v564
  %v1561 = vpop.f32.mrb[0].mxu0
  %v1562 = vadd.f32 0.0, %v1561
  %v1563 = vpop.f32.mrb[0].mxu0
  %v1564 = vadd.f32 0.0, %v1563
  %v1565 = vpop.f32.mrb[0].mxu0
  %v1566 = vadd.f32 0.0, %v1565
  %v1567 = vpop.f32.mrb[0].mxu0
  %v1568 = vadd.f32 0.0, %v1567
  %1569 = vdwg.mxu0
  %v1570 = vadd.f32 %v1488, %v1552
  %v1571 = vadd.f32 %v1489, %v1554
  %v1572 = vadd.f32 %v1490, %v1556
  %v1573 = vadd.f32 %v1491, %v1558
  %v1574 = vadd.f32 %v1492, %v1562
  %v1575 = vadd.f32 %v1493, %v1564
  %v1576 = vadd.f32 %v1494, %v1566
  %v1577 = vadd.f32 %v1495, %v1568
  %v1578 = vld [vmem:[%s533] sm:$0xf]
  %v1581 = vunpack.c.l.s4 1983009808
  %v1582 = vunpack.c.0.s8 %v1581
  %v1583 = vlaneseq
  %v1584 = vshrl.u32 %v1583, 7
  %v1585 = vsub.s32 %v1582, %v1584
  %v1586 = vrot.slane %v1578, %v1585
  %v1587 = vcombine.high %v1586, %v1586
  %1588 = vrot.lane.b32.xlu0 %v1586, 117
  %v1589 = vpop.permute.xlu0 %1588
  %1590 = vrot.lane.b32.xlu0 %v1587, 117
  %v1591 = vpop.permute.xlu0 %1590
  %v1592 = vsel %vm657, %v1589, %v1591
  %v1594 = vsel %vm168, %v1592, 0
  %v1597 = vsel %vm168, %v1591, 0
  %1599 = vmatprep.subr.bf16.mxu0 %v1597
  %1600 = vmatpush1.bf16.msra.mxu0 %v1594
  %1601 = vmatprep.subr.bf16.mxu0 0
  %1602 = vmatpush1.bf16.msra.mxu0 0
  %1603 = vmatprep.subr.bf16.mxu0 0
  %1604 = vmatpush1.bf16.msra.mxu0 0
  %1605 = vmatprep.subr.bf16.mxu0 0
  %1606 = vmatpush1.bf16.msra.mxu0 0
  %1607 = vmatprep.subr.bf16.mxu0 0
  %1608 = vmatpush1.bf16.msra.mxu0 0
  %1609 = vmatprep.subr.bf16.mxu0 0
  %1610 = vmatpush1.bf16.msra.mxu0 0
  %1611 = vmatprep.subr.bf16.mxu0 0
  %1612 = vmatpush1.bf16.msra.mxu0 0
  %1613 = vmatprep.subr.bf16.mxu0 0
  %1614 = vmatpush1.bf16.msra.mxu0 0
  %1615 = vmatprep.subr.bf16.mxu0 0
  %1616 = vmatpush1.bf16.msra.mxu0 0
  %1617 = vmatprep.subr.bf16.mxu0 0
  %1618 = vmatpush1.bf16.msra.mxu0 0
  %1619 = vmatprep.subr.bf16.mxu0 0
  %1620 = vmatpush1.bf16.msra.mxu0 0
  %1621 = vmatprep.subr.bf16.mxu0 0
  %1622 = vmatpush1.bf16.msra.mxu0 0
  %1623 = vmatprep.subr.bf16.mxu0 0
  %1624 = vmatpush1.bf16.msra.mxu0 0
  %1625 = vmatprep.subr.bf16.mxu0 0
  %1626 = vmatpush1.bf16.msra.mxu0 0
  %1627 = vmatprep.subr.bf16.mxu0 0
  %1628 = vmatpush1.bf16.msra.mxu0 0
  %1629 = vmatprep.subr.bf16.mxu0 0
  %1630 = vmatpush1.bf16.msra.mxu0 0
  %1631 = vmatprep.mubr.bf16.mxu0 0
  %1632 = vmatmul.mubr.bf16.gmra.mrb[0].mxu0 %v660
  %v1633 = vpop.f32.mrb[0].mxu0
  %v1634 = vadd.f32 0.0, %v1633
  %v1635 = vpop.f32.mrb[0].mxu0
  %v1636 = vadd.f32 0.0, %v1635
  %v1637 = vpop.f32.mrb[0].mxu0
  %v1638 = vadd.f32 0.0, %v1637
  %v1639 = vpop.f32.mrb[0].mxu0
  %v1640 = vadd.f32 0.0, %v1639
  %1641 = vmatprep.mubr.bf16.mxu0 0
  %1642 = vmatmul.mubr.bf16.gmra.mrb[0].mxu0 %v663
  %v1643 = vpop.f32.mrb[0].mxu0
  %v1644 = vadd.f32 0.0, %v1643
  %v1645 = vpop.f32.mrb[0].mxu0
  %v1646 = vadd.f32 0.0, %v1645
  %v1647 = vpop.f32.mrb[0].mxu0
  %v1648 = vadd.f32 0.0, %v1647
  %v1649 = vpop.f32.mrb[0].mxu0
  %v1650 = vadd.f32 0.0, %v1649
  %1651 = vdwg.mxu0
  %v1652 = vadd.f32 %v1570, %v1634
  %v1653 = vadd.f32 %v1571, %v1636
  %v1654 = vadd.f32 %v1572, %v1638
  %v1655 = vadd.f32 %v1573, %v1640
  %v1656 = vadd.f32 %v1574, %v1644
  %v1657 = vadd.f32 %v1575, %v1646
  %v1658 = vadd.f32 %v1576, %v1648
  %v1659 = vadd.f32 %v1577, %v1650
  %v1660 = vld [vmem:[#allocation2] sm:$0xf]
  %v1663 = vunpack.c.l.s4 1983009808
  %v1664 = vunpack.c.0.s8 %v1663
  %v1665 = vlaneseq
  %v1666 = vshrl.u32 %v1665, 7
  %v1667 = vsub.s32 %v1664, %v1666
  %v1668 = vrot.slane %v1660, %v1667
  %v1669 = vcombine.high %v1668, %v1668
  %1670 = vrot.lane.b32.xlu0 %v1668, 116
  %v1671 = vpop.permute.xlu0 %1670
  %1672 = vrot.lane.b32.xlu0 %v1669, 116
  %v1673 = vpop.permute.xlu0 %1672
  %vm1674 = vcmask 949248
  %v1675 = vsel %vm1674, %v1671, %v1673
  %v1677 = vsel %vm168, %v1675, 0
  %v1680 = vsel %vm168, %v1673, 0
  %1682 = vmatprep.subr.bf16.mxu0 %v1680
  %1683 = vmatpush1.bf16.msra.mxu0 %v1677
  %1684 = vmatprep.subr.bf16.mxu0 0
  %1685 = vmatpush1.bf16.msra.mxu0 0
  %1686 = vmatprep.subr.bf16.mxu0 0
  %1687 = vmatpush1.bf16.msra.mxu0 0
  %1688 = vmatprep.subr.bf16.mxu0 0
  %1689 = vmatpush1.bf16.msra.mxu0 0
  %1690 = vmatprep.subr.bf16.mxu0 0
  %1691 = vmatpush1.bf16.msra.mxu0 0
  %1692 = vmatprep.subr.bf16.mxu0 0
  %1693 = vmatpush1.bf16.msra.mxu0 0
  %1694 = vmatprep.subr.bf16.mxu0 0
  %1695 = vmatpush1.bf16.msra.mxu0 0
  %1696 = vmatprep.subr.bf16.mxu0 0
  %1697 = vmatpush1.bf16.msra.mxu0 0
  %1698 = vmatprep.subr.bf16.mxu0 0
  %1699 = vmatpush1.bf16.msra.mxu0 0
  %1700 = vmatprep.subr.bf16.mxu0 0
  %1701 = vmatpush1.bf16.msra.mxu0 0
  %1702 = vmatprep.subr.bf16.mxu0 0
  %1703 = vmatpush1.bf16.msra.mxu0 0
  %1704 = vmatprep.subr.bf16.mxu0 0
  %1705 = vmatpush1.bf16.msra.mxu0 0
  %1706 = vmatprep.subr.bf16.mxu0 0
  %1707 = vmatpush1.bf16.msra.mxu0 0
  %1708 = vmatprep.subr.bf16.mxu0 0
  %1709 = vmatpush1.bf16.msra.mxu0 0
  %1710 = vmatprep.subr.bf16.mxu0 0
  %1711 = vmatpush1.bf16.msra.mxu0 0
  %1712 = vmatprep.subr.bf16.mxu0 0
  %1713 = vmatpush1.bf16.msra.mxu0 0
  %1714 = vmatprep.mubr.bf16.mxu0 0
  %1715 = vmatmul.mubr.bf16.gmra.mrb[0].mxu0 %v758
  %v1716 = vpop.f32.mrb[0].mxu0
  %v1717 = vadd.f32 0.0, %v1716
  %v1718 = vpop.f32.mrb[0].mxu0
  %v1719 = vadd.f32 0.0, %v1718
  %v1720 = vpop.f32.mrb[0].mxu0
  %v1721 = vadd.f32 0.0, %v1720
  %v1722 = vpop.f32.mrb[0].mxu0
  %v1723 = vadd.f32 0.0, %v1722
  %1724 = vmatprep.mubr.bf16.mxu0 0
  %1725 = vmatmul.mubr.bf16.gmra.mrb[0].mxu0 %v761
  %v1726 = vpop.f32.mrb[0].mxu0
  %v1727 = vadd.f32 0.0, %v1726
  %v1728 = vpop.f32.mrb[0].mxu0
  %v1729 = vadd.f32 0.0, %v1728
  %v1730 = vpop.f32.mrb[0].mxu0
  %v1731 = vadd.f32 0.0, %v1730
  %v1732 = vpop.f32.mrb[0].mxu0
  %v1733 = vadd.f32 0.0, %v1732
  %1734 = vdwg.mxu0
  %v1735 = vadd.f32 %v1652, %v1717
  %v1736 = vadd.f32 %v1653, %v1719
  %v1737 = vadd.f32 %v1654, %v1721
  %v1738 = vadd.f32 %v1655, %v1723
  %v1739 = vadd.f32 %v1656, %v1727
  %v1740 = vadd.f32 %v1657, %v1729
  %v1741 = vadd.f32 %v1658, %v1731
  %v1742 = vadd.f32 %v1659, %v1733
  %v1743 = vld [vmem:[%s258] sm:$0xf]
  %v1746 = vunpack.c.l.s4 1983009808
  %v1747 = vunpack.c.0.s8 %v1746
  %v1748 = vlaneseq
  %v1749 = vshrl.u32 %v1748, 7
  %v1750 = vsub.s32 %v1747, %v1749
  %v1751 = vrot.slane %v1743, %v1750
  %v1752 = vcombine.high %v1751, %v1751
  %1753 = vrot.lane.b32.xlu0 %v1751, 117
  %v1754 = vpop.permute.xlu0 %1753
  %1755 = vrot.lane.b32.xlu0 %v1752, 117
  %v1756 = vpop.permute.xlu0 %1755
  %v1757 = vsel %vm657, %v1754, %v1756
  %v1759 = vsel %vm168, %v1757, 0
  %v1762 = vsel %vm168, %v1756, 0
  %1764 = vmatprep.subr.bf16.mxu0 %v1762
  %1765 = vmatpush1.bf16.msra.mxu0 %v1759
  %1766 = vmatprep.subr.bf16.mxu0 0
  %1767 = vmatpush1.bf16.msra.mxu0 0
  %1768 = vmatprep.subr.bf16.mxu0 0
  %1769 = vmatpush1.bf16.msra.mxu0 0
  %1770 = vmatprep.subr.bf16.mxu0 0
  %1771 = vmatpush1.bf16.msra.mxu0 0
  %1772 = vmatprep.subr.bf16.mxu0 0
  %1773 = vmatpush1.bf16.msra.mxu0 0
  %1774 = vmatprep.subr.bf16.mxu0 0
  %1775 = vmatpush1.bf16.msra.mxu0 0
  %1776 = vmatprep.subr.bf16.mxu0 0
  %1777 = vmatpush1.bf16.msra.mxu0 0
  %1778 = vmatprep.subr.bf16.mxu0 0
  %1779 = vmatpush1.bf16.msra.mxu0 0
  %1780 = vmatprep.subr.bf16.mxu0 0
  %1781 = vmatpush1.bf16.msra.mxu0 0
  %1782 = vmatprep.subr.bf16.mxu0 0
  %1783 = vmatpush1.bf16.msra.mxu0 0
  %1784 = vmatprep.subr.bf16.mxu0 0
  %1785 = vmatpush1.bf16.msra.mxu0 0
  %1786 = vmatprep.subr.bf16.mxu0 0
  %1787 = vmatpush1.bf16.msra.mxu0 0
  %1788 = vmatprep.subr.bf16.mxu0 0
  %1789 = vmatpush1.bf16.msra.mxu0 0
  %1790 = vmatprep.subr.bf16.mxu0 0
  %1791 = vmatpush1.bf16.msra.mxu0 0
  %1792 = vmatprep.subr.bf16.mxu0 0
  %1793 = vmatpush1.bf16.msra.mxu0 0
  %1794 = vmatprep.subr.bf16.mxu0 0
  %1795 = vmatpush1.bf16.msra.mxu0 0
  %1796 = vmatprep.mubr.bf16.mxu0 0
  %1797 = vmatmul.mubr.bf16.gmra.mrb[0].mxu0 %v856
  %v1798 = vpop.f32.mrb[0].mxu0
  %v1799 = vadd.f32 0.0, %v1798
  %v1800 = vpop.f32.mrb[0].mxu0
  %v1801 = vadd.f32 0.0, %v1800
  %v1802 = vpop.f32.mrb[0].mxu0
  %v1803 = vadd.f32 0.0, %v1802
  %v1804 = vpop.f32.mrb[0].mxu0
  %v1805 = vadd.f32 0.0, %v1804
  %1806 = vmatprep.mubr.bf16.mxu0 0
  %1807 = vmatmul.mubr.bf16.gmra.mrb[0].mxu0 %v859
  %v1808 = vpop.f32.mrb[0].mxu0
  %v1809 = vadd.f32 0.0, %v1808
  %v1810 = vpop.f32.mrb[0].mxu0
  %v1811 = vadd.f32 0.0, %v1810
  %v1812 = vpop.f32.mrb[0].mxu0
  %v1813 = vadd.f32 0.0, %v1812
  %v1814 = vpop.f32.mrb[0].mxu0
  %v1815 = vadd.f32 0.0, %v1814
  %1816 = vdwg.mxu0
  %v1817 = vadd.f32 %v1735, %v1799
  %v1818 = vadd.f32 %v1736, %v1801
  %v1819 = vadd.f32 %v1737, %v1803
  %v1820 = vadd.f32 %v1738, %v1805
  %v1821 = vadd.f32 %v1739, %v1809
  %v1822 = vadd.f32 %v1740, %v1811
  %v1823 = vadd.f32 %v1741, %v1813
  %v1824 = vadd.f32 %v1742, %v1815
  %v1825 = vld [vmem:[%s256] sm:$0xf]
  %v1828 = vunpack.c.l.s4 1983009808
  %v1829 = vunpack.c.0.s8 %v1828
  %v1830 = vlaneseq
  %v1831 = vshrl.u32 %v1830, 7
  %v1832 = vsub.s32 %v1829, %v1831
  %v1833 = vrot.slane %v1825, %v1832
  %v1834 = vcombine.high %v1833, %v1833
  %1835 = vrot.lane.b32.xlu0 %v1833, 117
  %v1836 = vpop.permute.xlu0 %1835
  %1837 = vrot.lane.b32.xlu0 %v1834, 117
  %v1838 = vpop.permute.xlu0 %1837
  %v1839 = vsel %vm657, %v1836, %v1838
  %v1841 = vsel %vm168, %v1839, 0
  %v1844 = vsel %vm168, %v1838, 0
  %1846 = vmatprep.subr.bf16.mxu0 %v1844
  %1847 = vmatpush1.bf16.msra.mxu0 %v1841
  %1848 = vmatprep.subr.bf16.mxu0 0
  %1849 = vmatpush1.bf16.msra.mxu0 0
  %1850 = vmatprep.subr.bf16.mxu0 0
  %1851 = vmatpush1.bf16.msra.mxu0 0
  %1852 = vmatprep.subr.bf16.mxu0 0
  %1853 = vmatpush1.bf16.msra.mxu0 0
  %1854 = vmatprep.subr.bf16.mxu0 0
  %1855 = vmatpush1.bf16.msra.mxu0 0
  %1856 = vmatprep.subr.bf16.mxu0 0
  %1857 = vmatpush1.bf16.msra.mxu0 0
  %1858 = vmatprep.subr.bf16.mxu0 0
  %1859 = vmatpush1.bf16.msra.mxu0 0
  %1860 = vmatprep.subr.bf16.mxu0 0
  %1861 = vmatpush1.bf16.msra.mxu0 0
  %1862 = vmatprep.subr.bf16.mxu0 0
  %1863 = vmatpush1.bf16.msra.mxu0 0
  %1864 = vmatprep.subr.bf16.mxu0 0
  %1865 = vmatpush1.bf16.msra.mxu0 0
  %1866 = vmatprep.subr.bf16.mxu0 0
  %1867 = vmatpush1.bf16.msra.mxu0 0
  %1868 = vmatprep.subr.bf16.mxu0 0
  %1869 = vmatpush1.bf16.msra.mxu0 0
  %1870 = vmatprep.subr.bf16.mxu0 0
  %1871 = vmatpush1.bf16.msra.mxu0 0
  %1872 = vmatprep.subr.bf16.mxu0 0
  %1873 = vmatpush1.bf16.msra.mxu0 0
  %1874 = vmatprep.subr.bf16.mxu0 0
  %1875 = vmatpush1.bf16.msra.mxu0 0
  %1876 = vmatprep.subr.bf16.mxu0 0
  %1877 = vmatpush1.bf16.msra.mxu0 0
  %1878 = vmatprep.mubr.bf16.mxu0 0
  %1879 = vmatmul.mubr.bf16.gmra.mrb[0].mxu0 %v954
  %v1880 = vpop.f32.mrb[0].mxu0
  %v1881 = vadd.f32 0.0, %v1880
  %v1882 = vpop.f32.mrb[0].mxu0
  %v1883 = vadd.f32 0.0, %v1882
  %v1884 = vpop.f32.mrb[0].mxu0
  %v1885 = vadd.f32 0.0, %v1884
  %v1886 = vpop.f32.mrb[0].mxu0
  %v1887 = vadd.f32 0.0, %v1886
  %1888 = vmatprep.mubr.bf16.mxu0 0
  %1889 = vmatmul.mubr.bf16.gmra.mrb[0].mxu0 %v957
  %v1890 = vpop.f32.mrb[0].mxu0
  %v1891 = vadd.f32 0.0, %v1890
  %v1892 = vpop.f32.mrb[0].mxu0
  %v1893 = vadd.f32 0.0, %v1892
  %v1894 = vpop.f32.mrb[0].mxu0
  %v1895 = vadd.f32 0.0, %v1894
  %v1896 = vpop.f32.mrb[0].mxu0
  %v1897 = vadd.f32 0.0, %v1896
  %1898 = vdwg.mxu0
  %v1899 = vadd.f32 %v1817, %v1881
  %v1900 = vadd.f32 %v1818, %v1883
  %v1901 = vadd.f32 %v1819, %v1885
  %v1902 = vadd.f32 %v1820, %v1887
  %v1903 = vadd.f32 %v1821, %v1891
  %v1904 = vadd.f32 %v1822, %v1893
  %v1905 = vadd.f32 %v1823, %v1895
  %v1906 = vadd.f32 %v1824, %v1897
  %v1907 = vld [vmem:[%s258] sm:$0xf]
  %v1910 = vunpack.c.l.s4 1983009808
  %v1911 = vunpack.c.0.s8 %v1910
  %v1912 = vlaneseq
  %v1913 = vshrl.u32 %v1912, 7
  %v1914 = vsub.s32 %v1911, %v1913
  %v1915 = vrot.slane %v1907, %v1914
  %v1916 = vcombine.high %v1915, %v1915
  %1917 = vrot.lane.b32.xlu0 %v1915, 116
  %v1918 = vpop.permute.xlu0 %1917
  %1919 = vrot.lane.b32.xlu0 %v1916, 116
  %v1920 = vpop.permute.xlu0 %1919
  %v1921 = vsel %vm1674, %v1918, %v1920
  %v1923 = vsel %vm168, %v1921, 0
  %v1926 = vsel %vm168, %v1920, 0
  %1928 = vmatprep.subr.bf16.mxu0 %v1926
  %1929 = vmatpush1.bf16.msra.mxu0 %v1923
  %1930 = vmatprep.subr.bf16.mxu0 0
  %1931 = vmatpush1.bf16.msra.mxu0 0
  %1932 = vmatprep.subr.bf16.mxu0 0
  %1933 = vmatpush1.bf16.msra.mxu0 0
  %1934 = vmatprep.subr.bf16.mxu0 0
  %1935 = vmatpush1.bf16.msra.mxu0 0
  %1936 = vmatprep.subr.bf16.mxu0 0
  %1937 = vmatpush1.bf16.msra.mxu0 0
  %1938 = vmatprep.subr.bf16.mxu0 0
  %1939 = vmatpush1.bf16.msra.mxu0 0
  %1940 = vmatprep.subr.bf16.mxu0 0
  %1941 = vmatpush1.bf16.msra.mxu0 0
  %1942 = vmatprep.subr.bf16.mxu0 0
  %1943 = vmatpush1.bf16.msra.mxu0 0
  %1944 = vmatprep.subr.bf16.mxu0 0
  %1945 = vmatpush1.bf16.msra.mxu0 0
  %1946 = vmatprep.subr.bf16.mxu0 0
  %1947 = vmatpush1.bf16.msra.mxu0 0
  %1948 = vmatprep.subr.bf16.mxu0 0
  %1949 = vmatpush1.bf16.msra.mxu0 0
  %1950 = vmatprep.subr.bf16.mxu0 0
  %1951 = vmatpush1.bf16.msra.mxu0 0
  %1952 = vmatprep.subr.bf16.mxu0 0
  %1953 = vmatpush1.bf16.msra.mxu0 0
  %1954 = vmatprep.subr.bf16.mxu0 0
  %1955 = vmatpush1.bf16.msra.mxu0 0
  %1956 = vmatprep.subr.bf16.mxu0 0
  %1957 = vmatpush1.bf16.msra.mxu0 0
  %1958 = vmatprep.subr.bf16.mxu0 0
  %1959 = vmatpush1.bf16.msra.mxu0 0
  %1960 = vmatprep.mubr.bf16.mxu0 0
  %1961 = vmatmul.mubr.bf16.gmra.mrb[0].mxu0 %v1052
  %v1962 = vpop.f32.mrb[0].mxu0
  %v1963 = vadd.f32 0.0, %v1962
  %v1964 = vpop.f32.mrb[0].mxu0
  %v1965 = vadd.f32 0.0, %v1964
  %v1966 = vpop.f32.mrb[0].mxu0
  %v1967 = vadd.f32 0.0, %v1966
  %v1968 = vpop.f32.mrb[0].mxu0
  %v1969 = vadd.f32 0.0, %v1968
  %1970 = vmatprep.mubr.bf16.mxu0 0
  %1971 = vmatmul.mubr.bf16.gmra.mrb[0].mxu0 %v1055
  %v1972 = vpop.f32.mrb[0].mxu0
  %v1973 = vadd.f32 0.0, %v1972
  %v1974 = vpop.f32.mrb[0].mxu0
  %v1975 = vadd.f32 0.0, %v1974
  %v1976 = vpop.f32.mrb[0].mxu0
  %v1977 = vadd.f32 0.0, %v1976
  %v1978 = vpop.f32.mrb[0].mxu0
  %v1979 = vadd.f32 0.0, %v1978
  %1980 = vdwg.mxu0
  %v1981 = vadd.f32 %v1899, %v1963
  %v1982 = vadd.f32 %v1900, %v1965
  %v1983 = vadd.f32 %v1901, %v1967
  %v1984 = vadd.f32 %v1902, %v1969
  %v1985 = vadd.f32 %v1903, %v1973
  %v1986 = vadd.f32 %v1904, %v1975
  %v1987 = vadd.f32 %v1905, %v1977
  %v1988 = vadd.f32 %v1906, %v1979
  %v1989 = vadd.f32 %v1981, %v1127
  %v1990 = vadd.f32 %v1982, %v1127
  %v1991 = vadd.f32 %v1983, %v1132
  %v1992 = vadd.f32 %v1984, %v1132
  %v1993 = vadd.f32 %v1985, %v1137
  %v1994 = vadd.f32 %v1986, %v1137
  %v1995 = vadd.f32 %v1987, %v1142
  %v1996 = vadd.f32 %v1988, %v1142
  %s1997 = scalar_lea.vmem %s10, 64
  %1998 = vst [vmem:[%s1997] sm:$0xff] %v1989
  %1999 = vst.msk [vmem:[%s1997 + $0x8] sm:$0xff] %vm1153, %v1990
  %2000 = vst [vmem:[%s1997 + $0x10] sm:$0xff] %v1991
  %2001 = vst.msk [vmem:[%s1997 + $0x18] sm:$0xff] %vm1153, %v1992
  %2002 = vst [vmem:[%s1997 + $0x20] sm:$0xff] %v1993
  %2003 = vst.msk [vmem:[%s1997 + $0x28] sm:$0xff] %vm1153, %v1994
  %2004 = vst [vmem:[%s1997 + $0x30] sm:$0xff] %v1995
  %2005 = vst.msk [vmem:[%s1997 + $0x38] sm:$0xff] %vm1153, %v1996
  %v2006 = vmul.f32 %v1989, %v1164
  %v2007 = vmul.f32 %v1990, %v1164
  %v2008 = vmul.f32 %v1991, %v1169
  %v2009 = vmul.f32 %v1992, %v1169
  %v2010 = vmul.f32 %v1993, %v1174
  %v2011 = vmul.f32 %v1994, %v1174
  %v2012 = vmul.f32 %v1995, %v1179
  %v2013 = vmul.f32 %v1996, %v1179
  %v2014 = vadd.f32 %v2006, %v1192
  %v2015 = vadd.f32 %v2007, %v1192
  %v2016 = vadd.f32 %v2008, %v1197
  %v2017 = vadd.f32 %v2009, %v1197
  %v2018 = vadd.f32 %v2010, %v1202
  %v2019 = vadd.f32 %v2011, %v1202
  %v2020 = vadd.f32 %v2012, %v1207
  %v2021 = vadd.f32 %v2013, %v1207
  %vm2022 = vcmp.ge.f32.partialorder %v2014, 0.0
  %vm2023 = vcmp.ge.f32.partialorder %v2015, 0.0
  %vm2024 = vcmp.ge.f32.partialorder %v2016, 0.0
  %vm2025 = vcmp.ge.f32.partialorder %v2017, 0.0
  %vm2026 = vcmp.ge.f32.partialorder %v2018, 0.0
  %vm2027 = vcmp.ge.f32.partialorder %v2019, 0.0
  %vm2028 = vcmp.ge.f32.partialorder %v2020, 0.0
  %vm2029 = vcmp.ge.f32.partialorder %v2021, 0.0
  %v2030 = vmul.f32 %v2014, 0.01
  %v2031 = vmul.f32 %v2015, 0.01
  %v2032 = vmul.f32 %v2016, 0.01
  %v2033 = vmul.f32 %v2017, 0.01
  %v2034 = vmul.f32 %v2018, 0.01
  %v2035 = vmul.f32 %v2019, 0.01
  %v2036 = vmul.f32 %v2020, 0.01
  %v2037 = vmul.f32 %v2021, 0.01
  %v2038 = vsel %vm2022, %v2014, %v2030
  %v2039 = vsel %vm2023, %v2015, %v2031
  %v2040 = vsel %vm2024, %v2016, %v2032
  %v2041 = vsel %vm2025, %v2017, %v2033
  %v2042 = vsel %vm2026, %v2018, %v2034
  %v2043 = vsel %vm2027, %v2019, %v2035
  %v2044 = vsel %vm2028, %v2020, %v2036
  %v2045 = vsel %vm2029, %v2021, %v2037
  %v2046 = vmul.f32 %v2038, %v1246
  %v2047 = vmul.f32 %v2039, %v1244
  %v2048 = vmul.f32 %v2040, %v1246
  %v2049 = vmul.f32 %v2041, %v1244
  %v2050 = vmul.f32 %v2042, %v1246
  %v2051 = vmul.f32 %v2043, %v1244
  %v2052 = vmul.f32 %v2044, %v1246
  %v2053 = vmul.f32 %v2045, %v1244
  %v2054 = vpack.c.bf16 %v2048, %v2046
  %v2055 = vpack.c.bf16 %v2049, %v2047
  %v2056 = vpack.c.bf16 %v2052, %v2050
  %v2057 = vpack.c.bf16 %v2053, %v2051
  %s2058 = scalar_lea.vmem [#allocation3], 48
  %2059 = vst [vmem:[%s2058 + $0x8] sm:$0xff] %v2054
  %2060 = vst.msk [vmem:[%s2058 + $0x10] sm:$0xff] %vm1153, %v2055
  %2061 = vst [vmem:[%s2058 + $0x20] sm:$0xff] %v2056
  %2062 = vst.msk [vmem:[%s2058 + $0x28] sm:$0xff] %vm1153, %v2057
  %v2063 = vld [vmem:[%s533] sm:$0xf]
  %v2064 = vld [vmem:[#allocation2] sm:$0xf]
  %v2067 = vunpack.c.l.s4 1983009808
  %v2068 = vunpack.c.0.s8 %v2067
  %v2069 = vlaneseq
  %v2070 = vshrl.u32 %v2069, 7
  %v2071 = vsub.s32 %v2068, %v2070
  %v2072 = vrot.slane %v2064, %v2071
  %v2073 = vcombine.high %v2072, %v2072
  %2074 = vrot.lane.b32.xlu0 %v2072, 117
  %v2075 = vpop.permute.xlu0 %2074
  %2076 = vrot.lane.b32.xlu0 %v2073, 117
  %v2077 = vpop.permute.xlu0 %2076
  %v2078 = vsel %vm657, %v2075, %v2077
  %v2080 = vsel %vm168, %v2078, 0
  %v2083 = vsel %vm168, %v2077, 0
  %2085 = vmatprep.subr.bf16.mxu0 %v2083
  %2086 = vmatpush1.bf16.msra.mxu0 %v2080
  %2087 = vmatprep.subr.bf16.mxu0 0
  %2088 = vmatpush1.bf16.msra.mxu0 0
  %2089 = vmatprep.subr.bf16.mxu0 0
  %2090 = vmatpush1.bf16.msra.mxu0 0
  %2091 = vmatprep.subr.bf16.mxu0 0
  %2092 = vmatpush1.bf16.msra.mxu0 0
  %2093 = vmatprep.subr.bf16.mxu0 0
  %2094 = vmatpush1.bf16.msra.mxu0 0
  %2095 = vmatprep.subr.bf16.mxu0 0
  %2096 = vmatpush1.bf16.msra.mxu0 0
  %2097 = vmatprep.subr.bf16.mxu0 0
  %2098 = vmatpush1.bf16.msra.mxu0 0
  %2099 = vmatprep.subr.bf16.mxu0 0
  %2100 = vmatpush1.bf16.msra.mxu0 0
  %2101 = vmatprep.subr.bf16.mxu0 0
  %2102 = vmatpush1.bf16.msra.mxu0 0
  %2103 = vmatprep.subr.bf16.mxu0 0
  %2104 = vmatpush1.bf16.msra.mxu0 0
  %2105 = vmatprep.subr.bf16.mxu0 0
  %2106 = vmatpush1.bf16.msra.mxu0 0
  %2107 = vmatprep.subr.bf16.mxu0 0
  %2108 = vmatpush1.bf16.msra.mxu0 0
  %2109 = vmatprep.subr.bf16.mxu0 0
  %2110 = vmatpush1.bf16.msra.mxu0 0
  %2111 = vmatprep.subr.bf16.mxu0 0
  %2112 = vmatpush1.bf16.msra.mxu0 0
  %2113 = vmatprep.subr.bf16.mxu0 0
  %2114 = vmatpush1.bf16.msra.mxu0 0
  %2115 = vmatprep.subr.bf16.mxu0 0
  %2116 = vmatpush1.bf16.msra.mxu0 0
  %2117 = vmatprep.mubr.bf16.mxu0 0
  %2118 = vmatmul.mubr.bf16.gmra.mrb[0].mxu0 %v287
  %v2119 = vpop.f32.mrb[0].mxu0
  %v2120 = vadd.f32 0.0, %v2119
  %v2121 = vpop.f32.mrb[0].mxu0
  %v2122 = vadd.f32 0.0, %v2121
  %v2123 = vpop.f32.mrb[0].mxu0
  %v2124 = vadd.f32 0.0, %v2123
  %v2125 = vpop.f32.mrb[0].mxu0
  %v2126 = vadd.f32 0.0, %v2125
  %2127 = vmatprep.mubr.bf16.mxu0 0
  %2128 = vmatmul.mubr.bf16.gmra.mrb[0].mxu0 %v290
  %v2129 = vpop.f32.mrb[0].mxu0
  %v2130 = vadd.f32 0.0, %v2129
  %v2131 = vpop.f32.mrb[0].mxu0
  %v2132 = vadd.f32 0.0, %v2131
  %v2133 = vpop.f32.mrb[0].mxu0
  %v2134 = vadd.f32 0.0, %v2133
  %v2135 = vpop.f32.mrb[0].mxu0
  %v2136 = vadd.f32 0.0, %v2135
  %2137 = vdwg.mxu0
  %v2140 = vunpack.c.l.s4 1983009808
  %v2141 = vunpack.c.0.s8 %v2140
  %v2142 = vlaneseq
  %v2143 = vshrl.u32 %v2142, 7
  %v2144 = vsub.s32 %v2141, %v2143
  %v2145 = vrot.slane %v2063, %v2144
  %v2146 = vcombine.high %v2145, %v2145
  %2147 = vrot.lane.b32.xlu0 %v2145, 118
  %v2148 = vpop.permute.xlu0 %2147
  %2149 = vrot.lane.b32.xlu0 %v2146, 118
  %v2150 = vpop.permute.xlu0 %2149
  %v2151 = vsel %vm558, %v2148, %v2150
  %v2153 = vsel %vm168, %v2151, 0
  %v2156 = vsel %vm168, %v2150, 0
  %2158 = vmatprep.subr.bf16.mxu0 %v2156
  %2159 = vmatpush1.bf16.msra.mxu0 %v2153
  %2160 = vmatprep.subr.bf16.mxu0 0
  %2161 = vmatpush1.bf16.msra.mxu0 0
  %2162 = vmatprep.subr.bf16.mxu0 0
  %2163 = vmatpush1.bf16.msra.mxu0 0
  %2164 = vmatprep.subr.bf16.mxu0 0
  %2165 = vmatpush1.bf16.msra.mxu0 0
  %2166 = vmatprep.subr.bf16.mxu0 0
  %2167 = vmatpush1.bf16.msra.mxu0 0
  %2168 = vmatprep.subr.bf16.mxu0 0
  %2169 = vmatpush1.bf16.msra.mxu0 0
  %2170 = vmatprep.subr.bf16.mxu0 0
  %2171 = vmatpush1.bf16.msra.mxu0 0
  %2172 = vmatprep.subr.bf16.mxu0 0
  %2173 = vmatpush1.bf16.msra.mxu0 0
  %2174 = vmatprep.subr.bf16.mxu0 0
  %2175 = vmatpush1.bf16.msra.mxu0 0
  %2176 = vmatprep.subr.bf16.mxu0 0
  %2177 = vmatpush1.bf16.msra.mxu0 0
  %2178 = vmatprep.subr.bf16.mxu0 0
  %2179 = vmatpush1.bf16.msra.mxu0 0
  %2180 = vmatprep.subr.bf16.mxu0 0
  %2181 = vmatpush1.bf16.msra.mxu0 0
  %2182 = vmatprep.subr.bf16.mxu0 0
  %2183 = vmatpush1.bf16.msra.mxu0 0
  %2184 = vmatprep.subr.bf16.mxu0 0
  %2185 = vmatpush1.bf16.msra.mxu0 0
  %2186 = vmatprep.subr.bf16.mxu0 0
  %2187 = vmatpush1.bf16.msra.mxu0 0
  %2188 = vmatprep.subr.bf16.mxu0 0
  %2189 = vmatpush1.bf16.msra.mxu0 0
  %2190 = vmatprep.mubr.bf16.mxu0 0
  %2191 = vmatmul.mubr.bf16.gmra.mrb[0].mxu0 %v371
  %v2192 = vpop.f32.mrb[0].mxu0
  %v2193 = vadd.f32 %v2120, %v2192
  %v2194 = vpop.f32.mrb[0].mxu0
  %v2195 = vadd.f32 %v2122, %v2194
  %v2196 = vpop.f32.mrb[0].mxu0
  %v2197 = vadd.f32 %v2124, %v2196
  %v2198 = vpop.f32.mrb[0].mxu0
  %v2199 = vadd.f32 %v2126, %v2198
  %2200 = vmatprep.mubr.bf16.mxu0 0
  %2201 = vmatmul.mubr.bf16.gmra.mrb[0].mxu0 %v374
  %v2202 = vpop.f32.mrb[0].mxu0
  %v2203 = vadd.f32 %v2130, %v2202
  %v2204 = vpop.f32.mrb[0].mxu0
  %v2205 = vadd.f32 %v2132, %v2204
  %v2206 = vpop.f32.mrb[0].mxu0
  %v2207 = vadd.f32 %v2134, %v2206
  %v2208 = vpop.f32.mrb[0].mxu0
  %v2209 = vadd.f32 %v2136, %v2208
  %2210 = vdwg.mxu0
  %v2211 = vld [vmem:[%s533] sm:$0xf]
  %v2214 = vunpack.c.l.s4 1983009808
  %v2215 = vunpack.c.0.s8 %v2214
  %v2216 = vlaneseq
  %v2217 = vshrl.u32 %v2216, 7
  %v2218 = vsub.s32 %v2215, %v2217
  %v2219 = vrot.slane %v2211, %v2218
  %v2220 = vcombine.high %v2219, %v2219
  %2221 = vrot.lane.b32.xlu0 %v2219, 117
  %v2222 = vpop.permute.xlu0 %2221
  %2223 = vrot.lane.b32.xlu0 %v2220, 117
  %v2224 = vpop.permute.xlu0 %2223
  %v2225 = vsel %vm657, %v2222, %v2224
  %v2227 = vsel %vm168, %v2225, 0
  %v2230 = vsel %vm168, %v2224, 0
  %2232 = vmatprep.subr.bf16.mxu0 %v2230
  %2233 = vmatpush1.bf16.msra.mxu0 %v2227
  %2234 = vmatprep.subr.bf16.mxu0 0
  %2235 = vmatpush1.bf16.msra.mxu0 0
  %2236 = vmatprep.subr.bf16.mxu0 0
  %2237 = vmatpush1.bf16.msra.mxu0 0
  %2238 = vmatprep.subr.bf16.mxu0 0
  %2239 = vmatpush1.bf16.msra.mxu0 0
  %2240 = vmatprep.subr.bf16.mxu0 0
  %2241 = vmatpush1.bf16.msra.mxu0 0
  %2242 = vmatprep.subr.bf16.mxu0 0
  %2243 = vmatpush1.bf16.msra.mxu0 0
  %2244 = vmatprep.subr.bf16.mxu0 0
  %2245 = vmatpush1.bf16.msra.mxu0 0
  %2246 = vmatprep.subr.bf16.mxu0 0
  %2247 = vmatpush1.bf16.msra.mxu0 0
  %2248 = vmatprep.subr.bf16.mxu0 0
  %2249 = vmatpush1.bf16.msra.mxu0 0
  %2250 = vmatprep.subr.bf16.mxu0 0
  %2251 = vmatpush1.bf16.msra.mxu0 0
  %2252 = vmatprep.subr.bf16.mxu0 0
  %2253 = vmatpush1.bf16.msra.mxu0 0
  %2254 = vmatprep.subr.bf16.mxu0 0
  %2255 = vmatpush1.bf16.msra.mxu0 0
  %2256 = vmatprep.subr.bf16.mxu0 0
  %2257 = vmatpush1.bf16.msra.mxu0 0
  %2258 = vmatprep.subr.bf16.mxu0 0
  %2259 = vmatpush1.bf16.msra.mxu0 0
  %2260 = vmatprep.subr.bf16.mxu0 0
  %2261 = vmatpush1.bf16.msra.mxu0 0
  %2262 = vmatprep.subr.bf16.mxu0 0
  %2263 = vmatpush1.bf16.msra.mxu0 0
  %2264 = vmatprep.mubr.bf16.mxu0 0
  %2265 = vmatmul.mubr.bf16.gmra.mrb[0].mxu0 %v461
  %v2266 = vpop.f32.mrb[0].mxu0
  %v2267 = vadd.f32 0.0, %v2266
  %v2268 = vpop.f32.mrb[0].mxu0
  %v2269 = vadd.f32 0.0, %v2268
  %v2270 = vpop.f32.mrb[0].mxu0
  %v2271 = vadd.f32 0.0, %v2270
  %v2272 = vpop.f32.mrb[0].mxu0
  %v2273 = vadd.f32 0.0, %v2272
  %2274 = vmatprep.mubr.bf16.mxu0 0
  %2275 = vmatmul.mubr.bf16.gmra.mrb[0].mxu0 %v464
  %v2276 = vpop.f32.mrb[0].mxu0
  %v2277 = vadd.f32 0.0, %v2276
  %v2278 = vpop.f32.mrb[0].mxu0
  %v2279 = vadd.f32 0.0, %v2278
  %v2280 = vpop.f32.mrb[0].mxu0
  %v2281 = vadd.f32 0.0, %v2280
  %v2282 = vpop.f32.mrb[0].mxu0
  %v2283 = vadd.f32 0.0, %v2282
  %2284 = vdwg.mxu0
  %v2285 = vadd.f32 %v2193, %v2267
  %v2286 = vadd.f32 %v2195, %v2269
  %v2287 = vadd.f32 %v2197, %v2271
  %v2288 = vadd.f32 %v2199, %v2273
  %v2289 = vadd.f32 %v2203, %v2277
  %v2290 = vadd.f32 %v2205, %v2279
  %v2291 = vadd.f32 %v2207, %v2281
  %v2292 = vadd.f32 %v2209, %v2283
  %v2293 = vld [vmem:[%s256] sm:$0xf]
  %v2296 = vunpack.c.l.s4 1983009808
  %v2297 = vunpack.c.0.s8 %v2296
  %v2298 = vlaneseq
  %v2299 = vshrl.u32 %v2298, 7
  %v2300 = vsub.s32 %v2297, %v2299
  %v2301 = vrot.slane %v2293, %v2300
  %v2302 = vcombine.high %v2301, %v2301
  %2303 = vrot.lane.b32.xlu0 %v2301, 118
  %v2304 = vpop.permute.xlu0 %2303
  %2305 = vrot.lane.b32.xlu0 %v2302, 118
  %v2306 = vpop.permute.xlu0 %2305
  %v2307 = vsel %vm558, %v2304, %v2306
  %v2309 = vsel %vm168, %v2307, 0
  %v2312 = vsel %vm168, %v2306, 0
  %2314 = vmatprep.subr.bf16.mxu0 %v2312
  %2315 = vmatpush1.bf16.msra.mxu0 %v2309
  %2316 = vmatprep.subr.bf16.mxu0 0
  %2317 = vmatpush1.bf16.msra.mxu0 0
  %2318 = vmatprep.subr.bf16.mxu0 0
  %2319 = vmatpush1.bf16.msra.mxu0 0
  %2320 = vmatprep.subr.bf16.mxu0 0
  %2321 = vmatpush1.bf16.msra.mxu0 0
  %2322 = vmatprep.subr.bf16.mxu0 0
  %2323 = vmatpush1.bf16.msra.mxu0 0
  %2324 = vmatprep.subr.bf16.mxu0 0
  %2325 = vmatpush1.bf16.msra.mxu0 0
  %2326 = vmatprep.subr.bf16.mxu0 0
  %2327 = vmatpush1.bf16.msra.mxu0 0
  %2328 = vmatprep.subr.bf16.mxu0 0
  %2329 = vmatpush1.bf16.msra.mxu0 0
  %2330 = vmatprep.subr.bf16.mxu0 0
  %2331 = vmatpush1.bf16.msra.mxu0 0
  %2332 = vmatprep.subr.bf16.mxu0 0
  %2333 = vmatpush1.bf16.msra.mxu0 0
  %2334 = vmatprep.subr.bf16.mxu0 0
  %2335 = vmatpush1.bf16.msra.mxu0 0
  %2336 = vmatprep.subr.bf16.mxu0 0
  %2337 = vmatpush1.bf16.msra.mxu0 0
  %2338 = vmatprep.subr.bf16.mxu0 0
  %2339 = vmatpush1.bf16.msra.mxu0 0
  %2340 = vmatprep.subr.bf16.mxu0 0
  %2341 = vmatpush1.bf16.msra.mxu0 0
  %2342 = vmatprep.subr.bf16.mxu0 0
  %2343 = vmatpush1.bf16.msra.mxu0 0
  %2344 = vmatprep.subr.bf16.mxu0 0
  %2345 = vmatpush1.bf16.msra.mxu0 0
  %2346 = vmatprep.mubr.bf16.mxu0 0
  %2347 = vmatmul.mubr.bf16.gmra.mrb[0].mxu0 %v561
  %v2348 = vpop.f32.mrb[0].mxu0
  %v2349 = vadd.f32 0.0, %v2348
  %v2350 = vpop.f32.mrb[0].mxu0
  %v2351 = vadd.f32 0.0, %v2350
  %v2352 = vpop.f32.mrb[0].mxu0
  %v2353 = vadd.f32 0.0, %v2352
  %v2354 = vpop.f32.mrb[0].mxu0
  %v2355 = vadd.f32 0.0, %v2354
  %2356 = vmatprep.mubr.bf16.mxu0 0
  %2357 = vmatmul.mubr.bf16.gmra.mrb[0].mxu0 %v564
  %v2358 = vpop.f32.mrb[0].mxu0
  %v2359 = vadd.f32 0.0, %v2358
  %v2360 = vpop.f32.mrb[0].mxu0
  %v2361 = vadd.f32 0.0, %v2360
  %v2362 = vpop.f32.mrb[0].mxu0
  %v2363 = vadd.f32 0.0, %v2362
  %v2364 = vpop.f32.mrb[0].mxu0
  %v2365 = vadd.f32 0.0, %v2364
  %2366 = vdwg.mxu0
  %v2367 = vadd.f32 %v2285, %v2349
  %v2368 = vadd.f32 %v2286, %v2351
  %v2369 = vadd.f32 %v2287, %v2353
  %v2370 = vadd.f32 %v2288, %v2355
  %v2371 = vadd.f32 %v2289, %v2359
  %v2372 = vadd.f32 %v2290, %v2361
  %v2373 = vadd.f32 %v2291, %v2363
  %v2374 = vadd.f32 %v2292, %v2365
  %v2375 = vld [vmem:[%s258] sm:$0xf]
  %v2378 = vunpack.c.l.s4 1983009808
  %v2379 = vunpack.c.0.s8 %v2378
  %v2380 = vlaneseq
  %v2381 = vshrl.u32 %v2380, 7
  %v2382 = vsub.s32 %v2379, %v2381
  %v2383 = vrot.slane %v2375, %v2382
  %v2384 = vcombine.high %v2383, %v2383
  %2385 = vrot.lane.b32.xlu0 %v2383, 117
  %v2386 = vpop.permute.xlu0 %2385
  %2387 = vrot.lane.b32.xlu0 %v2384, 117
  %v2388 = vpop.permute.xlu0 %2387
  %v2389 = vsel %vm657, %v2386, %v2388
  %v2391 = vsel %vm168, %v2389, 0
  %v2394 = vsel %vm168, %v2388, 0
  %2396 = vmatprep.subr.bf16.mxu0 %v2394
  %2397 = vmatpush1.bf16.msra.mxu0 %v2391
  %2398 = vmatprep.subr.bf16.mxu0 0
  %2399 = vmatpush1.bf16.msra.mxu0 0
  %2400 = vmatprep.subr.bf16.mxu0 0
  %2401 = vmatpush1.bf16.msra.mxu0 0
  %2402 = vmatprep.subr.bf16.mxu0 0
  %2403 = vmatpush1.bf16.msra.mxu0 0
  %2404 = vmatprep.subr.bf16.mxu0 0
  %2405 = vmatpush1.bf16.msra.mxu0 0
  %2406 = vmatprep.subr.bf16.mxu0 0
  %2407 = vmatpush1.bf16.msra.mxu0 0
  %2408 = vmatprep.subr.bf16.mxu0 0
  %2409 = vmatpush1.bf16.msra.mxu0 0
  %2410 = vmatprep.subr.bf16.mxu0 0
  %2411 = vmatpush1.bf16.msra.mxu0 0
  %2412 = vmatprep.subr.bf16.mxu0 0
  %2413 = vmatpush1.bf16.msra.mxu0 0
  %2414 = vmatprep.subr.bf16.mxu0 0
  %2415 = vmatpush1.bf16.msra.mxu0 0
  %2416 = vmatprep.subr.bf16.mxu0 0
  %2417 = vmatpush1.bf16.msra.mxu0 0
  %2418 = vmatprep.subr.bf16.mxu0 0
  %2419 = vmatpush1.bf16.msra.mxu0 0
  %2420 = vmatprep.subr.bf16.mxu0 0
  %2421 = vmatpush1.bf16.msra.mxu0 0
  %2422 = vmatprep.subr.bf16.mxu0 0
  %2423 = vmatpush1.bf16.msra.mxu0 0
  %2424 = vmatprep.subr.bf16.mxu0 0
  %2425 = vmatpush1.bf16.msra.mxu0 0
  %2426 = vmatprep.subr.bf16.mxu0 0
  %2427 = vmatpush1.bf16.msra.mxu0 0
  %2428 = vmatprep.mubr.bf16.mxu0 0
  %2429 = vmatmul.mubr.bf16.gmra.mrb[0].mxu0 %v660
  %v2430 = vpop.f32.mrb[0].mxu0
  %v2431 = vadd.f32 0.0, %v2430
  %v2432 = vpop.f32.mrb[0].mxu0
  %v2433 = vadd.f32 0.0, %v2432
  %v2434 = vpop.f32.mrb[0].mxu0
  %v2435 = vadd.f32 0.0, %v2434
  %v2436 = vpop.f32.mrb[0].mxu0
  %v2437 = vadd.f32 0.0, %v2436
  %2438 = vmatprep.mubr.bf16.mxu0 0
  %2439 = vmatmul.mubr.bf16.gmra.mrb[0].mxu0 %v663
  %v2440 = vpop.f32.mrb[0].mxu0
  %v2441 = vadd.f32 0.0, %v2440
  %v2442 = vpop.f32.mrb[0].mxu0
  %v2443 = vadd.f32 0.0, %v2442
  %v2444 = vpop.f32.mrb[0].mxu0
  %v2445 = vadd.f32 0.0, %v2444
  %v2446 = vpop.f32.mrb[0].mxu0
  %v2447 = vadd.f32 0.0, %v2446
  %2448 = vdwg.mxu0
  %v2449 = vadd.f32 %v2367, %v2431
  %v2450 = vadd.f32 %v2368, %v2433
  %v2451 = vadd.f32 %v2369, %v2435
  %v2452 = vadd.f32 %v2370, %v2437
  %v2453 = vadd.f32 %v2371, %v2441
  %v2454 = vadd.f32 %v2372, %v2443
  %v2455 = vadd.f32 %v2373, %v2445
  %v2456 = vadd.f32 %v2374, %v2447
  %v2457 = vld [vmem:[%s256] sm:$0xf]
  %v2460 = vunpack.c.l.s4 1983009808
  %v2461 = vunpack.c.0.s8 %v2460
  %v2462 = vlaneseq
  %v2463 = vshrl.u32 %v2462, 7
  %v2464 = vsub.s32 %v2461, %v2463
  %v2465 = vrot.slane %v2457, %v2464
  %v2466 = vcombine.high %v2465, %v2465
  %2467 = vrot.lane.b32.xlu0 %v2465, 117
  %v2468 = vpop.permute.xlu0 %2467
  %2469 = vrot.lane.b32.xlu0 %v2466, 117
  %v2470 = vpop.permute.xlu0 %2469
  %v2471 = vsel %vm657, %v2468, %v2470
  %v2473 = vsel %vm168, %v2471, 0
  %v2476 = vsel %vm168, %v2470, 0
  %2478 = vmatprep.subr.bf16.mxu0 %v2476
  %2479 = vmatpush1.bf16.msra.mxu0 %v2473
  %2480 = vmatprep.subr.bf16.mxu0 0
  %2481 = vmatpush1.bf16.msra.mxu0 0
  %2482 = vmatprep.subr.bf16.mxu0 0
  %2483 = vmatpush1.bf16.msra.mxu0 0
  %2484 = vmatprep.subr.bf16.mxu0 0
  %2485 = vmatpush1.bf16.msra.mxu0 0
  %2486 = vmatprep.subr.bf16.mxu0 0
  %2487 = vmatpush1.bf16.msra.mxu0 0
  %2488 = vmatprep.subr.bf16.mxu0 0
  %2489 = vmatpush1.bf16.msra.mxu0 0
  %2490 = vmatprep.subr.bf16.mxu0 0
  %2491 = vmatpush1.bf16.msra.mxu0 0
  %2492 = vmatprep.subr.bf16.mxu0 0
  %2493 = vmatpush1.bf16.msra.mxu0 0
  %2494 = vmatprep.subr.bf16.mxu0 0
  %2495 = vmatpush1.bf16.msra.mxu0 0
  %2496 = vmatprep.subr.bf16.mxu0 0
  %2497 = vmatpush1.bf16.msra.mxu0 0
  %2498 = vmatprep.subr.bf16.mxu0 0
  %2499 = vmatpush1.bf16.msra.mxu0 0
  %2500 = vmatprep.subr.bf16.mxu0 0
  %2501 = vmatpush1.bf16.msra.mxu0 0
  %2502 = vmatprep.subr.bf16.mxu0 0
  %2503 = vmatpush1.bf16.msra.mxu0 0
  %2504 = vmatprep.subr.bf16.mxu0 0
  %2505 = vmatpush1.bf16.msra.mxu0 0
  %2506 = vmatprep.subr.bf16.mxu0 0
  %2507 = vmatpush1.bf16.msra.mxu0 0
  %2508 = vmatprep.subr.bf16.mxu0 0
  %2509 = vmatpush1.bf16.msra.mxu0 0
  %2510 = vmatprep.mubr.bf16.mxu0 0
  %2511 = vmatmul.mubr.bf16.gmra.mrb[0].mxu0 %v758
  %v2512 = vpop.f32.mrb[0].mxu0
  %v2513 = vadd.f32 0.0, %v2512
  %v2514 = vpop.f32.mrb[0].mxu0
  %v2515 = vadd.f32 0.0, %v2514
  %v2516 = vpop.f32.mrb[0].mxu0
  %v2517 = vadd.f32 0.0, %v2516
  %v2518 = vpop.f32.mrb[0].mxu0
  %v2519 = vadd.f32 0.0, %v2518
  %2520 = vmatprep.mubr.bf16.mxu0 0
  %2521 = vmatmul.mubr.bf16.gmra.mrb[0].mxu0 %v761
  %v2522 = vpop.f32.mrb[0].mxu0
  %v2523 = vadd.f32 0.0, %v2522
  %v2524 = vpop.f32.mrb[0].mxu0
  %v2525 = vadd.f32 0.0, %v2524
  %v2526 = vpop.f32.mrb[0].mxu0
  %v2527 = vadd.f32 0.0, %v2526
  %v2528 = vpop.f32.mrb[0].mxu0
  %v2529 = vadd.f32 0.0, %v2528
  %2530 = vdwg.mxu0
  %v2531 = vadd.f32 %v2449, %v2513
  %v2532 = vadd.f32 %v2450, %v2515
  %v2533 = vadd.f32 %v2451, %v2517
  %v2534 = vadd.f32 %v2452, %v2519
  %v2535 = vadd.f32 %v2453, %v2523
  %v2536 = vadd.f32 %v2454, %v2525
  %v2537 = vadd.f32 %v2455, %v2527
  %v2538 = vadd.f32 %v2456, %v2529
  %v2539 = vld [vmem:[%s533] sm:$0xf]
  %v2542 = vunpack.c.l.s4 1983009808
  %v2543 = vunpack.c.0.s8 %v2542
  %v2544 = vlaneseq
  %v2545 = vshrl.u32 %v2544, 7
  %v2546 = vsub.s32 %v2543, %v2545
  %v2547 = vrot.slane %v2539, %v2546
  %v2548 = vcombine.high %v2547, %v2547
  %2549 = vrot.lane.b32.xlu0 %v2547, 108
  %v2550 = vpop.permute.xlu0 %2549
  %2551 = vrot.lane.b32.xlu0 %v2548, 108
  %v2552 = vpop.permute.xlu0 %2551
  %vm2553 = vcmask 883712
  %v2554 = vsel %vm2553, %v2550, %v2552
  %v2556 = vsel %vm168, %v2554, 0
  %v2559 = vsel %vm168, %v2552, 0
  %2561 = vmatprep.subr.bf16.mxu0 %v2559
  %2562 = vmatpush1.bf16.msra.mxu0 %v2556
  %2563 = vmatprep.subr.bf16.mxu0 0
  %2564 = vmatpush1.bf16.msra.mxu0 0
  %2565 = vmatprep.subr.bf16.mxu0 0
  %2566 = vmatpush1.bf16.msra.mxu0 0
  %2567 = vmatprep.subr.bf16.mxu0 0
  %2568 = vmatpush1.bf16.msra.mxu0 0
  %2569 = vmatprep.subr.bf16.mxu0 0
  %2570 = vmatpush1.bf16.msra.mxu0 0
  %2571 = vmatprep.subr.bf16.mxu0 0
  %2572 = vmatpush1.bf16.msra.mxu0 0
  %2573 = vmatprep.subr.bf16.mxu0 0
  %2574 = vmatpush1.bf16.msra.mxu0 0
  %2575 = vmatprep.subr.bf16.mxu0 0
  %2576 = vmatpush1.bf16.msra.mxu0 0
  %2577 = vmatprep.subr.bf16.mxu0 0
  %2578 = vmatpush1.bf16.msra.mxu0 0
  %2579 = vmatprep.subr.bf16.mxu0 0
  %2580 = vmatpush1.bf16.msra.mxu0 0
  %2581 = vmatprep.subr.bf16.mxu0 0
  %2582 = vmatpush1.bf16.msra.mxu0 0
  %2583 = vmatprep.subr.bf16.mxu0 0
  %2584 = vmatpush1.bf16.msra.mxu0 0
  %2585 = vmatprep.subr.bf16.mxu0 0
  %2586 = vmatpush1.bf16.msra.mxu0 0
  %2587 = vmatprep.subr.bf16.mxu0 0
  %2588 = vmatpush1.bf16.msra.mxu0 0
  %2589 = vmatprep.subr.bf16.mxu0 0
  %2590 = vmatpush1.bf16.msra.mxu0 0
  %2591 = vmatprep.subr.bf16.mxu0 0
  %2592 = vmatpush1.bf16.msra.mxu0 0
  %2593 = vmatprep.mubr.bf16.mxu0 0
  %2594 = vmatmul.mubr.bf16.gmra.mrb[0].mxu0 %v856
  %v2595 = vpop.f32.mrb[0].mxu0
  %v2596 = vadd.f32 0.0, %v2595
  %v2597 = vpop.f32.mrb[0].mxu0
  %v2598 = vadd.f32 0.0, %v2597
  %v2599 = vpop.f32.mrb[0].mxu0
  %v2600 = vadd.f32 0.0, %v2599
  %v2601 = vpop.f32.mrb[0].mxu0
  %v2602 = vadd.f32 0.0, %v2601
  %2603 = vmatprep.mubr.bf16.mxu0 0
  %2604 = vmatmul.mubr.bf16.gmra.mrb[0].mxu0 %v859
  %v2605 = vpop.f32.mrb[0].mxu0
  %v2606 = vadd.f32 0.0, %v2605
  %v2607 = vpop.f32.mrb[0].mxu0
  %v2608 = vadd.f32 0.0, %v2607
  %v2609 = vpop.f32.mrb[0].mxu0
  %v2610 = vadd.f32 0.0, %v2609
  %v2611 = vpop.f32.mrb[0].mxu0
  %v2612 = vadd.f32 0.0, %v2611
  %2613 = vdwg.mxu0
  %v2614 = vadd.f32 %v2531, %v2596
  %v2615 = vadd.f32 %v2532, %v2598
  %v2616 = vadd.f32 %v2533, %v2600
  %v2617 = vadd.f32 %v2534, %v2602
  %v2618 = vadd.f32 %v2535, %v2606
  %v2619 = vadd.f32 %v2536, %v2608
  %v2620 = vadd.f32 %v2537, %v2610
  %v2621 = vadd.f32 %v2538, %v2612
  %v2622 = vld [vmem:[#allocation2] sm:$0xf]
  %v2625 = vunpack.c.l.s4 1983009808
  %v2626 = vunpack.c.0.s8 %v2625
  %v2627 = vlaneseq
  %v2628 = vshrl.u32 %v2627, 7
  %v2629 = vsub.s32 %v2626, %v2628
  %v2630 = vrot.slane %v2622, %v2629
  %v2631 = vcombine.high %v2630, %v2630
  %2632 = vrot.lane.b32.xlu0 %v2630, 107
  %v2633 = vpop.permute.xlu0 %2632
  %2634 = vrot.lane.b32.xlu0 %v2631, 107
  %v2635 = vpop.permute.xlu0 %2634
  %vm2636 = vcmask 875520
  %v2637 = vsel %vm2636, %v2633, %v2635
  %v2639 = vsel %vm168, %v2637, 0
  %v2642 = vsel %vm168, %v2635, 0
  %2644 = vmatprep.subr.bf16.mxu0 %v2642
  %2645 = vmatpush1.bf16.msra.mxu0 %v2639
  %2646 = vmatprep.subr.bf16.mxu0 0
  %2647 = vmatpush1.bf16.msra.mxu0 0
  %2648 = vmatprep.subr.bf16.mxu0 0
  %2649 = vmatpush1.bf16.msra.mxu0 0
  %2650 = vmatprep.subr.bf16.mxu0 0
  %2651 = vmatpush1.bf16.msra.mxu0 0
  %2652 = vmatprep.subr.bf16.mxu0 0
  %2653 = vmatpush1.bf16.msra.mxu0 0
  %2654 = vmatprep.subr.bf16.mxu0 0
  %2655 = vmatpush1.bf16.msra.mxu0 0
  %2656 = vmatprep.subr.bf16.mxu0 0
  %2657 = vmatpush1.bf16.msra.mxu0 0
  %2658 = vmatprep.subr.bf16.mxu0 0
  %2659 = vmatpush1.bf16.msra.mxu0 0
  %2660 = vmatprep.subr.bf16.mxu0 0
  %2661 = vmatpush1.bf16.msra.mxu0 0
  %2662 = vmatprep.subr.bf16.mxu0 0
  %2663 = vmatpush1.bf16.msra.mxu0 0
  %2664 = vmatprep.subr.bf16.mxu0 0
  %2665 = vmatpush1.bf16.msra.mxu0 0
  %2666 = vmatprep.subr.bf16.mxu0 0
  %2667 = vmatpush1.bf16.msra.mxu0 0
  %2668 = vmatprep.subr.bf16.mxu0 0
  %2669 = vmatpush1.bf16.msra.mxu0 0
  %2670 = vmatprep.subr.bf16.mxu0 0
  %2671 = vmatpush1.bf16.msra.mxu0 0
  %2672 = vmatprep.subr.bf16.mxu0 0
  %2673 = vmatpush1.bf16.msra.mxu0 0
  %2674 = vmatprep.subr.bf16.mxu0 0
  %2675 = vmatpush1.bf16.msra.mxu0 0
  %2676 = vmatprep.mubr.bf16.mxu0 0
  %2677 = vmatmul.mubr.bf16.gmra.mrb[0].mxu0 %v954
  %v2678 = vpop.f32.mrb[0].mxu0
  %v2679 = vadd.f32 0.0, %v2678
  %v2680 = vpop.f32.mrb[0].mxu0
  %v2681 = vadd.f32 0.0, %v2680
  %v2682 = vpop.f32.mrb[0].mxu0
  %v2683 = vadd.f32 0.0, %v2682
  %v2684 = vpop.f32.mrb[0].mxu0
  %v2685 = vadd.f32 0.0, %v2684
  %2686 = vmatprep.mubr.bf16.mxu0 0
  %2687 = vmatmul.mubr.bf16.gmra.mrb[0].mxu0 %v957
  %v2688 = vpop.f32.mrb[0].mxu0
  %v2689 = vadd.f32 0.0, %v2688
  %v2690 = vpop.f32.mrb[0].mxu0
  %v2691 = vadd.f32 0.0, %v2690
  %v2692 = vpop.f32.mrb[0].mxu0
  %v2693 = vadd.f32 0.0, %v2692
  %v2694 = vpop.f32.mrb[0].mxu0
  %v2695 = vadd.f32 0.0, %v2694
  %2696 = vdwg.mxu0
  %v2697 = vadd.f32 %v2614, %v2679
  %v2698 = vadd.f32 %v2615, %v2681
  %v2699 = vadd.f32 %v2616, %v2683
  %v2700 = vadd.f32 %v2617, %v2685
  %v2701 = vadd.f32 %v2618, %v2689
  %v2702 = vadd.f32 %v2619, %v2691
  %v2703 = vadd.f32 %v2620, %v2693
  %v2704 = vadd.f32 %v2621, %v2695
  %v2705 = vld [vmem:[%s533] sm:$0xf]
  %v2708 = vunpack.c.l.s4 1983009808
  %v2709 = vunpack.c.0.s8 %v2708
  %v2710 = vlaneseq
  %v2711 = vshrl.u32 %v2710, 7
  %v2712 = vsub.s32 %v2709, %v2711
  %v2713 = vrot.slane %v2705, %v2712
  %v2714 = vcombine.high %v2713, %v2713
  %2715 = vrot.lane.b32.xlu0 %v2713, 107
  %v2716 = vpop.permute.xlu0 %2715
  %2717 = vrot.lane.b32.xlu0 %v2714, 107
  %v2718 = vpop.permute.xlu0 %2717
  %v2719 = vsel %vm2636, %v2716, %v2718
  %v2721 = vsel %vm168, %v2719, 0
  %v2724 = vsel %vm168, %v2718, 0
  %2726 = vmatprep.subr.bf16.mxu0 %v2724
  %2727 = vmatpush1.bf16.msra.mxu0 %v2721
  %2728 = vmatprep.subr.bf16.mxu0 0
  %2729 = vmatpush1.bf16.msra.mxu0 0
  %2730 = vmatprep.subr.bf16.mxu0 0
  %2731 = vmatpush1.bf16.msra.mxu0 0
  %2732 = vmatprep.subr.bf16.mxu0 0
  %2733 = vmatpush1.bf16.msra.mxu0 0
  %2734 = vmatprep.subr.bf16.mxu0 0
  %2735 = vmatpush1.bf16.msra.mxu0 0
  %2736 = vmatprep.subr.bf16.mxu0 0
  %2737 = vmatpush1.bf16.msra.mxu0 0
  %2738 = vmatprep.subr.bf16.mxu0 0
  %2739 = vmatpush1.bf16.msra.mxu0 0
  %2740 = vmatprep.subr.bf16.mxu0 0
  %2741 = vmatpush1.bf16.msra.mxu0 0
  %2742 = vmatprep.subr.bf16.mxu0 0
  %2743 = vmatpush1.bf16.msra.mxu0 0
  %2744 = vmatprep.subr.bf16.mxu0 0
  %2745 = vmatpush1.bf16.msra.mxu0 0
  %2746 = vmatprep.subr.bf16.mxu0 0
  %2747 = vmatpush1.bf16.msra.mxu0 0
  %2748 = vmatprep.subr.bf16.mxu0 0
  %2749 = vmatpush1.bf16.msra.mxu0 0
  %2750 = vmatprep.subr.bf16.mxu0 0
  %2751 = vmatpush1.bf16.msra.mxu0 0
  %2752 = vmatprep.subr.bf16.mxu0 0
  %2753 = vmatpush1.bf16.msra.mxu0 0
  %2754 = vmatprep.subr.bf16.mxu0 0
  %2755 = vmatpush1.bf16.msra.mxu0 0
  %2756 = vmatprep.subr.bf16.mxu0 0
  %2757 = vmatpush1.bf16.msra.mxu0 0
  %2758 = vmatprep.mubr.bf16.mxu0 0
  %2759 = vmatmul.mubr.bf16.gmra.mrb[0].mxu0 %v1052
  %v2760 = vpop.f32.mrb[0].mxu0
  %v2761 = vadd.f32 0.0, %v2760
  %v2762 = vpop.f32.mrb[0].mxu0
  %v2763 = vadd.f32 0.0, %v2762
  %v2764 = vpop.f32.mrb[0].mxu0
  %v2765 = vadd.f32 0.0, %v2764
  %v2766 = vpop.f32.mrb[0].mxu0
  %v2767 = vadd.f32 0.0, %v2766
  %2768 = vmatprep.mubr.bf16.mxu0 0
  %2769 = vmatmul.mubr.bf16.gmra.mrb[0].mxu0 %v1055
  %v2770 = vpop.f32.mrb[0].mxu0
  %v2771 = vadd.f32 0.0, %v2770
  %v2772 = vpop.f32.mrb[0].mxu0
  %v2773 = vadd.f32 0.0, %v2772
  %v2774 = vpop.f32.mrb[0].mxu0
  %v2775 = vadd.f32 0.0, %v2774
  %v2776 = vpop.f32.mrb[0].mxu0
  %v2777 = vadd.f32 0.0, %v2776
  %2778 = vdwg.mxu0
  %v2779 = vadd.f32 %v2697, %v2761
  %v2780 = vadd.f32 %v2698, %v2763
  %v2781 = vadd.f32 %v2699, %v2765
  %v2782 = vadd.f32 %v2700, %v2767
  %v2783 = vadd.f32 %v2701, %v2771
  %v2784 = vadd.f32 %v2702, %v2773
  %v2785 = vadd.f32 %v2703, %v2775
  %v2786 = vadd.f32 %v2704, %v2777
  %v2787 = vadd.f32 %v2779, %v1127
  %v2788 = vadd.f32 %v2780, %v1127
  %v2789 = vadd.f32 %v2781, %v1132
  %v2790 = vadd.f32 %v2782, %v1132
  %v2791 = vadd.f32 %v2783, %v1137
  %v2792 = vadd.f32 %v2784, %v1137
  %v2793 = vadd.f32 %v2785, %v1142
  %v2794 = vadd.f32 %v2786, %v1142
  %s2795 = scalar_lea.vmem %s10, 128
  %2796 = vst [vmem:[%s2795] sm:$0xff] %v2787
  %2797 = vst.msk [vmem:[%s2795 + $0x8] sm:$0xff] %vm1153, %v2788
  %2798 = vst [vmem:[%s2795 + $0x10] sm:$0xff] %v2789
  %2799 = vst.msk [vmem:[%s2795 + $0x18] sm:$0xff] %vm1153, %v2790
  %2800 = vst [vmem:[%s2795 + $0x20] sm:$0xff] %v2791
  %2801 = vst.msk [vmem:[%s2795 + $0x28] sm:$0xff] %vm1153, %v2792
  %2802 = vst [vmem:[%s2795 + $0x30] sm:$0xff] %v2793
  %2803 = vst.msk [vmem:[%s2795 + $0x38] sm:$0xff] %vm1153, %v2794
  %v2804 = vmul.f32 %v2787, %v1164
  %v2805 = vmul.f32 %v2788, %v1164
  %v2806 = vmul.f32 %v2789, %v1169
  %v2807 = vmul.f32 %v2790, %v1169
  %v2808 = vmul.f32 %v2791, %v1174
  %v2809 = vmul.f32 %v2792, %v1174
  %v2810 = vmul.f32 %v2793, %v1179
  %v2811 = vmul.f32 %v2794, %v1179
  %v2812 = vadd.f32 %v2804, %v1192
  %v2813 = vadd.f32 %v2805, %v1192
  %v2814 = vadd.f32 %v2806, %v1197
  %v2815 = vadd.f32 %v2807, %v1197
  %v2816 = vadd.f32 %v2808, %v1202
  %v2817 = vadd.f32 %v2809, %v1202
  %v2818 = vadd.f32 %v2810, %v1207
  %v2819 = vadd.f32 %v2811, %v1207
  %vm2820 = vcmp.ge.f32.partialorder %v2812, 0.0
  %vm2821 = vcmp.ge.f32.partialorder %v2813, 0.0
  %vm2822 = vcmp.ge.f32.partialorder %v2814, 0.0
  %vm2823 = vcmp.ge.f32.partialorder %v2815, 0.0
  %vm2824 = vcmp.ge.f32.partialorder %v2816, 0.0
  %vm2825 = vcmp.ge.f32.partialorder %v2817, 0.0
  %vm2826 = vcmp.ge.f32.partialorder %v2818, 0.0
  %vm2827 = vcmp.ge.f32.partialorder %v2819, 0.0
  %v2828 = vmul.f32 %v2812, 0.01
  %v2829 = vmul.f32 %v2813, 0.01
  %v2830 = vmul.f32 %v2814, 0.01
  %v2831 = vmul.f32 %v2815, 0.01
  %v2832 = vmul.f32 %v2816, 0.01
  %v2833 = vmul.f32 %v2817, 0.01
  %v2834 = vmul.f32 %v2818, 0.01
  %v2835 = vmul.f32 %v2819, 0.01
  %v2836 = vsel %vm2820, %v2812, %v2828
  %v2837 = vsel %vm2821, %v2813, %v2829
  %v2838 = vsel %vm2822, %v2814, %v2830
  %v2839 = vsel %vm2823, %v2815, %v2831
  %v2840 = vsel %vm2824, %v2816, %v2832
  %v2841 = vsel %vm2825, %v2817, %v2833
  %v2842 = vsel %vm2826, %v2818, %v2834
  %v2843 = vsel %vm2827, %v2819, %v2835
  %v2844 = vmul.f32 %v2836, %v1246
  %v2845 = vmul.f32 %v2837, %v1244
  %v2846 = vmul.f32 %v2838, %v1246
  %v2847 = vmul.f32 %v2839, %v1244
  %v2848 = vmul.f32 %v2840, %v1246
  %v2849 = vmul.f32 %v2841, %v1244
  %v2850 = vmul.f32 %v2842, %v1246
  %v2851 = vmul.f32 %v2843, %v1244
  %v2852 = vpack.c.bf16 %v2846, %v2844
  %v2853 = vpack.c.bf16 %v2847, %v2845
  %v2854 = vpack.c.bf16 %v2850, %v2848
  %v2855 = vpack.c.bf16 %v2851, %v2849
  %s2856 = scalar_lea.vmem [#allocation3], 96
  %2857 = vst [vmem:[%s2856 + $0x8] sm:$0xff] %v2852
  %2858 = vst.msk [vmem:[%s2856 + $0x10] sm:$0xff] %vm1153, %v2853
  %2859 = vst [vmem:[%s2856 + $0x20] sm:$0xff] %v2854
  %2860 = vst.msk [vmem:[%s2856 + $0x28] sm:$0xff] %vm1153, %v2855
  %v2861 = vld [vmem:[#allocation2] sm:$0xf]
  %v2862 = vld [vmem:[%s533] sm:$0xf]
  %v2865 = vunpack.c.l.s4 1983009808
  %v2866 = vunpack.c.0.s8 %v2865
  %v2867 = vlaneseq
  %v2868 = vshrl.u32 %v2867, 7
  %v2869 = vsub.s32 %v2866, %v2868
  %v2870 = vrot.slane %v2862, %v2869
  %v2871 = vcombine.high %v2870, %v2870
  %2872 = vrot.lane.b32.xlu0 %v2870, 117
  %v2873 = vpop.permute.xlu0 %2872
  %2874 = vrot.lane.b32.xlu0 %v2871, 117
  %v2875 = vpop.permute.xlu0 %2874
  %v2876 = vsel %vm657, %v2873, %v2875
  %v2878 = vsel %vm168, %v2876, 0
  %v2881 = vsel %vm168, %v2875, 0
  %2883 = vmatprep.subr.bf16.mxu0 %v2881
  %2884 = vmatpush1.bf16.msra.mxu0 %v2878
  %2885 = vmatprep.subr.bf16.mxu0 0
  %2886 = vmatpush1.bf16.msra.mxu0 0
  %2887 = vmatprep.subr.bf16.mxu0 0
  %2888 = vmatpush1.bf16.msra.mxu0 0
  %2889 = vmatprep.subr.bf16.mxu0 0
  %2890 = vmatpush1.bf16.msra.mxu0 0
  %2891 = vmatprep.subr.bf16.mxu0 0
  %2892 = vmatpush1.bf16.msra.mxu0 0
  %2893 = vmatprep.subr.bf16.mxu0 0
  %2894 = vmatpush1.bf16.msra.mxu0 0
  %2895 = vmatprep.subr.bf16.mxu0 0
  %2896 = vmatpush1.bf16.msra.mxu0 0
  %2897 = vmatprep.subr.bf16.mxu0 0
  %2898 = vmatpush1.bf16.msra.mxu0 0
  %2899 = vmatprep.subr.bf16.mxu0 0
  %2900 = vmatpush1.bf16.msra.mxu0 0
  %2901 = vmatprep.subr.bf16.mxu0 0
  %2902 = vmatpush1.bf16.msra.mxu0 0
  %2903 = vmatprep.subr.bf16.mxu0 0
  %2904 = vmatpush1.bf16.msra.mxu0 0
  %2905 = vmatprep.subr.bf16.mxu0 0
  %2906 = vmatpush1.bf16.msra.mxu0 0
  %2907 = vmatprep.subr.bf16.mxu0 0
  %2908 = vmatpush1.bf16.msra.mxu0 0
  %2909 = vmatprep.subr.bf16.mxu0 0
  %2910 = vmatpush1.bf16.msra.mxu0 0
  %2911 = vmatprep.subr.bf16.mxu0 0
  %2912 = vmatpush1.bf16.msra.mxu0 0
  %2913 = vmatprep.subr.bf16.mxu0 0
  %2914 = vmatpush1.bf16.msra.mxu0 0
  %2915 = vmatprep.mubr.bf16.mxu0 0
  %2916 = vmatmul.mubr.bf16.gmra.mrb[0].mxu0 %v287
  %v2917 = vpop.f32.mrb[0].mxu0
  %v2918 = vadd.f32 0.0, %v2917
  %v2919 = vpop.f32.mrb[0].mxu0
  %v2920 = vadd.f32 0.0, %v2919
  %v2921 = vpop.f32.mrb[0].mxu0
  %v2922 = vadd.f32 0.0, %v2921
  %v2923 = vpop.f32.mrb[0].mxu0
  %v2924 = vadd.f32 0.0, %v2923
  %2925 = vmatprep.mubr.bf16.mxu0 0
  %2926 = vmatmul.mubr.bf16.gmra.mrb[0].mxu0 %v290
  %v2927 = vpop.f32.mrb[0].mxu0
  %v2928 = vadd.f32 0.0, %v2927
  %v2929 = vpop.f32.mrb[0].mxu0
  %v2930 = vadd.f32 0.0, %v2929
  %v2931 = vpop.f32.mrb[0].mxu0
  %v2932 = vadd.f32 0.0, %v2931
  %v2933 = vpop.f32.mrb[0].mxu0
  %v2934 = vadd.f32 0.0, %v2933
  %2935 = vdwg.mxu0
  %v2938 = vunpack.c.l.s4 1983009808
  %v2939 = vunpack.c.0.s8 %v2938
  %v2940 = vlaneseq
  %v2941 = vshrl.u32 %v2940, 7
  %v2942 = vsub.s32 %v2939, %v2941
  %v2943 = vrot.slane %v2861, %v2942
  %v2944 = vcombine.high %v2943, %v2943
  %2945 = vrot.lane.b32.xlu0 %v2943, 117
  %v2946 = vpop.permute.xlu0 %2945
  %2947 = vrot.lane.b32.xlu0 %v2944, 117
  %v2948 = vpop.permute.xlu0 %2947
  %v2949 = vsel %vm657, %v2946, %v2948
  %v2951 = vsel %vm168, %v2949, 0
  %v2954 = vsel %vm168, %v2948, 0
  %2956 = vmatprep.subr.bf16.mxu0 %v2954
  %2957 = vmatpush1.bf16.msra.mxu0 %v2951
  %2958 = vmatprep.subr.bf16.mxu0 0
  %2959 = vmatpush1.bf16.msra.mxu0 0
  %2960 = vmatprep.subr.bf16.mxu0 0
  %2961 = vmatpush1.bf16.msra.mxu0 0
  %2962 = vmatprep.subr.bf16.mxu0 0
  %2963 = vmatpush1.bf16.msra.mxu0 0
  %2964 = vmatprep.subr.bf16.mxu0 0
  %2965 = vmatpush1.bf16.msra.mxu0 0
  %2966 = vmatprep.subr.bf16.mxu0 0
  %2967 = vmatpush1.bf16.msra.mxu0 0
  %2968 = vmatprep.subr.bf16.mxu0 0
  %2969 = vmatpush1.bf16.msra.mxu0 0
  %2970 = vmatprep.subr.bf16.mxu0 0
  %2971 = vmatpush1.bf16.msra.mxu0 0
  %2972 = vmatprep.subr.bf16.mxu0 0
  %2973 = vmatpush1.bf16.msra.mxu0 0
  %2974 = vmatprep.subr.bf16.mxu0 0
  %2975 = vmatpush1.bf16.msra.mxu0 0
  %2976 = vmatprep.subr.bf16.mxu0 0
  %2977 = vmatpush1.bf16.msra.mxu0 0
  %2978 = vmatprep.subr.bf16.mxu0 0
  %2979 = vmatpush1.bf16.msra.mxu0 0
  %2980 = vmatprep.subr.bf16.mxu0 0
  %2981 = vmatpush1.bf16.msra.mxu0 0
  %2982 = vmatprep.subr.bf16.mxu0 0
  %2983 = vmatpush1.bf16.msra.mxu0 0
  %2984 = vmatprep.subr.bf16.mxu0 0
  %2985 = vmatpush1.bf16.msra.mxu0 0
  %2986 = vmatprep.subr.bf16.mxu0 0
  %2987 = vmatpush1.bf16.msra.mxu0 0
  %2988 = vmatprep.mubr.bf16.mxu0 0
  %2989 = vmatmul.mubr.bf16.gmra.mrb[0].mxu0 %v371
  %v2990 = vpop.f32.mrb[0].mxu0
  %v2991 = vadd.f32 %v2918, %v2990
  %v2992 = vpop.f32.mrb[0].mxu0
  %v2993 = vadd.f32 %v2920, %v2992
  %v2994 = vpop.f32.mrb[0].mxu0
  %v2995 = vadd.f32 %v2922, %v2994
  %v2996 = vpop.f32.mrb[0].mxu0
  %v2997 = vadd.f32 %v2924, %v2996
  %2998 = vmatprep.mubr.bf16.mxu0 0
  %2999 = vmatmul.mubr.bf16.gmra.mrb[0].mxu0 %v374
  %v3000 = vpop.f32.mrb[0].mxu0
  %v3001 = vadd.f32 %v2928, %v3000
  %v3002 = vpop.f32.mrb[0].mxu0
  %v3003 = vadd.f32 %v2930, %v3002
  %v3004 = vpop.f32.mrb[0].mxu0
  %v3005 = vadd.f32 %v2932, %v3004
  %v3006 = vpop.f32.mrb[0].mxu0
  %v3007 = vadd.f32 %v2934, %v3006
  %3008 = vdwg.mxu0
  %v3009 = vld [vmem:[#allocation2] sm:$0xf]
  %v3012 = vunpack.c.l.s4 1983009808
  %v3013 = vunpack.c.0.s8 %v3012
  %v3014 = vlaneseq
  %v3015 = vshrl.u32 %v3014, 7
  %v3016 = vsub.s32 %v3013, %v3015
  %v3017 = vrot.slane %v3009, %v3016
  %v3018 = vcombine.high %v3017, %v3017
  %3019 = vrot.lane.b32.xlu0 %v3017, 116
  %v3020 = vpop.permute.xlu0 %3019
  %3021 = vrot.lane.b32.xlu0 %v3018, 116
  %v3022 = vpop.permute.xlu0 %3021
  %v3023 = vsel %vm1674, %v3020, %v3022
  %v3025 = vsel %vm168, %v3023, 0
  %v3028 = vsel %vm168, %v3022, 0
  %3030 = vmatprep.subr.bf16.mxu0 %v3028
  %3031 = vmatpush1.bf16.msra.mxu0 %v3025
  %3032 = vmatprep.subr.bf16.mxu0 0
  %3033 = vmatpush1.bf16.msra.mxu0 0
  %3034 = vmatprep.subr.bf16.mxu0 0
  %3035 = vmatpush1.bf16.msra.mxu0 0
  %3036 = vmatprep.subr.bf16.mxu0 0
  %3037 = vmatpush1.bf16.msra.mxu0 0
  %3038 = vmatprep.subr.bf16.mxu0 0
  %3039 = vmatpush1.bf16.msra.mxu0 0
  %3040 = vmatprep.subr.bf16.mxu0 0
  %3041 = vmatpush1.bf16.msra.mxu0 0
  %3042 = vmatprep.subr.bf16.mxu0 0
  %3043 = vmatpush1.bf16.msra.mxu0 0
  %3044 = vmatprep.subr.bf16.mxu0 0
  %3045 = vmatpush1.bf16.msra.mxu0 0
  %3046 = vmatprep.subr.bf16.mxu0 0
  %3047 = vmatpush1.bf16.msra.mxu0 0
  %3048 = vmatprep.subr.bf16.mxu0 0
  %3049 = vmatpush1.bf16.msra.mxu0 0
  %3050 = vmatprep.subr.bf16.mxu0 0
  %3051 = vmatpush1.bf16.msra.mxu0 0
  %3052 = vmatprep.subr.bf16.mxu0 0
  %3053 = vmatpush1.bf16.msra.mxu0 0
  %3054 = vmatprep.subr.bf16.mxu0 0
  %3055 = vmatpush1.bf16.msra.mxu0 0
  %3056 = vmatprep.subr.bf16.mxu0 0
  %3057 = vmatpush1.bf16.msra.mxu0 0
  %3058 = vmatprep.subr.bf16.mxu0 0
  %3059 = vmatpush1.bf16.msra.mxu0 0
  %3060 = vmatprep.subr.bf16.mxu0 0
  %3061 = vmatpush1.bf16.msra.mxu0 0
  %3062 = vmatprep.mubr.bf16.mxu0 0
  %3063 = vmatmul.mubr.bf16.gmra.mrb[0].mxu0 %v461
  %v3064 = vpop.f32.mrb[0].mxu0
  %v3065 = vadd.f32 0.0, %v3064
  %v3066 = vpop.f32.mrb[0].mxu0
  %v3067 = vadd.f32 0.0, %v3066
  %v3068 = vpop.f32.mrb[0].mxu0
  %v3069 = vadd.f32 0.0, %v3068
  %v3070 = vpop.f32.mrb[0].mxu0
  %v3071 = vadd.f32 0.0, %v3070
  %3072 = vmatprep.mubr.bf16.mxu0 0
  %3073 = vmatmul.mubr.bf16.gmra.mrb[0].mxu0 %v464
  %v3074 = vpop.f32.mrb[0].mxu0
  %v3075 = vadd.f32 0.0, %v3074
  %v3076 = vpop.f32.mrb[0].mxu0
  %v3077 = vadd.f32 0.0, %v3076
  %v3078 = vpop.f32.mrb[0].mxu0
  %v3079 = vadd.f32 0.0, %v3078
  %v3080 = vpop.f32.mrb[0].mxu0
  %v3081 = vadd.f32 0.0, %v3080
  %3082 = vdwg.mxu0
  %v3083 = vadd.f32 %v2991, %v3065
  %v3084 = vadd.f32 %v2993, %v3067
  %v3085 = vadd.f32 %v2995, %v3069
  %v3086 = vadd.f32 %v2997, %v3071
  %v3087 = vadd.f32 %v3001, %v3075
  %v3088 = vadd.f32 %v3003, %v3077
  %v3089 = vadd.f32 %v3005, %v3079
  %v3090 = vadd.f32 %v3007, %v3081
  %v3091 = vld [vmem:[%s258] sm:$0xf]
  %v3094 = vunpack.c.l.s4 1983009808
  %v3095 = vunpack.c.0.s8 %v3094
  %v3096 = vlaneseq
  %v3097 = vshrl.u32 %v3096, 7
  %v3098 = vsub.s32 %v3095, %v3097
  %v3099 = vrot.slane %v3091, %v3098
  %v3100 = vcombine.high %v3099, %v3099
  %3101 = vrot.lane.b32.xlu0 %v3099, 117
  %v3102 = vpop.permute.xlu0 %3101
  %3103 = vrot.lane.b32.xlu0 %v3100, 117
  %v3104 = vpop.permute.xlu0 %3103
  %v3105 = vsel %vm657, %v3102, %v3104
  %v3107 = vsel %vm168, %v3105, 0
  %v3110 = vsel %vm168, %v3104, 0
  %3112 = vmatprep.subr.bf16.mxu0 %v3110
  %3113 = vmatpush1.bf16.msra.mxu0 %v3107
  %3114 = vmatprep.subr.bf16.mxu0 0
  %3115 = vmatpush1.bf16.msra.mxu0 0
  %3116 = vmatprep.subr.bf16.mxu0 0
  %3117 = vmatpush1.bf16.msra.mxu0 0
  %3118 = vmatprep.subr.bf16.mxu0 0
  %3119 = vmatpush1.bf16.msra.mxu0 0
  %3120 = vmatprep.subr.bf16.mxu0 0
  %3121 = vmatpush1.bf16.msra.mxu0 0
  %3122 = vmatprep.subr.bf16.mxu0 0
  %3123 = vmatpush1.bf16.msra.mxu0 0
  %3124 = vmatprep.subr.bf16.mxu0 0
  %3125 = vmatpush1.bf16.msra.mxu0 0
  %3126 = vmatprep.subr.bf16.mxu0 0
  %3127 = vmatpush1.bf16.msra.mxu0 0
  %3128 = vmatprep.subr.bf16.mxu0 0
  %3129 = vmatpush1.bf16.msra.mxu0 0
  %3130 = vmatprep.subr.bf16.mxu0 0
  %3131 = vmatpush1.bf16.msra.mxu0 0
  %3132 = vmatprep.subr.bf16.mxu0 0
  %3133 = vmatpush1.bf16.msra.mxu0 0
  %3134 = vmatprep.subr.bf16.mxu0 0
  %3135 = vmatpush1.bf16.msra.mxu0 0
  %3136 = vmatprep.subr.bf16.mxu0 0
  %3137 = vmatpush1.bf16.msra.mxu0 0
  %3138 = vmatprep.subr.bf16.mxu0 0
  %3139 = vmatpush1.bf16.msra.mxu0 0
  %3140 = vmatprep.subr.bf16.mxu0 0
  %3141 = vmatpush1.bf16.msra.mxu0 0
  %3142 = vmatprep.subr.bf16.mxu0 0
  %3143 = vmatpush1.bf16.msra.mxu0 0
  %3144 = vmatprep.mubr.bf16.mxu0 0
  %3145 = vmatmul.mubr.bf16.gmra.mrb[0].mxu0 %v561
  %v3146 = vpop.f32.mrb[0].mxu0
  %v3147 = vadd.f32 0.0, %v3146
  %v3148 = vpop.f32.mrb[0].mxu0
  %v3149 = vadd.f32 0.0, %v3148
  %v3150 = vpop.f32.mrb[0].mxu0
  %v3151 = vadd.f32 0.0, %v3150
  %v3152 = vpop.f32.mrb[0].mxu0
  %v3153 = vadd.f32 0.0, %v3152
  %3154 = vmatprep.mubr.bf16.mxu0 0
  %3155 = vmatmul.mubr.bf16.gmra.mrb[0].mxu0 %v564
  %v3156 = vpop.f32.mrb[0].mxu0
  %v3157 = vadd.f32 0.0, %v3156
  %v3158 = vpop.f32.mrb[0].mxu0
  %v3159 = vadd.f32 0.0, %v3158
  %v3160 = vpop.f32.mrb[0].mxu0
  %v3161 = vadd.f32 0.0, %v3160
  %v3162 = vpop.f32.mrb[0].mxu0
  %v3163 = vadd.f32 0.0, %v3162
  %3164 = vdwg.mxu0
  %v3165 = vadd.f32 %v3083, %v3147
  %v3166 = vadd.f32 %v3084, %v3149
  %v3167 = vadd.f32 %v3085, %v3151
  %v3168 = vadd.f32 %v3086, %v3153
  %v3169 = vadd.f32 %v3087, %v3157
  %v3170 = vadd.f32 %v3088, %v3159
  %v3171 = vadd.f32 %v3089, %v3161
  %v3172 = vadd.f32 %v3090, %v3163
  %v3173 = vld [vmem:[%s256] sm:$0xf]
  %v3176 = vunpack.c.l.s4 1983009808
  %v3177 = vunpack.c.0.s8 %v3176
  %v3178 = vlaneseq
  %v3179 = vshrl.u32 %v3178, 7
  %v3180 = vsub.s32 %v3177, %v3179
  %v3181 = vrot.slane %v3173, %v3180
  %v3182 = vcombine.high %v3181, %v3181
  %3183 = vrot.lane.b32.xlu0 %v3181, 117
  %v3184 = vpop.permute.xlu0 %3183
  %3185 = vrot.lane.b32.xlu0 %v3182, 117
  %v3186 = vpop.permute.xlu0 %3185
  %v3187 = vsel %vm657, %v3184, %v3186
  %v3189 = vsel %vm168, %v3187, 0
  %v3192 = vsel %vm168, %v3186, 0
  %3194 = vmatprep.subr.bf16.mxu0 %v3192
  %3195 = vmatpush1.bf16.msra.mxu0 %v3189
  %3196 = vmatprep.subr.bf16.mxu0 0
  %3197 = vmatpush1.bf16.msra.mxu0 0
  %3198 = vmatprep.subr.bf16.mxu0 0
  %3199 = vmatpush1.bf16.msra.mxu0 0
  %3200 = vmatprep.subr.bf16.mxu0 0
  %3201 = vmatpush1.bf16.msra.mxu0 0
  %3202 = vmatprep.subr.bf16.mxu0 0
  %3203 = vmatpush1.bf16.msra.mxu0 0
  %3204 = vmatprep.subr.bf16.mxu0 0
  %3205 = vmatpush1.bf16.msra.mxu0 0
  %3206 = vmatprep.subr.bf16.mxu0 0
  %3207 = vmatpush1.bf16.msra.mxu0 0
  %3208 = vmatprep.subr.bf16.mxu0 0
  %3209 = vmatpush1.bf16.msra.mxu0 0
  %3210 = vmatprep.subr.bf16.mxu0 0
  %3211 = vmatpush1.bf16.msra.mxu0 0
  %3212 = vmatprep.subr.bf16.mxu0 0
  %3213 = vmatpush1.bf16.msra.mxu0 0
  %3214 = vmatprep.subr.bf16.mxu0 0
  %3215 = vmatpush1.bf16.msra.mxu0 0
  %3216 = vmatprep.subr.bf16.mxu0 0
  %3217 = vmatpush1.bf16.msra.mxu0 0
  %3218 = vmatprep.subr.bf16.mxu0 0
  %3219 = vmatpush1.bf16.msra.mxu0 0
  %3220 = vmatprep.subr.bf16.mxu0 0
  %3221 = vmatpush1.bf16.msra.mxu0 0
  %3222 = vmatprep.subr.bf16.mxu0 0
  %3223 = vmatpush1.bf16.msra.mxu0 0
  %3224 = vmatprep.subr.bf16.mxu0 0
  %3225 = vmatpush1.bf16.msra.mxu0 0
  %3226 = vmatprep.mubr.bf16.mxu0 0
  %3227 = vmatmul.mubr.bf16.gmra.mrb[0].mxu0 %v660
  %v3228 = vpop.f32.mrb[0].mxu0
  %v3229 = vadd.f32 0.0, %v3228
  %v3230 = vpop.f32.mrb[0].mxu0
  %v3231 = vadd.f32 0.0, %v3230
  %v3232 = vpop.f32.mrb[0].mxu0
  %v3233 = vadd.f32 0.0, %v3232
  %v3234 = vpop.f32.mrb[0].mxu0
  %v3235 = vadd.f32 0.0, %v3234
  %3236 = vmatprep.mubr.bf16.mxu0 0
  %3237 = vmatmul.mubr.bf16.gmra.mrb[0].mxu0 %v663
  %v3238 = vpop.f32.mrb[0].mxu0
  %v3239 = vadd.f32 0.0, %v3238
  %v3240 = vpop.f32.mrb[0].mxu0
  %v3241 = vadd.f32 0.0, %v3240
  %v3242 = vpop.f32.mrb[0].mxu0
  %v3243 = vadd.f32 0.0, %v3242
  %v3244 = vpop.f32.mrb[0].mxu0
  %v3245 = vadd.f32 0.0, %v3244
  %3246 = vdwg.mxu0
  %v3247 = vadd.f32 %v3165, %v3229
  %v3248 = vadd.f32 %v3166, %v3231
  %v3249 = vadd.f32 %v3167, %v3233
  %v3250 = vadd.f32 %v3168, %v3235
  %v3251 = vadd.f32 %v3169, %v3239
  %v3252 = vadd.f32 %v3170, %v3241
  %v3253 = vadd.f32 %v3171, %v3243
  %v3254 = vadd.f32 %v3172, %v3245
  %v3255 = vld [vmem:[%s258] sm:$0xf]
  %v3258 = vunpack.c.l.s4 1983009808
  %v3259 = vunpack.c.0.s8 %v3258
  %v3260 = vlaneseq
  %v3261 = vshrl.u32 %v3260, 7
  %v3262 = vsub.s32 %v3259, %v3261
  %v3263 = vrot.slane %v3255, %v3262
  %v3264 = vcombine.high %v3263, %v3263
  %3265 = vrot.lane.b32.xlu0 %v3263, 116
  %v3266 = vpop.permute.xlu0 %3265
  %3267 = vrot.lane.b32.xlu0 %v3264, 116
  %v3268 = vpop.permute.xlu0 %3267
  %v3269 = vsel %vm1674, %v3266, %v3268
  %v3271 = vsel %vm168, %v3269, 0
  %v3274 = vsel %vm168, %v3268, 0
  %3276 = vmatprep.subr.bf16.mxu0 %v3274
  %3277 = vmatpush1.bf16.msra.mxu0 %v3271
  %3278 = vmatprep.subr.bf16.mxu0 0
  %3279 = vmatpush1.bf16.msra.mxu0 0
  %3280 = vmatprep.subr.bf16.mxu0 0
  %3281 = vmatpush1.bf16.msra.mxu0 0
  %3282 = vmatprep.subr.bf16.mxu0 0
  %3283 = vmatpush1.bf16.msra.mxu0 0
  %3284 = vmatprep.subr.bf16.mxu0 0
  %3285 = vmatpush1.bf16.msra.mxu0 0
  %3286 = vmatprep.subr.bf16.mxu0 0
  %3287 = vmatpush1.bf16.msra.mxu0 0
  %3288 = vmatprep.subr.bf16.mxu0 0
  %3289 = vmatpush1.bf16.msra.mxu0 0
  %3290 = vmatprep.subr.bf16.mxu0 0
  %3291 = vmatpush1.bf16.msra.mxu0 0
  %3292 = vmatprep.subr.bf16.mxu0 0
  %3293 = vmatpush1.bf16.msra.mxu0 0
  %3294 = vmatprep.subr.bf16.mxu0 0
  %3295 = vmatpush1.bf16.msra.mxu0 0
  %3296 = vmatprep.subr.bf16.mxu0 0
  %3297 = vmatpush1.bf16.msra.mxu0 0
  %3298 = vmatprep.subr.bf16.mxu0 0
  %3299 = vmatpush1.bf16.msra.mxu0 0
  %3300 = vmatprep.subr.bf16.mxu0 0
  %3301 = vmatpush1.bf16.msra.mxu0 0
  %3302 = vmatprep.subr.bf16.mxu0 0
  %3303 = vmatpush1.bf16.msra.mxu0 0
  %3304 = vmatprep.subr.bf16.mxu0 0
  %3305 = vmatpush1.bf16.msra.mxu0 0
  %3306 = vmatprep.subr.bf16.mxu0 0
  %3307 = vmatpush1.bf16.msra.mxu0 0
  %3308 = vmatprep.mubr.bf16.mxu0 0
  %3309 = vmatmul.mubr.bf16.gmra.mrb[0].mxu0 %v758
  %v3310 = vpop.f32.mrb[0].mxu0
  %v3311 = vadd.f32 0.0, %v3310
  %v3312 = vpop.f32.mrb[0].mxu0
  %v3313 = vadd.f32 0.0, %v3312
  %v3314 = vpop.f32.mrb[0].mxu0
  %v3315 = vadd.f32 0.0, %v3314
  %v3316 = vpop.f32.mrb[0].mxu0
  %v3317 = vadd.f32 0.0, %v3316
  %3318 = vmatprep.mubr.bf16.mxu0 0
  %3319 = vmatmul.mubr.bf16.gmra.mrb[0].mxu0 %v761
  %v3320 = vpop.f32.mrb[0].mxu0
  %v3321 = vadd.f32 0.0, %v3320
  %v3322 = vpop.f32.mrb[0].mxu0
  %v3323 = vadd.f32 0.0, %v3322
  %v3324 = vpop.f32.mrb[0].mxu0
  %v3325 = vadd.f32 0.0, %v3324
  %v3326 = vpop.f32.mrb[0].mxu0
  %v3327 = vadd.f32 0.0, %v3326
  %3328 = vdwg.mxu0
  %v3329 = vadd.f32 %v3247, %v3311
  %v3330 = vadd.f32 %v3248, %v3313
  %v3331 = vadd.f32 %v3249, %v3315
  %v3332 = vadd.f32 %v3250, %v3317
  %v3333 = vadd.f32 %v3251, %v3321
  %v3334 = vadd.f32 %v3252, %v3323
  %v3335 = vadd.f32 %v3253, %v3325
  %v3336 = vadd.f32 %v3254, %v3327
  %v3337 = vld [vmem:[#allocation2] sm:$0xf]
  %v3340 = vunpack.c.l.s4 1983009808
  %v3341 = vunpack.c.0.s8 %v3340
  %v3342 = vlaneseq
  %v3343 = vshrl.u32 %v3342, 7
  %v3344 = vsub.s32 %v3341, %v3343
  %v3345 = vrot.slane %v3337, %v3344
  %v3346 = vcombine.high %v3345, %v3345
  %3347 = vrot.lane.b32.xlu0 %v3345, 107
  %v3348 = vpop.permute.xlu0 %3347
  %3349 = vrot.lane.b32.xlu0 %v3346, 107
  %v3350 = vpop.permute.xlu0 %3349
  %v3351 = vsel %vm2636, %v3348, %v3350
  %v3353 = vsel %vm168, %v3351, 0
  %v3356 = vsel %vm168, %v3350, 0
  %3358 = vmatprep.subr.bf16.mxu0 %v3356
  %3359 = vmatpush1.bf16.msra.mxu0 %v3353
  %3360 = vmatprep.subr.bf16.mxu0 0
  %3361 = vmatpush1.bf16.msra.mxu0 0
  %3362 = vmatprep.subr.bf16.mxu0 0
  %3363 = vmatpush1.bf16.msra.mxu0 0
  %3364 = vmatprep.subr.bf16.mxu0 0
  %3365 = vmatpush1.bf16.msra.mxu0 0
  %3366 = vmatprep.subr.bf16.mxu0 0
  %3367 = vmatpush1.bf16.msra.mxu0 0
  %3368 = vmatprep.subr.bf16.mxu0 0
  %3369 = vmatpush1.bf16.msra.mxu0 0
  %3370 = vmatprep.subr.bf16.mxu0 0
  %3371 = vmatpush1.bf16.msra.mxu0 0
  %3372 = vmatprep.subr.bf16.mxu0 0
  %3373 = vmatpush1.bf16.msra.mxu0 0
  %3374 = vmatprep.subr.bf16.mxu0 0
  %3375 = vmatpush1.bf16.msra.mxu0 0
  %3376 = vmatprep.subr.bf16.mxu0 0
  %3377 = vmatpush1.bf16.msra.mxu0 0
  %3378 = vmatprep.subr.bf16.mxu0 0
  %3379 = vmatpush1.bf16.msra.mxu0 0
  %3380 = vmatprep.subr.bf16.mxu0 0
  %3381 = vmatpush1.bf16.msra.mxu0 0
  %3382 = vmatprep.subr.bf16.mxu0 0
  %3383 = vmatpush1.bf16.msra.mxu0 0
  %3384 = vmatprep.subr.bf16.mxu0 0
  %3385 = vmatpush1.bf16.msra.mxu0 0
  %3386 = vmatprep.subr.bf16.mxu0 0
  %3387 = vmatpush1.bf16.msra.mxu0 0
  %3388 = vmatprep.subr.bf16.mxu0 0
  %3389 = vmatpush1.bf16.msra.mxu0 0
  %3390 = vmatprep.mubr.bf16.mxu0 0
  %3391 = vmatmul.mubr.bf16.gmra.mrb[0].mxu0 %v856
  %v3392 = vpop.f32.mrb[0].mxu0
  %v3393 = vadd.f32 0.0, %v3392
  %v3394 = vpop.f32.mrb[0].mxu0
  %v3395 = vadd.f32 0.0, %v3394
  %v3396 = vpop.f32.mrb[0].mxu0
  %v3397 = vadd.f32 0.0, %v3396
  %v3398 = vpop.f32.mrb[0].mxu0
  %v3399 = vadd.f32 0.0, %v3398
  %3400 = vmatprep.mubr.bf16.mxu0 0
  %3401 = vmatmul.mubr.bf16.gmra.mrb[0].mxu0 %v859
  %v3402 = vpop.f32.mrb[0].mxu0
  %v3403 = vadd.f32 0.0, %v3402
  %v3404 = vpop.f32.mrb[0].mxu0
  %v3405 = vadd.f32 0.0, %v3404
  %v3406 = vpop.f32.mrb[0].mxu0
  %v3407 = vadd.f32 0.0, %v3406
  %v3408 = vpop.f32.mrb[0].mxu0
  %v3409 = vadd.f32 0.0, %v3408
  %3410 = vdwg.mxu0
  %v3411 = vadd.f32 %v3329, %v3393
  %v3412 = vadd.f32 %v3330, %v3395
  %v3413 = vadd.f32 %v3331, %v3397
  %v3414 = vadd.f32 %v3332, %v3399
  %v3415 = vadd.f32 %v3333, %v3403
  %v3416 = vadd.f32 %v3334, %v3405
  %v3417 = vadd.f32 %v3335, %v3407
  %v3418 = vadd.f32 %v3336, %v3409
  %v3419 = vld [vmem:[%s533] sm:$0xf]
  %v3422 = vunpack.c.l.s4 1983009808
  %v3423 = vunpack.c.0.s8 %v3422
  %v3424 = vlaneseq
  %v3425 = vshrl.u32 %v3424, 7
  %v3426 = vsub.s32 %v3423, %v3425
  %v3427 = vrot.slane %v3419, %v3426
  %v3428 = vcombine.high %v3427, %v3427
  %3429 = vrot.lane.b32.xlu0 %v3427, 107
  %v3430 = vpop.permute.xlu0 %3429
  %3431 = vrot.lane.b32.xlu0 %v3428, 107
  %v3432 = vpop.permute.xlu0 %3431
  %v3433 = vsel %vm2636, %v3430, %v3432
  %v3435 = vsel %vm168, %v3433, 0
  %v3438 = vsel %vm168, %v3432, 0
  %3440 = vmatprep.subr.bf16.mxu0 %v3438
  %3441 = vmatpush1.bf16.msra.mxu0 %v3435
  %3442 = vmatprep.subr.bf16.mxu0 0
  %3443 = vmatpush1.bf16.msra.mxu0 0
  %3444 = vmatprep.subr.bf16.mxu0 0
  %3445 = vmatpush1.bf16.msra.mxu0 0
  %3446 = vmatprep.subr.bf16.mxu0 0
  %3447 = vmatpush1.bf16.msra.mxu0 0
  %3448 = vmatprep.subr.bf16.mxu0 0
  %3449 = vmatpush1.bf16.msra.mxu0 0
  %3450 = vmatprep.subr.bf16.mxu0 0
  %3451 = vmatpush1.bf16.msra.mxu0 0
  %3452 = vmatprep.subr.bf16.mxu0 0
  %3453 = vmatpush1.bf16.msra.mxu0 0
  %3454 = vmatprep.subr.bf16.mxu0 0
  %3455 = vmatpush1.bf16.msra.mxu0 0
  %3456 = vmatprep.subr.bf16.mxu0 0
  %3457 = vmatpush1.bf16.msra.mxu0 0
  %3458 = vmatprep.subr.bf16.mxu0 0
  %3459 = vmatpush1.bf16.msra.mxu0 0
  %3460 = vmatprep.subr.bf16.mxu0 0
  %3461 = vmatpush1.bf16.msra.mxu0 0
  %3462 = vmatprep.subr.bf16.mxu0 0
  %3463 = vmatpush1.bf16.msra.mxu0 0
  %3464 = vmatprep.subr.bf16.mxu0 0
  %3465 = vmatpush1.bf16.msra.mxu0 0
  %3466 = vmatprep.subr.bf16.mxu0 0
  %3467 = vmatpush1.bf16.msra.mxu0 0
  %3468 = vmatprep.subr.bf16.mxu0 0
  %3469 = vmatpush1.bf16.msra.mxu0 0
  %3470 = vmatprep.subr.bf16.mxu0 0
  %3471 = vmatpush1.bf16.msra.mxu0 0
  %3472 = vmatprep.mubr.bf16.mxu0 0
  %3473 = vmatmul.mubr.bf16.gmra.mrb[0].mxu0 %v954
  %v3474 = vpop.f32.mrb[0].mxu0
  %v3475 = vadd.f32 0.0, %v3474
  %v3476 = vpop.f32.mrb[0].mxu0
  %v3477 = vadd.f32 0.0, %v3476
  %v3478 = vpop.f32.mrb[0].mxu0
  %v3479 = vadd.f32 0.0, %v3478
  %v3480 = vpop.f32.mrb[0].mxu0
  %v3481 = vadd.f32 0.0, %v3480
  %3482 = vmatprep.mubr.bf16.mxu0 0
  %3483 = vmatmul.mubr.bf16.gmra.mrb[0].mxu0 %v957
  %v3484 = vpop.f32.mrb[0].mxu0
  %v3485 = vadd.f32 0.0, %v3484
  %v3486 = vpop.f32.mrb[0].mxu0
  %v3487 = vadd.f32 0.0, %v3486
  %v3488 = vpop.f32.mrb[0].mxu0
  %v3489 = vadd.f32 0.0, %v3488
  %v3490 = vpop.f32.mrb[0].mxu0
  %v3491 = vadd.f32 0.0, %v3490
  %3492 = vdwg.mxu0
  %v3493 = vadd.f32 %v3411, %v3475
  %v3494 = vadd.f32 %v3412, %v3477
  %v3495 = vadd.f32 %v3413, %v3479
  %v3496 = vadd.f32 %v3414, %v3481
  %v3497 = vadd.f32 %v3415, %v3485
  %v3498 = vadd.f32 %v3416, %v3487
  %v3499 = vadd.f32 %v3417, %v3489
  %v3500 = vadd.f32 %v3418, %v3491
  %v3501 = vld [vmem:[#allocation2] sm:$0xf]
  %v3504 = vunpack.c.l.s4 1983009808
  %v3505 = vunpack.c.0.s8 %v3504
  %v3506 = vlaneseq
  %v3507 = vshrl.u32 %v3506, 7
  %v3508 = vsub.s32 %v3505, %v3507
  %v3509 = vrot.slane %v3501, %v3508
  %v3510 = vcombine.high %v3509, %v3509
  %3511 = vrot.lane.b32.xlu0 %v3509, 106
  %v3512 = vpop.permute.xlu0 %3511
  %3513 = vrot.lane.b32.xlu0 %v3510, 106
  %v3514 = vpop.permute.xlu0 %3513
  %vm3515 = vcmask 867328
  %v3516 = vsel %vm3515, %v3512, %v3514
  %v3518 = vsel %vm168, %v3516, 0
  %v3521 = vsel %vm168, %v3514, 0
  %3523 = vmatprep.subr.bf16.mxu0 %v3521
  %3524 = vmatpush1.bf16.msra.mxu0 %v3518
  %3525 = vmatprep.subr.bf16.mxu0 0
  %3526 = vmatpush1.bf16.msra.mxu0 0
  %3527 = vmatprep.subr.bf16.mxu0 0
  %3528 = vmatpush1.bf16.msra.mxu0 0
  %3529 = vmatprep.subr.bf16.mxu0 0
  %3530 = vmatpush1.bf16.msra.mxu0 0
  %3531 = vmatprep.subr.bf16.mxu0 0
  %3532 = vmatpush1.bf16.msra.mxu0 0
  %3533 = vmatprep.subr.bf16.mxu0 0
  %3534 = vmatpush1.bf16.msra.mxu0 0
  %3535 = vmatprep.subr.bf16.mxu0 0
  %3536 = vmatpush1.bf16.msra.mxu0 0
  %3537 = vmatprep.subr.bf16.mxu0 0
  %3538 = vmatpush1.bf16.msra.mxu0 0
  %3539 = vmatprep.subr.bf16.mxu0 0
  %3540 = vmatpush1.bf16.msra.mxu0 0
  %3541 = vmatprep.subr.bf16.mxu0 0
  %3542 = vmatpush1.bf16.msra.mxu0 0
  %3543 = vmatprep.subr.bf16.mxu0 0
  %3544 = vmatpush1.bf16.msra.mxu0 0
  %3545 = vmatprep.subr.bf16.mxu0 0
  %3546 = vmatpush1.bf16.msra.mxu0 0
  %3547 = vmatprep.subr.bf16.mxu0 0
  %3548 = vmatpush1.bf16.msra.mxu0 0
  %3549 = vmatprep.subr.bf16.mxu0 0
  %3550 = vmatpush1.bf16.msra.mxu0 0
  %3551 = vmatprep.subr.bf16.mxu0 0
  %3552 = vmatpush1.bf16.msra.mxu0 0
  %3553 = vmatprep.subr.bf16.mxu0 0
  %3554 = vmatpush1.bf16.msra.mxu0 0
  %3555 = vmatprep.mubr.bf16.mxu0 0
  %3556 = vmatmul.mubr.bf16.gmra.mrb[0].mxu0 %v1052
  %v3557 = vpop.f32.mrb[0].mxu0
  %v3558 = vadd.f32 0.0, %v3557
  %v3559 = vpop.f32.mrb[0].mxu0
  %v3560 = vadd.f32 0.0, %v3559
  %v3561 = vpop.f32.mrb[0].mxu0
  %v3562 = vadd.f32 0.0, %v3561
  %v3563 = vpop.f32.mrb[0].mxu0
  %v3564 = vadd.f32 0.0, %v3563
  %3565 = vmatprep.mubr.bf16.mxu0 0
  %3566 = vmatmul.mubr.bf16.gmra.mrb[0].mxu0 %v1055
  %v3567 = vpop.f32.mrb[0].mxu0
  %v3568 = vadd.f32 0.0, %v3567
  %v3569 = vpop.f32.mrb[0].mxu0
  %v3570 = vadd.f32 0.0, %v3569
  %v3571 = vpop.f32.mrb[0].mxu0
  %v3572 = vadd.f32 0.0, %v3571
  %v3573 = vpop.f32.mrb[0].mxu0
  %v3574 = vadd.f32 0.0, %v3573
  %3575 = vdwg.mxu0
  %v3576 = vadd.f32 %v3493, %v3558
  %v3577 = vadd.f32 %v3494, %v3560
  %v3578 = vadd.f32 %v3495, %v3562
  %v3579 = vadd.f32 %v3496, %v3564
  %v3580 = vadd.f32 %v3497, %v3568
  %v3581 = vadd.f32 %v3498, %v3570
  %v3582 = vadd.f32 %v3499, %v3572
  %v3583 = vadd.f32 %v3500, %v3574
  %v3584 = vadd.f32 %v3576, %v1127
  %v3585 = vadd.f32 %v3577, %v1127
  %v3586 = vadd.f32 %v3578, %v1132
  %v3587 = vadd.f32 %v3579, %v1132
  %v3588 = vadd.f32 %v3580, %v1137
  %v3589 = vadd.f32 %v3581, %v1137
  %v3590 = vadd.f32 %v3582, %v1142
  %v3591 = vadd.f32 %v3583, %v1142
  %s3592 = scalar_lea.vmem %s10, 192
  %3593 = vst [vmem:[%s3592] sm:$0xff] %v3584
  %3594 = vst.msk [vmem:[%s3592 + $0x8] sm:$0xff] %vm1153, %v3585
  %3595 = vst [vmem:[%s3592 + $0x10] sm:$0xff] %v3586
  %3596 = vst.msk [vmem:[%s3592 + $0x18] sm:$0xff] %vm1153, %v3587
  %3597 = vst [vmem:[%s3592 + $0x20] sm:$0xff] %v3588
  %3598 = vst.msk [vmem:[%s3592 + $0x28] sm:$0xff] %vm1153, %v3589
  %3599 = vst [vmem:[%s3592 + $0x30] sm:$0xff] %v3590
  %3600 = vst.msk [vmem:[%s3592 + $0x38] sm:$0xff] %vm1153, %v3591
  %v3601 = vmul.f32 %v3584, %v1164
  %v3602 = vmul.f32 %v3585, %v1164
  %v3603 = vmul.f32 %v3586, %v1169
  %v3604 = vmul.f32 %v3587, %v1169
  %v3605 = vmul.f32 %v3588, %v1174
  %v3606 = vmul.f32 %v3589, %v1174
  %v3607 = vmul.f32 %v3590, %v1179
  %v3608 = vmul.f32 %v3591, %v1179
  %v3609 = vadd.f32 %v3601, %v1192
  %v3610 = vadd.f32 %v3602, %v1192
  %v3611 = vadd.f32 %v3603, %v1197
  %v3612 = vadd.f32 %v3604, %v1197
  %v3613 = vadd.f32 %v3605, %v1202
  %v3614 = vadd.f32 %v3606, %v1202
  %v3615 = vadd.f32 %v3607, %v1207
  %v3616 = vadd.f32 %v3608, %v1207
  %vm3617 = vcmp.ge.f32.partialorder %v3609, 0.0
  %vm3618 = vcmp.ge.f32.partialorder %v3610, 0.0
  %vm3619 = vcmp.ge.f32.partialorder %v3611, 0.0
  %vm3620 = vcmp.ge.f32.partialorder %v3612, 0.0
  %vm3621 = vcmp.ge.f32.partialorder %v3613, 0.0
  %vm3622 = vcmp.ge.f32.partialorder %v3614, 0.0
  %vm3623 = vcmp.ge.f32.partialorder %v3615, 0.0
  %vm3624 = vcmp.ge.f32.partialorder %v3616, 0.0
  %v3625 = vmul.f32 %v3609, 0.01
  %v3626 = vmul.f32 %v3610, 0.01
  %v3627 = vmul.f32 %v3611, 0.01
  %v3628 = vmul.f32 %v3612, 0.01
  %v3629 = vmul.f32 %v3613, 0.01
  %v3630 = vmul.f32 %v3614, 0.01
  %v3631 = vmul.f32 %v3615, 0.01
  %v3632 = vmul.f32 %v3616, 0.01
  %v3633 = vsel %vm3617, %v3609, %v3625
  %v3634 = vsel %vm3618, %v3610, %v3626
  %v3635 = vsel %vm3619, %v3611, %v3627
  %v3636 = vsel %vm3620, %v3612, %v3628
  %v3637 = vsel %vm3621, %v3613, %v3629
  %v3638 = vsel %vm3622, %v3614, %v3630
  %v3639 = vsel %vm3623, %v3615, %v3631
  %v3640 = vsel %vm3624, %v3616, %v3632
  %v3641 = vmul.f32 %v3633, %v1246
  %v3642 = vmul.f32 %v3634, %v1244
  %v3643 = vmul.f32 %v3635, %v1246
  %v3644 = vmul.f32 %v3636, %v1244
  %v3645 = vmul.f32 %v3637, %v1246
  %v3646 = vmul.f32 %v3638, %v1244
  %v3647 = vmul.f32 %v3639, %v1246
  %v3648 = vmul.f32 %v3640, %v1244
  %v3649 = vpack.c.bf16 %v3643, %v3641
  %v3650 = vpack.c.bf16 %v3644, %v3642
  %v3651 = vpack.c.bf16 %v3647, %v3645
  %v3652 = vpack.c.bf16 %v3648, %v3646
  %s3653 = scalar_lea.vmem [#allocation3], 144
  %3654 = vst [vmem:[%s3653 + $0x8] sm:$0xff] %v3649
  %3655 = vst.msk [vmem:[%s3653 + $0x10] sm:$0xff] %vm1153, %v3650
  %3656 = vst [vmem:[%s3653 + $0x20] sm:$0xff] %v3651
  %3657 = vst.msk [vmem:[%s3653 + $0x28] sm:$0xff] %vm1153, %v3652
  %v3658 = vld [vmem:[%s3653] sm:$0xff]
  %v3659 = vld [vmem:[%s3653 + $0x8] sm:$0xff]
  %v3660 = vld [vmem:[%s3653 + $0x10] sm:$0xff]
  %v3661 = vld [vmem:[%s3653 + $0x18] sm:$0xff]
  %v3662 = vld [vmem:[%s3653 + $0x20] sm:$0xff]
  %v3663 = vld [vmem:[%s3653 + $0x28] sm:$0xff]
  %v3664 = vld [vmem:[%s2856] sm:$0xff]
  %v3665 = vld [vmem:[%s2856 + $0x8] sm:$0xff]
  %v3666 = vld [vmem:[%s2856 + $0x10] sm:$0xff]
  %v3667 = vld [vmem:[%s2856 + $0x18] sm:$0xff]
  %v3668 = vld [vmem:[%s2856 + $0x20] sm:$0xff]
  %v3669 = vld [vmem:[%s2856 + $0x28] sm:$0xff]
  %3676 = vrot.lane.b32.xlu0 %v3664, 10
  %v3677 = vpop.permute.xlu0 %3676
  %3678 = vrot.lane.b32.xlu0 %v3665, 10
  %v3679 = vpop.permute.xlu0 %3678
  %3680 = vrot.lane.b32.xlu0 %v3666, 10
  %v3681 = vpop.permute.xlu0 %3680
  %3682 = vrot.lane.b32.xlu0 %v3667, 10
  %v3683 = vpop.permute.xlu0 %3682
  %3684 = vrot.lane.b32.xlu0 %v3668, 10
  %v3685 = vpop.permute.xlu0 %3684
  %3686 = vrot.lane.b32.xlu0 %v3669, 10
  %v3687 = vpop.permute.xlu0 %3686
  %vm3688 = vcmask 80896
  %v3689 = vsel %vm3688, %v3677, %v3679
  %v3690 = vsel %vm3688, %v3679, %v3681
  %v3691 = vsel %vm3688, %v3683, %v3685
  %v3692 = vsel %vm3688, %v3685, %v3687
  %vm3697 = vcmask 261120
  %v3699 = vsel %vm3697, %v229, 0
  %3701 = vmatprep.subr.bf16.mxu0 %v3690
  %3702 = vmatpush1.bf16.msra.mxu0 %v3689
  %3703 = vmatprep.subr.bf16.mxu0 %v3692
  %3704 = vmatpush1.bf16.msra.mxu0 %v3691
  %3705 = vmatprep.subr.bf16.mxu0 0
  %3706 = vmatpush1.bf16.msra.mxu0 0
  %3707 = vmatprep.subr.bf16.mxu0 0
  %3708 = vmatpush1.bf16.msra.mxu0 0
  %3709 = vmatprep.subr.bf16.mxu0 0
  %3710 = vmatpush1.bf16.msra.mxu0 0
  %3711 = vmatprep.subr.bf16.mxu0 0
  %3712 = vmatpush1.bf16.msra.mxu0 0
  %3713 = vmatprep.subr.bf16.mxu0 0
  %3714 = vmatpush1.bf16.msra.mxu0 0
  %3715 = vmatprep.subr.bf16.mxu0 0
  %3716 = vmatpush1.bf16.msra.mxu0 0
  %3717 = vmatprep.subr.bf16.mxu0 0
  %3718 = vmatpush1.bf16.msra.mxu0 0
  %3719 = vmatprep.subr.bf16.mxu0 0
  %3720 = vmatpush1.bf16.msra.mxu0 0
  %3721 = vmatprep.subr.bf16.mxu0 0
  %3722 = vmatpush1.bf16.msra.mxu0 0
  %3723 = vmatprep.subr.bf16.mxu0 0
  %3724 = vmatpush1.bf16.msra.mxu0 0
  %3725 = vmatprep.subr.bf16.mxu0 0
  %3726 = vmatpush1.bf16.msra.mxu0 0
  %3727 = vmatprep.subr.bf16.mxu0 0
  %3728 = vmatpush1.bf16.msra.mxu0 0
  %3729 = vmatprep.subr.bf16.mxu0 0
  %3730 = vmatpush1.bf16.msra.mxu0 0
  %3731 = vmatprep.subr.bf16.mxu0 0
  %3732 = vmatpush1.bf16.msra.mxu0 0
  %3733 = vmatprep.mubr.bf16.mxu0 0
  %3734 = vmatmul.mubr.bf16.gmra.mrb[0].mxu0 %v3699
  %v3735 = vpop.f32.mrb[0].mxu0
  %v3736 = vadd.f32 0.0, %v3735
  %v3737 = vpop.f32.mrb[0].mxu0
  %v3738 = vadd.f32 0.0, %v3737
  %v3739 = vpop.f32.mrb[0].mxu0
  %v3740 = vpop.f32.mrb[0].mxu0
  %3741 = vdwg.mxu0
  %3748 = vrot.lane.b32.xlu0 %v3658, 11
  %v3749 = vpop.permute.xlu0 %3748
  %3750 = vrot.lane.b32.xlu0 %v3659, 11
  %v3751 = vpop.permute.xlu0 %3750
  %3752 = vrot.lane.b32.xlu0 %v3660, 11
  %v3753 = vpop.permute.xlu0 %3752
  %3754 = vrot.lane.b32.xlu0 %v3661, 11
  %v3755 = vpop.permute.xlu0 %3754
  %3756 = vrot.lane.b32.xlu0 %v3662, 11
  %v3757 = vpop.permute.xlu0 %3756
  %3758 = vrot.lane.b32.xlu0 %v3663, 11
  %v3759 = vpop.permute.xlu0 %3758
  %vm3760 = vcmask 89088
  %v3761 = vsel %vm3760, %v3749, %v3751
  %v3762 = vsel %vm3760, %v3751, %v3753
  %v3763 = vsel %vm3760, %v3755, %v3757
  %v3764 = vsel %vm3760, %v3757, %v3759
  %v3770 = vsel %vm3697, %v228, 0
  %3772 = vmatprep.subr.bf16.mxu0 %v3762
  %3773 = vmatpush1.bf16.msra.mxu0 %v3761
  %3774 = vmatprep.subr.bf16.mxu0 %v3764
  %3775 = vmatpush1.bf16.msra.mxu0 %v3763
  %3776 = vmatprep.subr.bf16.mxu0 0
  %3777 = vmatpush1.bf16.msra.mxu0 0
  %3778 = vmatprep.subr.bf16.mxu0 0
  %3779 = vmatpush1.bf16.msra.mxu0 0
  %3780 = vmatprep.subr.bf16.mxu0 0
  %3781 = vmatpush1.bf16.msra.mxu0 0
  %3782 = vmatprep.subr.bf16.mxu0 0
  %3783 = vmatpush1.bf16.msra.mxu0 0
  %3784 = vmatprep.subr.bf16.mxu0 0
  %3785 = vmatpush1.bf16.msra.mxu0 0
  %3786 = vmatprep.subr.bf16.mxu0 0
  %3787 = vmatpush1.bf16.msra.mxu0 0
  %3788 = vmatprep.subr.bf16.mxu0 0
  %3789 = vmatpush1.bf16.msra.mxu0 0
  %3790 = vmatprep.subr.bf16.mxu0 0
  %3791 = vmatpush1.bf16.msra.mxu0 0
  %3792 = vmatprep.subr.bf16.mxu0 0
  %3793 = vmatpush1.bf16.msra.mxu0 0
  %3794 = vmatprep.subr.bf16.mxu0 0
  %3795 = vmatpush1.bf16.msra.mxu0 0
  %3796 = vmatprep.subr.bf16.mxu0 0
  %3797 = vmatpush1.bf16.msra.mxu0 0
  %3798 = vmatprep.subr.bf16.mxu0 0
  %3799 = vmatpush1.bf16.msra.mxu0 0
  %3800 = vmatprep.subr.bf16.mxu0 0
  %3801 = vmatpush1.bf16.msra.mxu0 0
  %3802 = vmatprep.subr.bf16.mxu0 0
  %3803 = vmatpush1.bf16.msra.mxu0 0
  %3804 = vmatprep.mubr.bf16.mxu0 0
  %3805 = vmatmul.mubr.bf16.gmra.mrb[0].mxu0 %v3770
  %v3806 = vpop.f32.mrb[0].mxu0
  %v3807 = vadd.f32 %v3736, %v3806
  %v3808 = vpop.f32.mrb[0].mxu0
  %v3809 = vadd.f32 %v3738, %v3808
  %v3810 = vpop.f32.mrb[0].mxu0
  %v3811 = vpop.f32.mrb[0].mxu0
  %3812 = vdwg.mxu0
  %3813 = vrot.lane.b32.xlu0 %v3658, 10
  %v3814 = vpop.permute.xlu0 %3813
  %3815 = vrot.lane.b32.xlu0 %v3659, 10
  %v3816 = vpop.permute.xlu0 %3815
  %3817 = vrot.lane.b32.xlu0 %v3660, 10
  %v3818 = vpop.permute.xlu0 %3817
  %3819 = vrot.lane.b32.xlu0 %v3661, 10
  %v3820 = vpop.permute.xlu0 %3819
  %3821 = vrot.lane.b32.xlu0 %v3662, 10
  %v3822 = vpop.permute.xlu0 %3821
  %3823 = vrot.lane.b32.xlu0 %v3663, 10
  %v3824 = vpop.permute.xlu0 %3823
  %v3825 = vsel %vm3688, %v3814, %v3816
  %v3826 = vsel %vm3688, %v3816, %v3818
  %v3827 = vsel %vm3688, %v3820, %v3822
  %v3828 = vsel %vm3688, %v3822, %v3824
  %v3834 = vsel %vm3697, %v230, 0
  %3836 = vmatprep.subr.bf16.mxu0 %v3826
  %3837 = vmatpush1.bf16.msra.mxu0 %v3825
  %3838 = vmatprep.subr.bf16.mxu0 %v3828
  %3839 = vmatpush1.bf16.msra.mxu0 %v3827
  %3840 = vmatprep.subr.bf16.mxu0 0
  %3841 = vmatpush1.bf16.msra.mxu0 0
  %3842 = vmatprep.subr.bf16.mxu0 0
  %3843 = vmatpush1.bf16.msra.mxu0 0
  %3844 = vmatprep.subr.bf16.mxu0 0
  %3845 = vmatpush1.bf16.msra.mxu0 0
  %3846 = vmatprep.subr.bf16.mxu0 0
  %3847 = vmatpush1.bf16.msra.mxu0 0
  %3848 = vmatprep.subr.bf16.mxu0 0
  %3849 = vmatpush1.bf16.msra.mxu0 0
  %3850 = vmatprep.subr.bf16.mxu0 0
  %3851 = vmatpush1.bf16.msra.mxu0 0
  %3852 = vmatprep.subr.bf16.mxu0 0
  %3853 = vmatpush1.bf16.msra.mxu0 0
  %3854 = vmatprep.subr.bf16.mxu0 0
  %3855 = vmatpush1.bf16.msra.mxu0 0
  %3856 = vmatprep.subr.bf16.mxu0 0
  %3857 = vmatpush1.bf16.msra.mxu0 0
  %3858 = vmatprep.subr.bf16.mxu0 0
  %3859 = vmatpush1.bf16.msra.mxu0 0
  %3860 = vmatprep.subr.bf16.mxu0 0
  %3861 = vmatpush1.bf16.msra.mxu0 0
  %3862 = vmatprep.subr.bf16.mxu0 0
  %3863 = vmatpush1.bf16.msra.mxu0 0
  %3864 = vmatprep.subr.bf16.mxu0 0
  %3865 = vmatpush1.bf16.msra.mxu0 0
  %3866 = vmatprep.subr.bf16.mxu0 0
  %3867 = vmatpush1.bf16.msra.mxu0 0
  %3868 = vmatprep.mubr.bf16.mxu0 0
  %3869 = vmatmul.mubr.bf16.gmra.mrb[0].mxu0 %v3834
  %v3870 = vpop.f32.mrb[0].mxu0
  %v3871 = vadd.f32 0.0, %v3870
  %v3872 = vpop.f32.mrb[0].mxu0
  %v3873 = vadd.f32 0.0, %v3872
  %v3874 = vpop.f32.mrb[0].mxu0
  %v3875 = vpop.f32.mrb[0].mxu0
  %3876 = vdwg.mxu0
  %v3877 = vadd.f32 %v3807, %v3871
  %v3878 = vadd.f32 %v3809, %v3873
  %3879 = vrot.lane.b32.xlu0 %v3664, 9
  %v3880 = vpop.permute.xlu0 %3879
  %3881 = vrot.lane.b32.xlu0 %v3665, 9
  %v3882 = vpop.permute.xlu0 %3881
  %3883 = vrot.lane.b32.xlu0 %v3666, 9
  %v3884 = vpop.permute.xlu0 %3883
  %3885 = vrot.lane.b32.xlu0 %v3667, 9
  %v3886 = vpop.permute.xlu0 %3885
  %3887 = vrot.lane.b32.xlu0 %v3668, 9
  %v3888 = vpop.permute.xlu0 %3887
  %3889 = vrot.lane.b32.xlu0 %v3669, 9
  %v3890 = vpop.permute.xlu0 %3889
  %vm3891 = vcmask 72704
  %v3892 = vsel %vm3891, %v3880, %v3882
  %v3893 = vsel %vm3891, %v3882, %v3884
  %v3894 = vsel %vm3891, %v3886, %v3888
  %v3895 = vsel %vm3891, %v3888, %v3890
  %v3901 = vsel %vm3697, %v231, 0
  %3903 = vmatprep.subr.bf16.mxu0 %v3893
  %3904 = vmatpush1.bf16.msra.mxu0 %v3892
  %3905 = vmatprep.subr.bf16.mxu0 %v3895
  %3906 = vmatpush1.bf16.msra.mxu0 %v3894
  %3907 = vmatprep.subr.bf16.mxu0 0
  %3908 = vmatpush1.bf16.msra.mxu0 0
  %3909 = vmatprep.subr.bf16.mxu0 0
  %3910 = vmatpush1.bf16.msra.mxu0 0
  %3911 = vmatprep.subr.bf16.mxu0 0
  %3912 = vmatpush1.bf16.msra.mxu0 0
  %3913 = vmatprep.subr.bf16.mxu0 0
  %3914 = vmatpush1.bf16.msra.mxu0 0
  %3915 = vmatprep.subr.bf16.mxu0 0
  %3916 = vmatpush1.bf16.msra.mxu0 0
  %3917 = vmatprep.subr.bf16.mxu0 0
  %3918 = vmatpush1.bf16.msra.mxu0 0
  %3919 = vmatprep.subr.bf16.mxu0 0
  %3920 = vmatpush1.bf16.msra.mxu0 0
  %3921 = vmatprep.subr.bf16.mxu0 0
  %3922 = vmatpush1.bf16.msra.mxu0 0
  %3923 = vmatprep.subr.bf16.mxu0 0
  %3924 = vmatpush1.bf16.msra.mxu0 0
  %3925 = vmatprep.subr.bf16.mxu0 0
  %3926 = vmatpush1.bf16.msra.mxu0 0
  %3927 = vmatprep.subr.bf16.mxu0 0
  %3928 = vmatpush1.bf16.msra.mxu0 0
  %3929 = vmatprep.subr.bf16.mxu0 0
  %3930 = vmatpush1.bf16.msra.mxu0 0
  %3931 = vmatprep.subr.bf16.mxu0 0
  %3932 = vmatpush1.bf16.msra.mxu0 0
  %3933 = vmatprep.subr.bf16.mxu0 0
  %3934 = vmatpush1.bf16.msra.mxu0 0
  %3935 = vmatprep.mubr.bf16.mxu0 0
  %3936 = vmatmul.mubr.bf16.gmra.mrb[0].mxu0 %v3901
  %v3937 = vpop.f32.mrb[0].mxu0
  %v3938 = vadd.f32 0.0, %v3937
  %v3939 = vpop.f32.mrb[0].mxu0
  %v3940 = vadd.f32 0.0, %v3939
  %v3941 = vpop.f32.mrb[0].mxu0
  %v3942 = vpop.f32.mrb[0].mxu0
  %3943 = vdwg.mxu0
  %v3944 = vadd.f32 %v3877, %v3938
  %v3945 = vadd.f32 %v3878, %v3940
  %v3946 = vld [vmem:[%s2058] sm:$0xff]
  %v3947 = vld [vmem:[%s2058 + $0x8] sm:$0xff]
  %v3948 = vld [vmem:[%s2058 + $0x10] sm:$0xff]
  %v3949 = vld [vmem:[%s2058 + $0x18] sm:$0xff]
  %v3950 = vld [vmem:[%s2058 + $0x20] sm:$0xff]
  %v3951 = vld [vmem:[%s2058 + $0x28] sm:$0xff]
  %3958 = vrot.lane.b32.xlu0 %v3946, 1
  %v3959 = vpop.permute.xlu0 %3958
  %3960 = vrot.lane.b32.xlu0 %v3947, 1
  %v3961 = vpop.permute.xlu0 %3960
  %3962 = vrot.lane.b32.xlu0 %v3948, 1
  %v3963 = vpop.permute.xlu0 %3962
  %3964 = vrot.lane.b32.xlu0 %v3949, 1
  %v3965 = vpop.permute.xlu0 %3964
  %3966 = vrot.lane.b32.xlu0 %v3950, 1
  %v3967 = vpop.permute.xlu0 %3966
  %3968 = vrot.lane.b32.xlu0 %v3951, 1
  %v3969 = vpop.permute.xlu0 %3968
  %vm3970 = vcmask 7168
  %v3971 = vsel %vm3970, %v3959, %v3961
  %v3972 = vsel %vm3970, %v3961, %v3963
  %v3973 = vsel %vm3970, %v3965, %v3967
  %v3974 = vsel %vm3970, %v3967, %v3969
  %v3980 = vsel %vm3697, %v232, 0
  %3982 = vmatprep.subr.bf16.mxu0 %v3972
  %3983 = vmatpush1.bf16.msra.mxu0 %v3971
  %3984 = vmatprep.subr.bf16.mxu0 %v3974
  %3985 = vmatpush1.bf16.msra.mxu0 %v3973
  %3986 = vmatprep.subr.bf16.mxu0 0
  %3987 = vmatpush1.bf16.msra.mxu0 0
  %3988 = vmatprep.subr.bf16.mxu0 0
  %3989 = vmatpush1.bf16.msra.mxu0 0
  %3990 = vmatprep.subr.bf16.mxu0 0
  %3991 = vmatpush1.bf16.msra.mxu0 0
  %3992 = vmatprep.subr.bf16.mxu0 0
  %3993 = vmatpush1.bf16.msra.mxu0 0
  %3994 = vmatprep.subr.bf16.mxu0 0
  %3995 = vmatpush1.bf16.msra.mxu0 0
  %3996 = vmatprep.subr.bf16.mxu0 0
  %3997 = vmatpush1.bf16.msra.mxu0 0
  %3998 = vmatprep.subr.bf16.mxu0 0
  %3999 = vmatpush1.bf16.msra.mxu0 0
  %4000 = vmatprep.subr.bf16.mxu0 0
  %4001 = vmatpush1.bf16.msra.mxu0 0
  %4002 = vmatprep.subr.bf16.mxu0 0
  %4003 = vmatpush1.bf16.msra.mxu0 0
  %4004 = vmatprep.subr.bf16.mxu0 0
  %4005 = vmatpush1.bf16.msra.mxu0 0
  %4006 = vmatprep.subr.bf16.mxu0 0
  %4007 = vmatpush1.bf16.msra.mxu0 0
  %4008 = vmatprep.subr.bf16.mxu0 0
  %4009 = vmatpush1.bf16.msra.mxu0 0
  %4010 = vmatprep.subr.bf16.mxu0 0
  %4011 = vmatpush1.bf16.msra.mxu0 0
  %4012 = vmatprep.subr.bf16.mxu0 0
  %4013 = vmatpush1.bf16.msra.mxu0 0
  %4014 = vmatprep.mubr.bf16.mxu0 0
  %4015 = vmatmul.mubr.bf16.gmra.mrb[0].mxu0 %v3980
  %v4016 = vpop.f32.mrb[0].mxu0
  %v4017 = vadd.f32 0.0, %v4016
  %v4018 = vpop.f32.mrb[0].mxu0
  %v4019 = vadd.f32 0.0, %v4018
  %v4020 = vpop.f32.mrb[0].mxu0
  %v4021 = vpop.f32.mrb[0].mxu0
  %4022 = vdwg.mxu0
  %v4023 = vadd.f32 %v3944, %v4017
  %v4024 = vadd.f32 %v3945, %v4019
  %v4025 = vld [vmem:[#allocation3 + $0x8] sm:$0xff]
  %v4026 = vld [vmem:[#allocation3 + $0x10] sm:$0xff]
  %v4027 = vld [vmem:[#allocation3 + $0x20] sm:$0xff]
  %v4028 = vld [vmem:[#allocation3 + $0x28] sm:$0xff]
  %v4030 = vsel %vm3697, %v233, 0
  %4032 = vmatprep.subr.bf16.mxu0 %v4026
  %4033 = vmatpush1.bf16.msra.mxu0 %v4025
  %4034 = vmatprep.subr.bf16.mxu0 %v4028
  %4035 = vmatpush1.bf16.msra.mxu0 %v4027
  %4036 = vmatprep.subr.bf16.mxu0 0
  %4037 = vmatpush1.bf16.msra.mxu0 0
  %4038 = vmatprep.subr.bf16.mxu0 0
  %4039 = vmatpush1.bf16.msra.mxu0 0
  %4040 = vmatprep.subr.bf16.mxu0 0
  %4041 = vmatpush1.bf16.msra.mxu0 0
  %4042 = vmatprep.subr.bf16.mxu0 0
  %4043 = vmatpush1.bf16.msra.mxu0 0
  %4044 = vmatprep.subr.bf16.mxu0 0
  %4045 = vmatpush1.bf16.msra.mxu0 0
  %4046 = vmatprep.subr.bf16.mxu0 0
  %4047 = vmatpush1.bf16.msra.mxu0 0
  %4048 = vmatprep.subr.bf16.mxu0 0
  %4049 = vmatpush1.bf16.msra.mxu0 0
  %4050 = vmatprep.subr.bf16.mxu0 0
  %4051 = vmatpush1.bf16.msra.mxu0 0
  %4052 = vmatprep.subr.bf16.mxu0 0
  %4053 = vmatpush1.bf16.msra.mxu0 0
  %4054 = vmatprep.subr.bf16.mxu0 0
  %4055 = vmatpush1.bf16.msra.mxu0 0
  %4056 = vmatprep.subr.bf16.mxu0 0
  %4057 = vmatpush1.bf16.msra.mxu0 0
  %4058 = vmatprep.subr.bf16.mxu0 0
  %4059 = vmatpush1.bf16.msra.mxu0 0
  %4060 = vmatprep.subr.bf16.mxu0 0
  %4061 = vmatpush1.bf16.msra.mxu0 0
  %4062 = vmatprep.subr.bf16.mxu0 0
  %4063 = vmatpush1.bf16.msra.mxu0 0
  %4064 = vmatprep.mubr.bf16.mxu0 0
  %4065 = vmatmul.mubr.bf16.gmra.mrb[0].mxu0 %v4030
  %v4066 = vpop.f32.mrb[0].mxu0
  %v4067 = vadd.f32 0.0, %v4066
  %v4068 = vpop.f32.mrb[0].mxu0
  %v4069 = vadd.f32 0.0, %v4068
  %v4070 = vpop.f32.mrb[0].mxu0
  %v4071 = vpop.f32.mrb[0].mxu0
  %4072 = vdwg.mxu0
  %v4073 = vadd.f32 %v4023, %v4067
  %v4074 = vadd.f32 %v4024, %v4069
  %v4076 = vsel %vm3697, %v234, 0
  %4078 = vmatprep.subr.bf16.mxu0 %v3948
  %4079 = vmatpush1.bf16.msra.mxu0 %v3947
  %4080 = vmatprep.subr.bf16.mxu0 %v3951
  %4081 = vmatpush1.bf16.msra.mxu0 %v3950
  %4082 = vmatprep.subr.bf16.mxu0 0
  %4083 = vmatpush1.bf16.msra.mxu0 0
  %4084 = vmatprep.subr.bf16.mxu0 0
  %4085 = vmatpush1.bf16.msra.mxu0 0
  %4086 = vmatprep.subr.bf16.mxu0 0
  %4087 = vmatpush1.bf16.msra.mxu0 0
  %4088 = vmatprep.subr.bf16.mxu0 0
  %4089 = vmatpush1.bf16.msra.mxu0 0
  %4090 = vmatprep.subr.bf16.mxu0 0
  %4091 = vmatpush1.bf16.msra.mxu0 0
  %4092 = vmatprep.subr.bf16.mxu0 0
  %4093 = vmatpush1.bf16.msra.mxu0 0
  %4094 = vmatprep.subr.bf16.mxu0 0
  %4095 = vmatpush1.bf16.msra.mxu0 0
  %4096 = vmatprep.subr.bf16.mxu0 0
  %4097 = vmatpush1.bf16.msra.mxu0 0
  %4098 = vmatprep.subr.bf16.mxu0 0
  %4099 = vmatpush1.bf16.msra.mxu0 0
  %4100 = vmatprep.subr.bf16.mxu0 0
  %4101 = vmatpush1.bf16.msra.mxu0 0
  %4102 = vmatprep.subr.bf16.mxu0 0
  %4103 = vmatpush1.bf16.msra.mxu0 0
  %4104 = vmatprep.subr.bf16.mxu0 0
  %4105 = vmatpush1.bf16.msra.mxu0 0
  %4106 = vmatprep.subr.bf16.mxu0 0
  %4107 = vmatpush1.bf16.msra.mxu0 0
  %4108 = vmatprep.subr.bf16.mxu0 0
  %4109 = vmatpush1.bf16.msra.mxu0 0
  %4110 = vmatprep.mubr.bf16.mxu0 0
  %4111 = vmatmul.mubr.bf16.gmra.mrb[0].mxu0 %v4076
  %v4112 = vpop.f32.mrb[0].mxu0
  %v4113 = vadd.f32 0.0, %v4112
  %v4114 = vpop.f32.mrb[0].mxu0
  %v4115 = vadd.f32 0.0, %v4114
  %v4116 = vpop.f32.mrb[0].mxu0
  %v4117 = vpop.f32.mrb[0].mxu0
  %4118 = vdwg.mxu0
  %v4119 = vadd.f32 %v4073, %v4113
  %v4120 = vadd.f32 %v4074, %v4115
  %4125 = vrot.lane.b32.xlu0 %v4025, 127
  %v4126 = vpop.permute.xlu0 %4125
  %4127 = vrot.lane.b32.xlu0 %v4026, 127
  %v4128 = vpop.permute.xlu0 %4127
  %4129 = vrot.lane.b32.xlu0 %v4027, 127
  %v4130 = vpop.permute.xlu0 %4129
  %4131 = vrot.lane.b32.xlu0 %v4028, 127
  %v4132 = vpop.permute.xlu0 %4131
  %v4133 = vsel %vm283, %v4126, %v4128
  %v4134 = vsel %vm283, %v4130, %v4132
  %v4140 = vsel %vm3697, %v235, 0
  %4142 = vmatprep.subr.bf16.mxu0 %v4128
  %4143 = vmatpush1.bf16.msra.mxu0 %v4133
  %4144 = vmatprep.subr.bf16.mxu0 %v4132
  %4145 = vmatpush1.bf16.msra.mxu0 %v4134
  %4146 = vmatprep.subr.bf16.mxu0 0
  %4147 = vmatpush1.bf16.msra.mxu0 0
  %4148 = vmatprep.subr.bf16.mxu0 0
  %4149 = vmatpush1.bf16.msra.mxu0 0
  %4150 = vmatprep.subr.bf16.mxu0 0
  %4151 = vmatpush1.bf16.msra.mxu0 0
  %4152 = vmatprep.subr.bf16.mxu0 0
  %4153 = vmatpush1.bf16.msra.mxu0 0
  %4154 = vmatprep.subr.bf16.mxu0 0
  %4155 = vmatpush1.bf16.msra.mxu0 0
  %4156 = vmatprep.subr.bf16.mxu0 0
  %4157 = vmatpush1.bf16.msra.mxu0 0
  %4158 = vmatprep.subr.bf16.mxu0 0
  %4159 = vmatpush1.bf16.msra.mxu0 0
  %4160 = vmatprep.subr.bf16.mxu0 0
  %4161 = vmatpush1.bf16.msra.mxu0 0
  %4162 = vmatprep.subr.bf16.mxu0 0
  %4163 = vmatpush1.bf16.msra.mxu0 0
  %4164 = vmatprep.subr.bf16.mxu0 0
  %4165 = vmatpush1.bf16.msra.mxu0 0
  %4166 = vmatprep.subr.bf16.mxu0 0
  %4167 = vmatpush1.bf16.msra.mxu0 0
  %4168 = vmatprep.subr.bf16.mxu0 0
  %4169 = vmatpush1.bf16.msra.mxu0 0
  %4170 = vmatprep.subr.bf16.mxu0 0
  %4171 = vmatpush1.bf16.msra.mxu0 0
  %4172 = vmatprep.subr.bf16.mxu0 0
  %4173 = vmatpush1.bf16.msra.mxu0 0
  %4174 = vmatprep.mubr.bf16.mxu0 0
  %4175 = vmatmul.mubr.bf16.gmra.mrb[0].mxu0 %v4140
  %v4176 = vpop.f32.mrb[0].mxu0
  %v4177 = vadd.f32 0.0, %v4176
  %v4178 = vpop.f32.mrb[0].mxu0
  %v4179 = vadd.f32 0.0, %v4178
  %v4180 = vpop.f32.mrb[0].mxu0
  %v4181 = vpop.f32.mrb[0].mxu0
  %4182 = vdwg.mxu0
  %v4183 = vadd.f32 %v4119, %v4177
  %v4184 = vadd.f32 %v4120, %v4179
  %4185 = vrot.lane.b32.xlu0 %v3658, 1
  %v4186 = vpop.permute.xlu0 %4185
  %4187 = vrot.lane.b32.xlu0 %v3659, 1
  %v4188 = vpop.permute.xlu0 %4187
  %4189 = vrot.lane.b32.xlu0 %v3660, 1
  %v4190 = vpop.permute.xlu0 %4189
  %4191 = vrot.lane.b32.xlu0 %v3661, 1
  %v4192 = vpop.permute.xlu0 %4191
  %4193 = vrot.lane.b32.xlu0 %v3662, 1
  %v4194 = vpop.permute.xlu0 %4193
  %4195 = vrot.lane.b32.xlu0 %v3663, 1
  %v4196 = vpop.permute.xlu0 %4195
  %v4197 = vsel %vm3970, %v4186, %v4188
  %v4198 = vsel %vm3970, %v4188, %v4190
  %v4199 = vsel %vm3970, %v4192, %v4194
  %v4200 = vsel %vm3970, %v4194, %v4196
  %v4206 = vsel %vm3697, %v236, 0
  %4208 = vmatprep.subr.bf16.mxu0 %v4198
  %4209 = vmatpush1.bf16.msra.mxu0 %v4197
  %4210 = vmatprep.subr.bf16.mxu0 %v4200
  %4211 = vmatpush1.bf16.msra.mxu0 %v4199
  %4212 = vmatprep.subr.bf16.mxu0 0
  %4213 = vmatpush1.bf16.msra.mxu0 0
  %4214 = vmatprep.subr.bf16.mxu0 0
  %4215 = vmatpush1.bf16.msra.mxu0 0
  %4216 = vmatprep.subr.bf16.mxu0 0
  %4217 = vmatpush1.bf16.msra.mxu0 0
  %4218 = vmatprep.subr.bf16.mxu0 0
  %4219 = vmatpush1.bf16.msra.mxu0 0
  %4220 = vmatprep.subr.bf16.mxu0 0
  %4221 = vmatpush1.bf16.msra.mxu0 0
  %4222 = vmatprep.subr.bf16.mxu0 0
  %4223 = vmatpush1.bf16.msra.mxu0 0
  %4224 = vmatprep.subr.bf16.mxu0 0
  %4225 = vmatpush1.bf16.msra.mxu0 0
  %4226 = vmatprep.subr.bf16.mxu0 0
  %4227 = vmatpush1.bf16.msra.mxu0 0
  %4228 = vmatprep.subr.bf16.mxu0 0
  %4229 = vmatpush1.bf16.msra.mxu0 0
  %4230 = vmatprep.subr.bf16.mxu0 0
  %4231 = vmatpush1.bf16.msra.mxu0 0
  %4232 = vmatprep.subr.bf16.mxu0 0
  %4233 = vmatpush1.bf16.msra.mxu0 0
  %4234 = vmatprep.subr.bf16.mxu0 0
  %4235 = vmatpush1.bf16.msra.mxu0 0
  %4236 = vmatprep.subr.bf16.mxu0 0
  %4237 = vmatpush1.bf16.msra.mxu0 0
  %4238 = vmatprep.subr.bf16.mxu0 0
  %4239 = vmatpush1.bf16.msra.mxu0 0
  %4240 = vmatprep.mubr.bf16.mxu0 0
  %4241 = vmatmul.mubr.bf16.gmra.mrb[0].mxu0 %v4206
  %v4242 = vpop.f32.mrb[0].mxu0
  %v4243 = vadd.f32 0.0, %v4242
  %v4244 = vpop.f32.mrb[0].mxu0
  %v4245 = vadd.f32 0.0, %v4244
  %v4246 = vpop.f32.mrb[0].mxu0
  %v4247 = vpop.f32.mrb[0].mxu0
  %4248 = vdwg.mxu0
  %v4249 = vadd.f32 %v4183, %v4243
  %v4250 = vadd.f32 %v4184, %v4245
  %v4252 = vsel %vm3697, %v237, 0
  %4254 = vmatprep.subr.bf16.mxu0 %v3666
  %4255 = vmatpush1.bf16.msra.mxu0 %v3665
  %4256 = vmatprep.subr.bf16.mxu0 %v3669
  %4257 = vmatpush1.bf16.msra.mxu0 %v3668
  %4258 = vmatprep.subr.bf16.mxu0 0
  %4259 = vmatpush1.bf16.msra.mxu0 0
  %4260 = vmatprep.subr.bf16.mxu0 0
  %4261 = vmatpush1.bf16.msra.mxu0 0
  %4262 = vmatprep.subr.bf16.mxu0 0
  %4263 = vmatpush1.bf16.msra.mxu0 0
  %4264 = vmatprep.subr.bf16.mxu0 0
  %4265 = vmatpush1.bf16.msra.mxu0 0
  %4266 = vmatprep.subr.bf16.mxu0 0
  %4267 = vmatpush1.bf16.msra.mxu0 0
  %4268 = vmatprep.subr.bf16.mxu0 0
  %4269 = vmatpush1.bf16.msra.mxu0 0
  %4270 = vmatprep.subr.bf16.mxu0 0
  %4271 = vmatpush1.bf16.msra.mxu0 0
  %4272 = vmatprep.subr.bf16.mxu0 0
  %4273 = vmatpush1.bf16.msra.mxu0 0
  %4274 = vmatprep.subr.bf16.mxu0 0
  %4275 = vmatpush1.bf16.msra.mxu0 0
  %4276 = vmatprep.subr.bf16.mxu0 0
  %4277 = vmatpush1.bf16.msra.mxu0 0
  %4278 = vmatprep.subr.bf16.mxu0 0
  %4279 = vmatpush1.bf16.msra.mxu0 0
  %4280 = vmatprep.subr.bf16.mxu0 0
  %4281 = vmatpush1.bf16.msra.mxu0 0
  %4282 = vmatprep.subr.bf16.mxu0 0
  %4283 = vmatpush1.bf16.msra.mxu0 0
  %4284 = vmatprep.subr.bf16.mxu0 0
  %4285 = vmatpush1.bf16.msra.mxu0 0
  %4286 = vmatprep.mubr.bf16.mxu0 0
  %4287 = vmatmul.mubr.bf16.gmra.mrb[0].mxu0 %v4252
  %v4288 = vpop.f32.mrb[0].mxu0
  %v4289 = vadd.f32 0.0, %v4288
  %v4290 = vpop.f32.mrb[0].mxu0
  %v4291 = vadd.f32 0.0, %v4290
  %v4292 = vpop.f32.mrb[0].mxu0
  %v4293 = vpop.f32.mrb[0].mxu0
  %4294 = vdwg.mxu0
  %v4295 = vadd.f32 %v4249, %v4289
  %v4296 = vadd.f32 %v4250, %v4291
  %v4298 = vsel %vm3697, %v238, 0
  %4300 = vmatprep.subr.bf16.mxu0 %v3660
  %4301 = vmatpush1.bf16.msra.mxu0 %v3659
  %4302 = vmatprep.subr.bf16.mxu0 %v3663
  %4303 = vmatpush1.bf16.msra.mxu0 %v3662
  %4304 = vmatprep.subr.bf16.mxu0 0
  %4305 = vmatpush1.bf16.msra.mxu0 0
  %4306 = vmatprep.subr.bf16.mxu0 0
  %4307 = vmatpush1.bf16.msra.mxu0 0
  %4308 = vmatprep.subr.bf16.mxu0 0
  %4309 = vmatpush1.bf16.msra.mxu0 0
  %4310 = vmatprep.subr.bf16.mxu0 0
  %4311 = vmatpush1.bf16.msra.mxu0 0
  %4312 = vmatprep.subr.bf16.mxu0 0
  %4313 = vmatpush1.bf16.msra.mxu0 0
  %4314 = vmatprep.subr.bf16.mxu0 0
  %4315 = vmatpush1.bf16.msra.mxu0 0
  %4316 = vmatprep.subr.bf16.mxu0 0
  %4317 = vmatpush1.bf16.msra.mxu0 0
  %4318 = vmatprep.subr.bf16.mxu0 0
  %4319 = vmatpush1.bf16.msra.mxu0 0
  %4320 = vmatprep.subr.bf16.mxu0 0
  %4321 = vmatpush1.bf16.msra.mxu0 0
  %4322 = vmatprep.subr.bf16.mxu0 0
  %4323 = vmatpush1.bf16.msra.mxu0 0
  %4324 = vmatprep.subr.bf16.mxu0 0
  %4325 = vmatpush1.bf16.msra.mxu0 0
  %4326 = vmatprep.subr.bf16.mxu0 0
  %4327 = vmatpush1.bf16.msra.mxu0 0
  %4328 = vmatprep.subr.bf16.mxu0 0
  %4329 = vmatpush1.bf16.msra.mxu0 0
  %4330 = vmatprep.subr.bf16.mxu0 0
  %4331 = vmatpush1.bf16.msra.mxu0 0
  %4332 = vmatprep.mubr.bf16.mxu0 0
  %4333 = vmatmul.mubr.bf16.gmra.mrb[0].mxu0 %v4298
  %v4334 = vpop.f32.mrb[0].mxu0
  %v4335 = vadd.f32 0.0, %v4334
  %v4336 = vpop.f32.mrb[0].mxu0
  %v4337 = vadd.f32 0.0, %v4336
  %v4338 = vpop.f32.mrb[0].mxu0
  %v4339 = vpop.f32.mrb[0].mxu0
  %4340 = vdwg.mxu0
  %v4341 = vadd.f32 %v4295, %v4335
  %v4342 = vadd.f32 %v4296, %v4337
  %4343 = vrot.lane.b32.xlu0 %v3665, 127
  %v4344 = vpop.permute.xlu0 %4343
  %4345 = vrot.lane.b32.xlu0 %v3666, 127
  %v4346 = vpop.permute.xlu0 %4345
  %4347 = vrot.lane.b32.xlu0 %v3668, 127
  %v4348 = vpop.permute.xlu0 %4347
  %4349 = vrot.lane.b32.xlu0 %v3669, 127
  %v4350 = vpop.permute.xlu0 %4349
  %v4351 = vsel %vm283, %v4344, %v4346
  %v4352 = vsel %vm283, %v4348, %v4350
  %v4358 = vsel %vm3697, %v239, 0
  %4360 = vmatprep.subr.bf16.mxu0 %v4346
  %4361 = vmatpush1.bf16.msra.mxu0 %v4351
  %4362 = vmatprep.subr.bf16.mxu0 %v4350
  %4363 = vmatpush1.bf16.msra.mxu0 %v4352
  %4364 = vmatprep.subr.bf16.mxu0 0
  %4365 = vmatpush1.bf16.msra.mxu0 0
  %4366 = vmatprep.subr.bf16.mxu0 0
  %4367 = vmatpush1.bf16.msra.mxu0 0
  %4368 = vmatprep.subr.bf16.mxu0 0
  %4369 = vmatpush1.bf16.msra.mxu0 0
  %4370 = vmatprep.subr.bf16.mxu0 0
  %4371 = vmatpush1.bf16.msra.mxu0 0
  %4372 = vmatprep.subr.bf16.mxu0 0
  %4373 = vmatpush1.bf16.msra.mxu0 0
  %4374 = vmatprep.subr.bf16.mxu0 0
  %4375 = vmatpush1.bf16.msra.mxu0 0
  %4376 = vmatprep.subr.bf16.mxu0 0
  %4377 = vmatpush1.bf16.msra.mxu0 0
  %4378 = vmatprep.subr.bf16.mxu0 0
  %4379 = vmatpush1.bf16.msra.mxu0 0
  %4380 = vmatprep.subr.bf16.mxu0 0
  %4381 = vmatpush1.bf16.msra.mxu0 0
  %4382 = vmatprep.subr.bf16.mxu0 0
  %4383 = vmatpush1.bf16.msra.mxu0 0
  %4384 = vmatprep.subr.bf16.mxu0 0
  %4385 = vmatpush1.bf16.msra.mxu0 0
  %4386 = vmatprep.subr.bf16.mxu0 0
  %4387 = vmatpush1.bf16.msra.mxu0 0
  %4388 = vmatprep.subr.bf16.mxu0 0
  %4389 = vmatpush1.bf16.msra.mxu0 0
  %4390 = vmatprep.subr.bf16.mxu0 0
  %4391 = vmatpush1.bf16.msra.mxu0 0
  %4392 = vmatprep.mubr.bf16.mxu0 0
  %4393 = vmatmul.mubr.bf16.gmra.mrb[0].mxu0 %v4358
  %v4394 = vpop.f32.mrb[0].mxu0
  %v4395 = vadd.f32 0.0, %v4394
  %v4396 = vpop.f32.mrb[0].mxu0
  %v4397 = vadd.f32 0.0, %v4396
  %v4398 = vpop.f32.mrb[0].mxu0
  %v4399 = vpop.f32.mrb[0].mxu0
  %4400 = vdwg.mxu0
  %v4401 = vadd.f32 %v4341, %v4395
  %v4402 = vadd.f32 %v4342, %v4397
  %4403 = vrot.lane.b32.xlu0 %v3947, 119
  %v4404 = vpop.permute.xlu0 %4403
  %4405 = vrot.lane.b32.xlu0 %v3948, 119
  %v4406 = vpop.permute.xlu0 %4405
  %4407 = vrot.lane.b32.xlu0 %v3950, 119
  %v4408 = vpop.permute.xlu0 %4407
  %4409 = vrot.lane.b32.xlu0 %v3951, 119
  %v4410 = vpop.permute.xlu0 %4409
  %vm4411 = vcmask 973824
  %v4412 = vsel %vm4411, %v4404, %v4406
  %v4413 = vsel %vm4411, %v4408, %v4410
  %v4419 = vsel %vm3697, %v240, 0
  %4421 = vmatprep.subr.bf16.mxu0 %v4406
  %4422 = vmatpush1.bf16.msra.mxu0 %v4412
  %4423 = vmatprep.subr.bf16.mxu0 %v4410
  %4424 = vmatpush1.bf16.msra.mxu0 %v4413
  %4425 = vmatprep.subr.bf16.mxu0 0
  %4426 = vmatpush1.bf16.msra.mxu0 0
  %4427 = vmatprep.subr.bf16.mxu0 0
  %4428 = vmatpush1.bf16.msra.mxu0 0
  %4429 = vmatprep.subr.bf16.mxu0 0
  %4430 = vmatpush1.bf16.msra.mxu0 0
  %4431 = vmatprep.subr.bf16.mxu0 0
  %4432 = vmatpush1.bf16.msra.mxu0 0
  %4433 = vmatprep.subr.bf16.mxu0 0
  %4434 = vmatpush1.bf16.msra.mxu0 0
  %4435 = vmatprep.subr.bf16.mxu0 0
  %4436 = vmatpush1.bf16.msra.mxu0 0
  %4437 = vmatprep.subr.bf16.mxu0 0
  %4438 = vmatpush1.bf16.msra.mxu0 0
  %4439 = vmatprep.subr.bf16.mxu0 0
  %4440 = vmatpush1.bf16.msra.mxu0 0
  %4441 = vmatprep.subr.bf16.mxu0 0
  %4442 = vmatpush1.bf16.msra.mxu0 0
  %4443 = vmatprep.subr.bf16.mxu0 0
  %4444 = vmatpush1.bf16.msra.mxu0 0
  %4445 = vmatprep.subr.bf16.mxu0 0
  %4446 = vmatpush1.bf16.msra.mxu0 0
  %4447 = vmatprep.subr.bf16.mxu0 0
  %4448 = vmatpush1.bf16.msra.mxu0 0
  %4449 = vmatprep.subr.bf16.mxu0 0
  %4450 = vmatpush1.bf16.msra.mxu0 0
  %4451 = vmatprep.subr.bf16.mxu0 0
  %4452 = vmatpush1.bf16.msra.mxu0 0
  %4453 = vmatprep.mubr.bf16.mxu0 0
  %4454 = vmatmul.mubr.bf16.gmra.mrb[0].mxu0 %v4419
  %v4455 = vpop.f32.mrb[0].mxu0
  %v4456 = vadd.f32 0.0, %v4455
  %v4457 = vpop.f32.mrb[0].mxu0
  %v4458 = vadd.f32 0.0, %v4457
  %v4459 = vpop.f32.mrb[0].mxu0
  %v4460 = vpop.f32.mrb[0].mxu0
  %4461 = vdwg.mxu0
  %v4462 = vadd.f32 %v4401, %v4456
  %v4463 = vadd.f32 %v4402, %v4458
  %4464 = vrot.lane.b32.xlu0 %v4025, 118
  %v4465 = vpop.permute.xlu0 %4464
  %4466 = vrot.lane.b32.xlu0 %v4026, 118
  %v4467 = vpop.permute.xlu0 %4466
  %4468 = vrot.lane.b32.xlu0 %v4027, 118
  %v4469 = vpop.permute.xlu0 %4468
  %4470 = vrot.lane.b32.xlu0 %v4028, 118
  %v4471 = vpop.permute.xlu0 %4470
  %v4472 = vsel %vm558, %v4465, %v4467
  %v4473 = vsel %vm558, %v4469, %v4471
  %v4479 = vsel %vm3697, %v241, 0
  %4481 = vmatprep.subr.bf16.mxu0 %v4467
  %4482 = vmatpush1.bf16.msra.mxu0 %v4472
  %4483 = vmatprep.subr.bf16.mxu0 %v4471
  %4484 = vmatpush1.bf16.msra.mxu0 %v4473
  %4485 = vmatprep.subr.bf16.mxu0 0
  %4486 = vmatpush1.bf16.msra.mxu0 0
  %4487 = vmatprep.subr.bf16.mxu0 0
  %4488 = vmatpush1.bf16.msra.mxu0 0
  %4489 = vmatprep.subr.bf16.mxu0 0
  %4490 = vmatpush1.bf16.msra.mxu0 0
  %4491 = vmatprep.subr.bf16.mxu0 0
  %4492 = vmatpush1.bf16.msra.mxu0 0
  %4493 = vmatprep.subr.bf16.mxu0 0
  %4494 = vmatpush1.bf16.msra.mxu0 0
  %4495 = vmatprep.subr.bf16.mxu0 0
  %4496 = vmatpush1.bf16.msra.mxu0 0
  %4497 = vmatprep.subr.bf16.mxu0 0
  %4498 = vmatpush1.bf16.msra.mxu0 0
  %4499 = vmatprep.subr.bf16.mxu0 0
  %4500 = vmatpush1.bf16.msra.mxu0 0
  %4501 = vmatprep.subr.bf16.mxu0 0
  %4502 = vmatpush1.bf16.msra.mxu0 0
  %4503 = vmatprep.subr.bf16.mxu0 0
  %4504 = vmatpush1.bf16.msra.mxu0 0
  %4505 = vmatprep.subr.bf16.mxu0 0
  %4506 = vmatpush1.bf16.msra.mxu0 0
  %4507 = vmatprep.subr.bf16.mxu0 0
  %4508 = vmatpush1.bf16.msra.mxu0 0
  %4509 = vmatprep.subr.bf16.mxu0 0
  %4510 = vmatpush1.bf16.msra.mxu0 0
  %4511 = vmatprep.subr.bf16.mxu0 0
  %4512 = vmatpush1.bf16.msra.mxu0 0
  %4513 = vmatprep.mubr.bf16.mxu0 0
  %4514 = vmatmul.mubr.bf16.gmra.mrb[0].mxu0 %v4479
  %v4515 = vpop.f32.mrb[0].mxu0
  %v4516 = vadd.f32 0.0, %v4515
  %v4517 = vpop.f32.mrb[0].mxu0
  %v4518 = vadd.f32 0.0, %v4517
  %v4519 = vpop.f32.mrb[0].mxu0
  %v4520 = vpop.f32.mrb[0].mxu0
  %4521 = vdwg.mxu0
  %v4522 = vadd.f32 %v4462, %v4516
  %v4523 = vadd.f32 %v4463, %v4518
  %4524 = vrot.lane.b32.xlu0 %v3947, 118
  %v4525 = vpop.permute.xlu0 %4524
  %4526 = vrot.lane.b32.xlu0 %v3948, 118
  %v4527 = vpop.permute.xlu0 %4526
  %4528 = vrot.lane.b32.xlu0 %v3950, 118
  %v4529 = vpop.permute.xlu0 %4528
  %4530 = vrot.lane.b32.xlu0 %v3951, 118
  %v4531 = vpop.permute.xlu0 %4530
  %v4532 = vsel %vm558, %v4525, %v4527
  %v4533 = vsel %vm558, %v4529, %v4531
  %v4539 = vsel %vm3697, %v242, 0
  %4541 = vmatprep.subr.bf16.mxu0 %v4527
  %4542 = vmatpush1.bf16.msra.mxu0 %v4532
  %4543 = vmatprep.subr.bf16.mxu0 %v4531
  %4544 = vmatpush1.bf16.msra.mxu0 %v4533
  %4545 = vmatprep.subr.bf16.mxu0 0
  %4546 = vmatpush1.bf16.msra.mxu0 0
  %4547 = vmatprep.subr.bf16.mxu0 0
  %4548 = vmatpush1.bf16.msra.mxu0 0
  %4549 = vmatprep.subr.bf16.mxu0 0
  %4550 = vmatpush1.bf16.msra.mxu0 0
  %4551 = vmatprep.subr.bf16.mxu0 0
  %4552 = vmatpush1.bf16.msra.mxu0 0
  %4553 = vmatprep.subr.bf16.mxu0 0
  %4554 = vmatpush1.bf16.msra.mxu0 0
  %4555 = vmatprep.subr.bf16.mxu0 0
  %4556 = vmatpush1.bf16.msra.mxu0 0
  %4557 = vmatprep.subr.bf16.mxu0 0
  %4558 = vmatpush1.bf16.msra.mxu0 0
  %4559 = vmatprep.subr.bf16.mxu0 0
  %4560 = vmatpush1.bf16.msra.mxu0 0
  %4561 = vmatprep.subr.bf16.mxu0 0
  %4562 = vmatpush1.bf16.msra.mxu0 0
  %4563 = vmatprep.subr.bf16.mxu0 0
  %4564 = vmatpush1.bf16.msra.mxu0 0
  %4565 = vmatprep.subr.bf16.mxu0 0
  %4566 = vmatpush1.bf16.msra.mxu0 0
  %4567 = vmatprep.subr.bf16.mxu0 0
  %4568 = vmatpush1.bf16.msra.mxu0 0
  %4569 = vmatprep.subr.bf16.mxu0 0
  %4570 = vmatpush1.bf16.msra.mxu0 0
  %4571 = vmatprep.subr.bf16.mxu0 0
  %4572 = vmatpush1.bf16.msra.mxu0 0
  %4573 = vmatprep.mubr.bf16.mxu0 0
  %4574 = vmatmul.mubr.bf16.gmra.mrb[0].mxu0 %v4539
  %v4575 = vpop.f32.mrb[0].mxu0
  %v4576 = vadd.f32 0.0, %v4575
  %v4577 = vpop.f32.mrb[0].mxu0
  %v4578 = vadd.f32 0.0, %v4577
  %v4579 = vpop.f32.mrb[0].mxu0
  %v4580 = vpop.f32.mrb[0].mxu0
  %4581 = vdwg.mxu0
  %v4582 = vadd.f32 %v4522, %v4576
  %v4583 = vadd.f32 %v4523, %v4578
  %4584 = vrot.lane.b32.xlu0 %v4025, 117
  %v4585 = vpop.permute.xlu0 %4584
  %4586 = vrot.lane.b32.xlu0 %v4026, 117
  %v4587 = vpop.permute.xlu0 %4586
  %4588 = vrot.lane.b32.xlu0 %v4027, 117
  %v4589 = vpop.permute.xlu0 %4588
  %4590 = vrot.lane.b32.xlu0 %v4028, 117
  %v4591 = vpop.permute.xlu0 %4590
  %v4592 = vsel %vm657, %v4585, %v4587
  %v4593 = vsel %vm657, %v4589, %v4591
  %v4599 = vsel %vm3697, %v243, 0
  %4601 = vmatprep.subr.bf16.mxu0 %v4587
  %4602 = vmatpush1.bf16.msra.mxu0 %v4592
  %4603 = vmatprep.subr.bf16.mxu0 %v4591
  %4604 = vmatpush1.bf16.msra.mxu0 %v4593
  %4605 = vmatprep.subr.bf16.mxu0 0
  %4606 = vmatpush1.bf16.msra.mxu0 0
  %4607 = vmatprep.subr.bf16.mxu0 0
  %4608 = vmatpush1.bf16.msra.mxu0 0
  %4609 = vmatprep.subr.bf16.mxu0 0
  %4610 = vmatpush1.bf16.msra.mxu0 0
  %4611 = vmatprep.subr.bf16.mxu0 0
  %4612 = vmatpush1.bf16.msra.mxu0 0
  %4613 = vmatprep.subr.bf16.mxu0 0
  %4614 = vmatpush1.bf16.msra.mxu0 0
  %4615 = vmatprep.subr.bf16.mxu0 0
  %4616 = vmatpush1.bf16.msra.mxu0 0
  %4617 = vmatprep.subr.bf16.mxu0 0
  %4618 = vmatpush1.bf16.msra.mxu0 0
  %4619 = vmatprep.subr.bf16.mxu0 0
  %4620 = vmatpush1.bf16.msra.mxu0 0
  %4621 = vmatprep.subr.bf16.mxu0 0
  %4622 = vmatpush1.bf16.msra.mxu0 0
  %4623 = vmatprep.subr.bf16.mxu0 0
  %4624 = vmatpush1.bf16.msra.mxu0 0
  %4625 = vmatprep.subr.bf16.mxu0 0
  %4626 = vmatpush1.bf16.msra.mxu0 0
  %4627 = vmatprep.subr.bf16.mxu0 0
  %4628 = vmatpush1.bf16.msra.mxu0 0
  %4629 = vmatprep.subr.bf16.mxu0 0
  %4630 = vmatpush1.bf16.msra.mxu0 0
  %4631 = vmatprep.subr.bf16.mxu0 0
  %4632 = vmatpush1.bf16.msra.mxu0 0
  %4633 = vmatprep.mubr.bf16.mxu0 0
  %4634 = vmatmul.mubr.bf16.gmra.mrb[0].mxu0 %v4599
  %v4635 = vpop.f32.mrb[0].mxu0
  %v4636 = vadd.f32 0.0, %v4635
  %v4637 = vpop.f32.mrb[0].mxu0
  %v4638 = vadd.f32 0.0, %v4637
  %v4639 = vpop.f32.mrb[0].mxu0
  %v4640 = vpop.f32.mrb[0].mxu0
  %4641 = vdwg.mxu0
  %v4642 = vadd.f32 %v4582, %v4636
  %v4643 = vadd.f32 %v4583, %v4638
  %v4644 = vld [vmem:[%s9] sm:$0xff]
  %4646 = vset.pattern.permute.xlu0 0
  %4647 = vperm.xlu0 %4646, %v4644
  %v4648 = vpop.permute.xlu0 %4647
  %v4650 = vadd.f32 %v4642, %v4648
  %v4651 = vadd.f32 %v4643, %v4648
  %4652 = vst [vmem:[%s11] sm:$0xff] %v4650
  %4653 = vst.msk [vmem:[%s11 + $0x8] sm:$0xff] %vm1153, %v4651
  // Predicated region
  $region42: #{dense_down_forward.1} parent=0 // pred_check
    _
  $region43: #{dense_down_forward.1} parent=0 // pred_check_branch
    %4655 = sbr.rel (0) target = $region45
  $region44: #{dense_down_forward.1} parent=0 // pred_region
    _
  $region45: #{dense_down_forward.1} parent=0 // pred_fallthru
    _
  // Predicated region
  $region46: #{dense_down_forward.1} parent=0 // pred_check
    _
  $region47: #{dense_down_forward.1} parent=0 // pred_check_branch
    %4657 = sbr.rel (0) target = $region49
  $region48: #{dense_down_forward.1} parent=0 // pred_region
    _
  $region49: #{dense_down_forward.1} parent=0 // pred_fallthru
    _
  // Predicated region
  $region50: #{dense_down_forward.1} parent=0 // pred_check
    _
  $region51: #{dense_down_forward.1} parent=0 // pred_check_branch
    %4659 = sbr.rel (0) target = $region53
  $region52: #{dense_down_forward.1} parent=0 // pred_region
    _
  $region53: #{dense_down_forward.1} parent=0 // pred_fallthru
    _
  // Predicated region
  $region54: #{dense_down_forward.1} parent=0 // pred_check
    _
  $region55: #{dense_down_forward.1} parent=0 // pred_check_branch
    %4661 = sbr.rel (0) target = $region57
  $region56: #{dense_down_forward.1} parent=0 // pred_region
    _
  $region57: #{dense_down_forward.1} parent=0 // pred_fallthru
    _

</llo_original>
